<compile_context>
chip_gen: v6e
topology: v6e:2x2x1
jax: 0.10.0
libtpu: 0.0.40
codegen_flags: <defaults>
</compile_context>

<pallas_src>
import functools

import jax
import jax.numpy as jnp
from jax import lax
from jax.experimental import pallas as pl
from jax.experimental.pallas import tpu as pltpu
import numpy as np


def _round_up(x, m):
    return (x + m - 1) // m * m


def _largest_divisor_leq(n, cap):
    for d in range(min(n, max(cap, 1)), 0, -1):
        if n % d == 0:
            return d
    return 1


def _vmem_limit_bytes():
    """Generation-aware VMEM budget (3/4 of physical, capped at 100 MiB)."""
    try:
        cap = int(pltpu.get_tpu_info().vmem_capacity_bytes)
    except Exception:
        cap = 64 * 1024 * 1024          # conservative (v7x-sized) fallback
    return int(min(cap * 3 // 4, 100 * 1024 * 1024))


# ---------------------------------------------------------------------------
# Kernel 1: input projection for both directions (bias folded in).
#   x2d: (S_pad*Bp, E)   w: (E, 6Hp)   b: (1, 6Hp)   out: (S_pad*Bp, 6Hp)
#   columns: [r_f, z_f, n_f, r_b, z_b, n_b], each Hp wide.
# ---------------------------------------------------------------------------
def _input_proj_kernel(x_ref, w_ref, b_ref, out_ref):
    out_ref[...] = (
        jnp.dot(x_ref[...], w_ref[...], preferred_element_type=jnp.float32)
        + b_ref[...])


# ---------------------------------------------------------------------------
# Kernel 2: bidirectional GRU recurrence + running sum over time.
#   gif_ref: (TT, Bp, 3Hp) forward-direction gi for chunk c
#   gib_ref: (TT, Bp, 3Hp) backward-direction gi for chunk num_chunks-1-c
#   whh_ref: (2, Hp, 3Hp)  per-direction hidden weights [r|z|n]
#   bhn_ref: (2, 1, Hp)    per-direction b_hn (kept inside r*(...))
# ---------------------------------------------------------------------------
def _gru_recurrence_kernel(gif_ref, gib_ref, whh_ref, bhn_ref, out_ref,
                           hf_scr, hb_scr, acc_scr, *,
                           tt, hp, s_total, pad, inv_scale, unroll):
    @pl.when(pl.program_id(0) == 0)
    def _():
        hf_scr[...] = jnp.zeros_like(hf_scr)
        hb_scr[...] = jnp.zeros_like(hb_scr)
        acc_scr[...] = jnp.zeros_like(acc_scr)

    whh_f = whh_ref[0]                    # (Hp, 3Hp)
    whh_b = whh_ref[1]
    bhn_f = bhn_ref[0]                    # (1, Hp)
    bhn_b = bhn_ref[1]
    needs_mask = pad > 0                  # static
    t0 = pl.program_id(0) * tt

    def one_dir(gi, h, whh_d, bhn_d):
        gh = jnp.dot(h, whh_d, preferred_element_type=jnp.float32)  # (Bp,3Hp)
        rz = jax.nn.sigmoid(gi[:, :2 * hp] + gh[:, :2 * hp])
        r = rz[:, :hp]
        z = rz[:, hp:]
        n = jnp.tanh(gi[:, 2 * hp:] + r * (gh[:, 2 * hp:] + bhn_d))
        return (1.0 - z) * n + z * h

    def step(i, carry):
        h_f = hf_scr[...]
        h_b = hb_scr[...]
        hf_new = one_dir(gif_ref[i], h_f, whh_f, bhn_f)
        hb_new = one_dir(gib_ref[tt - 1 - i], h_b, whh_b, bhn_b)
        if needs_mask:
            # Fixed-size chunks with a padded time axis: forward timesteps
            # >= S and the first `pad` backward steps are no-ops.
            t = t0 + i
            fwd_ok = t < s_total
            bwd_ok = t >= pad
            hf_new = jnp.where(fwd_ok, hf_new, h_f)
            hb_new = jnp.where(bwd_ok, hb_new, h_b)
            acc_scr[...] = acc_scr[...] + (jnp.where(fwd_ok, hf_new, 0.0)
                                           + jnp.where(bwd_ok, hb_new, 0.0))
        else:
            acc_scr[...] = acc_scr[...] + hf_new + hb_new
        hf_scr[...] = hf_new
        hb_scr[...] = hb_new
        return carry

    lax.fori_loop(0, tt, step, 0, unroll=unroll)

    @pl.when(pl.program_id(0) == pl.num_programs(0) - 1)
    def _():
        out_ref[...] = acc_scr[...] * inv_scale


# ---------------------------------------------------------------------------
# Weight preparation (gate order r, z, n; each gate padded to Hp lanes).
# ---------------------------------------------------------------------------
def _prepare_weights(params, E, H, Hp):
    f32 = jnp.float32

    def gates(w):  # (rows, 3H) -> 3 x (rows, Hp), column-padded per gate
        return [jnp.pad(w[:, g * H:(g + 1) * H].astype(f32),
                        ((0, 0), (0, Hp - H))) for g in range(3)]

    wif = gates(params["wih_f"])
    wib = gates(params["wih_b"])
    w_all = jnp.concatenate(wif + wib, axis=1)                    # (E, 6Hp)

    bif = gates(params["bih_f"])
    bib = gates(params["bih_b"])
    bhf = gates(params["bhh_f"])
    bhb = gates(params["bhh_b"])
    # Fold hidden-side r/z biases into the input projection; b_hn stays out
    # (it must sit inside the r*(...) term of the GRU cell).
    b_all = jnp.concatenate(
        [bif[0] + bhf[0], bif[1] + bhf[1], bif[2],
         bib[0] + bhb[0], bib[1] + bhb[1], bib[2]], axis=1)       # (1, 6Hp)

    def hid(w):  # (H, 3H) -> (Hp, 3Hp)
        return jnp.concatenate(
            [jnp.pad(g, ((0, Hp - H), (0, 0))) for g in gates(w)], axis=1)

    whh = jnp.stack([hid(params["whh_f"]), hid(params["whh_b"])])  # (2,Hp,3Hp)
    bhn = jnp.stack([bhf[2], bhb[2]])                              # (2,1,Hp)
    return w_all, b_all, whh, bhn


# ---------------------------------------------------------------------------
# Wrapper
# ---------------------------------------------------------------------------
def encoder_forward(embeds, mask, params):
    """embeds: (B, S, E) float32, mask unused. Returns (B, H) float32."""
    del mask  # reference forward() ignores the mask (averages over all S)
    B, S, E = embeds.shape
    H = params["whh_f"].shape[0]
    Hp = _round_up(H, 128)                 # lane-aligned gate width
    Bp = _round_up(B, 8)                   # sublane-aligned batch
    f32 = jnp.float32

    vmem_limit = _vmem_limit_bytes()

    # ---- timesteps per recurrence grid step (VMEM-aware) -------------------
    gi_tile_bytes_per_t = 2 * 2 * Bp * 3 * Hp * 4     # 2 dirs x double-buffer
    resident_bytes = (2 * Hp * 3 * Hp + 2 * Hp + 3 * Bp * Hp + 2 * Bp * Hp) * 4
    budget = vmem_limit - resident_bytes - 4 * 1024 * 1024
    tt_cap = int(max(1, min(32, budget // gi_tile_bytes_per_t, S)))
    TT = _largest_divisor_leq(S, tt_cap)
    if TT < tt_cap and TT < min(8, S):
        # Awkward S (e.g. prime): fixed-size chunks + in-kernel tail masking
        TT = min(tt_cap, 8)
    num_chunks = -(-S // TT)
    S_pad = num_chunks * TT
    P = S_pad - S

    # ---- time-major, batch/time-padded input --------------------------------
    x = jnp.transpose(embeds.astype(f32), (1, 0, 2))          # (S, B, E)
    x = jnp.pad(x, ((0, P), (0, Bp - B), (0, 0)))              # (S_pad, Bp, E)
    x2d = x.reshape(S_pad * Bp, E)

    w_all, b_all, whh, bhn = _prepare_weights(params, E, H, Hp)

    # ---- kernel 1: input projection, row-tiled independently of TT ---------
    R = S_pad * Bp
    w_bytes = (E + 1) * 6 * Hp * 4
    per_row_bytes = 2 * (E + 6 * Hp) * 4           # double-buffered in + out
    rows_cap = max(Bp, (vmem_limit - w_bytes - 2 * 1024 * 1024) // per_row_bytes)
    tm_rows = min(512, int(rows_cap))
    TM = _largest_divisor_leq(S_pad, max(1, tm_rows // Bp)) * Bp

    gi2d = pl.pallas_call(
        _input_proj_kernel,
        out_shape=jax.ShapeDtypeStruct((R, 6 * Hp), f32),
        grid=(R // TM,),
        in_specs=[
            pl.BlockSpec((TM, E), lambda r: (r, 0)),
            pl.BlockSpec(memory_space=pltpu.MemorySpace.VMEM),   # w_all resident
            pl.BlockSpec(memory_space=pltpu.MemorySpace.VMEM),   # b_all resident
        ],
        out_specs=pl.BlockSpec((TM, 6 * Hp), lambda r: (r, 0)),
        compiler_params=pltpu.CompilerParams(
            dimension_semantics=("parallel",),
            vmem_limit_bytes=vmem_limit),
    )(x2d, w_all, b_all)

    gi = gi2d.reshape(S_pad, Bp, 6 * Hp)

    # ---- kernel 2: fused fwd/bwd recurrence, pipelined over chunks ----------
    kernel = functools.partial(
        _gru_recurrence_kernel,
        tt=TT, hp=Hp, s_total=S, pad=P, inv_scale=1.0 / (2.0 * S),
        unroll=min(TT, 8 if Hp <= 128 else 4))

    out = pl.pallas_call(
        kernel,
        out_shape=jax.ShapeDtypeStruct((Bp, Hp), f32),
        grid=(num_chunks,),
        in_specs=[
            # forward half of gi, chunk c
            pl.BlockSpec((TT, Bp, 3 * Hp), lambda c: (c, 0, 0)),
            # backward half of gi, chunk num_chunks-1-c (time reversal lives
            # here + the TT-1-i in-kernel index)
            pl.BlockSpec((TT, Bp, 3 * Hp),
                         lambda c: (num_chunks - 1 - c, 0, 1)),
            pl.BlockSpec(memory_space=pltpu.MemorySpace.VMEM),   # whh resident
            pl.BlockSpec(memory_space=pltpu.MemorySpace.VMEM),   # bhn resident
        ],
        out_specs=pl.BlockSpec((Bp, Hp), lambda c: (0, 0)),
        scratch_shapes=[pltpu.VMEM((Bp, Hp), f32),   # h_f
                        pltpu.VMEM((Bp, Hp), f32),   # h_b
                        pltpu.VMEM((Bp, Hp), f32)],  # running sum h_f + h_b
        compiler_params=pltpu.CompilerParams(
            dimension_semantics=("arbitrary",),
            vmem_limit_bytes=vmem_limit),
    )(gi, gi, whh, bhn)

    return out[:B, :H]


encoder_forward_jit = jax.jit(encoder_forward)


# ---------------------------------------------------------------------------
# Pure-JAX reference (mirrors torch.nn.GRU semantics) for a correctness check.
# ---------------------------------------------------------------------------
def _gru_ref(x, wih, whh, bih, bhh):
    H = whh.shape[0]

    def step(h, x_t):
        gi = x_t @ wih + bih
        gh = h @ whh + bhh
        r = jax.nn.sigmoid(gi[:, :H] + gh[:, :H])
        z = jax.nn.sigmoid(gi[:, H:2 * H] + gh[:, H:2 * H])
        n = jnp.tanh(gi[:, 2 * H:] + r * gh[:, 2 * H:])
        h_new = (1.0 - z) * n + z * h
        return h_new, h_new

    h0 = jnp.zeros((x.shape[1], H), jnp.float32)
    _, hs = lax.scan(step, h0, x)
    return hs  # (S, B, H)


def encoder_reference(embeds, params):
    x = jnp.transpose(embeds, (1, 0, 2)).astype(jnp.float32)  # (S, B, E)
    h_f = _gru_ref(x, params["wih_f"], params["whh_f"],
                   params["bih_f"], params["bhh_f"])
    h_b = jnp.flip(_gru_ref(jnp.flip(x, 0), params["wih_b"], params["whh_b"],
                            params["bih_b"], params["bhh_b"]), 0)
    h = (h_f + h_b) / 2.0                       # (S, B, H)
    h = jnp.transpose(h, (1, 0, 2))             # (B, S, H)
    return jnp.mean(h, axis=1)                  # (B, H)


def init_params(key, embedding_dim, hidden_dim):
    """nn.GRU-shaped (transposed) params, uniform(-1/sqrt(H), 1/sqrt(H))."""
    bound = 1.0 / np.sqrt(hidden_dim)
    names_shapes = [
        ("wih_f", (embedding_dim, 3 * hidden_dim)),
        ("whh_f", (hidden_dim, 3 * hidden_dim)),
        ("bih_f", (1, 3 * hidden_dim)),
        ("bhh_f", (1, 3 * hidden_dim)),
        ("wih_b", (embedding_dim, 3 * hidden_dim)),
        ("whh_b", (hidden_dim, 3 * hidden_dim)),
        ("bih_b", (1, 3 * hidden_dim)),
        ("bhh_b", (1, 3 * hidden_dim)),
    ]
    keys = jax.random.split(key, len(names_shapes))
    return {
        name: jax.random.uniform(k, shape, jnp.float32, -bound, bound)
        for k, (name, shape) in zip(keys, names_shapes)
    }


if __name__ == "__main__":
    # Small shapes: batch=2, seq=8, embedding_dim=16, hidden_dim=32
    B, S, E, H = 2, 8, 16, 32
    key = jax.random.PRNGKey(0)
    k_emb, k_par = jax.random.split(key)

    embeds = jax.random.normal(k_emb, (B, S, E), jnp.float32)
    mask = jnp.ones((B, S), jnp.float32)   # unused by forward(), kept for parity
    params = init_params(k_par, E, H)

    out = encoder_forward_jit(embeds, mask, params)
    out = jax.block_until_ready(out)

    ref = encoder_reference(embeds, params)
    np.testing.assert_allclose(np.asarray(out), np.asarray(ref),
                               rtol=1e-4, atol=1e-5)
    print("KERNEL_OK")
</pallas_src>

<mosaic_0001>
module attributes {stable_mosaic.version = 11 : i64} {
  func.func @_input_proj_kernel(%arg0: i32, %arg1: memref<64x16xf32, #tpu.memory_space<vmem>>, %arg2: memref<16x768xf32, #tpu.memory_space<vmem>>, %arg3: memref<1x768xf32, #tpu.memory_space<vmem>>, %arg4: memref<64x768xf32, #tpu.memory_space<vmem>>) attributes {dimension_semantics = [#tpu.dimension_semantics<parallel>], iteration_bounds = array<i64: 1>, scalar_prefetch = 0 : i64, scratch_operands = 0 : i64, tpu.core_type = #tpu.core_type<tc>, window_params = [{transform_indices = @transform_0, window_bounds = array<i64: 64, 16>}, {pipeline_mode = #tpu.pipeline_mode<synchronous>, transform_indices = @transform_1, window_bounds = array<i64: 16, 768>}, {pipeline_mode = #tpu.pipeline_mode<synchronous>, transform_indices = @transform_2, window_bounds = array<i64: 1, 768>}, {transform_indices = @transform_3, window_bounds = array<i64: 64, 768>}]} {
    %c0 = arith.constant 0 : index
    %c0_0 = arith.constant 0 : index
    %0 = vector.load %arg1[%c0, %c0_0] : memref<64x16xf32, #tpu.memory_space<vmem>>, vector<64x16xf32>
    %c0_1 = arith.constant 0 : index
    %c0_2 = arith.constant 0 : index
    %1 = vector.load %arg2[%c0_1, %c0_2] : memref<16x768xf32, #tpu.memory_space<vmem>>, vector<16x768xf32>
    %cst = arith.constant dense<0.000000e+00> : vector<64x768xf32>
    %2 = tpu.matmul %0, %1, %cst {dimension_numbers = #tpu.dot_dimension_numbers<[1], [0], [0], [1], [0, 0, 1, 1], [], []>} : vector<64x16xf32>, vector<16x768xf32>, vector<64x768xf32> -> vector<64x768xf32>
    %c0_3 = arith.constant 0 : index
    %c0_4 = arith.constant 0 : index
    %3 = vector.load %arg3[%c0_3, %c0_4] : memref<1x768xf32, #tpu.memory_space<vmem>>, vector<1x768xf32>
    %4 = vector.broadcast %3 : vector<1x768xf32> to vector<64x768xf32>
    %5 = arith.addf %2, %4 : vector<64x768xf32>
    %c0_5 = arith.constant 0 : index
    %c0_6 = arith.constant 0 : index
    %6 = vector.load %arg4[%c0_5, %c0_6] : memref<64x768xf32, #tpu.memory_space<vmem>>, vector<64x768xf32>
    tpu.vector_store %arg4[%c0_5, %c0_6], %5 {strides = array<i32>} : memref<64x768xf32, #tpu.memory_space<vmem>>, vector<64x768xf32>,
    return
  }
  func.func @transform_0(%arg0: i32) -> (i32, i32) {
    %c0_i32 = arith.constant 0 : i32
    %c0_i32_0 = arith.constant 0 : i32
    return %arg0, %c0_i32 : i32, i32
  }
  func.func @transform_1(%arg0: i32) -> (i32, i32) {
    %c0_i32 = arith.constant 0 : i32
    %c0_i32_0 = arith.constant 0 : i32
    %c0_i32_1 = arith.constant 0 : i32
    return %c0_i32, %c0_i32_0 : i32, i32
  }
  func.func @transform_2(%arg0: i32) -> (i32, i32) {
    %c0_i32 = arith.constant 0 : i32
    %c0_i32_0 = arith.constant 0 : i32
    %c0_i32_1 = arith.constant 0 : i32
    return %c0_i32, %c0_i32_0 : i32, i32
  }
  func.func @transform_3(%arg0: i32) -> (i32, i32) {
    %c0_i32 = arith.constant 0 : i32
    %c0_i32_0 = arith.constant 0 : i32
    return %arg0, %c0_i32 : i32, i32
  }
}

module attributes {stable_mosaic.version = 11 : i64} {
  func.func @_gru_recurrence_kernel(%arg0: i32, %arg1: memref<8x8x384xf32, #tpu.memory_space<vmem>>, %arg2: memref<8x8x384xf32, #tpu.memory_space<vmem>>, %arg3: memref<2x128x384xf32, #tpu.memory_space<vmem>>, %arg4: memref<2x1x128xf32, #tpu.memory_space<vmem>>, %arg5: memref<8x128xf32, #tpu.memory_space<vmem>>, %arg6: memref<8x128xf32, #tpu.memory_space<vmem>>, %arg7: memref<8x128xf32, #tpu.memory_space<vmem>>, %arg8: memref<8x128xf32, #tpu.memory_space<vmem>>) attributes {dimension_semantics = [#tpu.dimension_semantics<arbitrary>], iteration_bounds = array<i64: 1>, scalar_prefetch = 0 : i64, scratch_operands = 3 : i64, tpu.core_type = #tpu.core_type<tc>, window_params = [{transform_indices = @transform_0, window_bounds = array<i64: 8, 8, 384>}, {transform_indices = @transform_1, window_bounds = array<i64: 8, 8, 384>}, {pipeline_mode = #tpu.pipeline_mode<synchronous>, transform_indices = @transform_2, window_bounds = array<i64: 2, 128, 384>}, {pipeline_mode = #tpu.pipeline_mode<synchronous>, transform_indices = @transform_3, window_bounds = array<i64: 2, 1, 128>}, {pipeline_mode = #tpu.pipeline_mode<synchronous>, transform_indices = @transform_4, window_bounds = array<i64: 8, 128>}]} {
    %c0_i32 = arith.constant 0 : i32
    %0 = arith.cmpi eq, %arg0, %c0_i32 : i32
    %1 = arith.extui %0 : i1 to i32
    %c0_i32_0 = arith.constant 0 : i32
    %2 = arith.cmpi ne, %1, %c0_i32_0 : i32
    scf.if %2 {
      %cst_197 = arith.constant 0.000000e+00 : f32
      %502 = vector.broadcast %cst_197 : f32 to vector<8x128xf32>
      %c0_198 = arith.constant 0 : index
      %c0_199 = arith.constant 0 : index
      %503 = vector.load %arg6[%c0_198, %c0_199] : memref<8x128xf32, #tpu.memory_space<vmem>>, vector<8x128xf32>
      tpu.vector_store %arg6[%c0_198, %c0_199], %502 {strides = array<i32>} : memref<8x128xf32, #tpu.memory_space<vmem>>, vector<8x128xf32>,
      %cst_200 = arith.constant 0.000000e+00 : f32
      %504 = vector.broadcast %cst_200 : f32 to vector<8x128xf32>
      %c0_201 = arith.constant 0 : index
      %c0_202 = arith.constant 0 : index
      %505 = vector.load %arg7[%c0_201, %c0_202] : memref<8x128xf32, #tpu.memory_space<vmem>>, vector<8x128xf32>
      tpu.vector_store %arg7[%c0_201, %c0_202], %504 {strides = array<i32>} : memref<8x128xf32, #tpu.memory_space<vmem>>, vector<8x128xf32>,
      %cst_203 = arith.constant 0.000000e+00 : f32
      %506 = vector.broadcast %cst_203 : f32 to vector<8x128xf32>
      %c0_204 = arith.constant 0 : index
      %c0_205 = arith.constant 0 : index
      %507 = vector.load %arg8[%c0_204, %c0_205] : memref<8x128xf32, #tpu.memory_space<vmem>>, vector<8x128xf32>
      tpu.vector_store %arg8[%c0_204, %c0_205], %506 {strides = array<i32>} : memref<8x128xf32, #tpu.memory_space<vmem>>, vector<8x128xf32>,
    } else {
    }
    %c0 = arith.constant 0 : index
    %c0_1 = arith.constant 0 : index
    %c0_2 = arith.constant 0 : index
    %3 = vector.load %arg3[%c0, %c0_1, %c0_2] : memref<2x128x384xf32, #tpu.memory_space<vmem>>, vector<1x128x384xf32>
    %4 = vector.shape_cast %3 : vector<1x128x384xf32> to vector<128x384xf32>
    %c1 = arith.constant 1 : index
    %c0_3 = arith.constant 0 : index
    %c0_4 = arith.constant 0 : index
    %5 = vector.load %arg3[%c1, %c0_3, %c0_4] : memref<2x128x384xf32, #tpu.memory_space<vmem>>, vector<1x128x384xf32>
    %6 = vector.shape_cast %5 : vector<1x128x384xf32> to vector<128x384xf32>
    %c0_5 = arith.constant 0 : index
    %c0_6 = arith.constant 0 : index
    %c0_7 = arith.constant 0 : index
    %7 = vector.load %arg4[%c0_5, %c0_6, %c0_7] : memref<2x1x128xf32, #tpu.memory_space<vmem>>, vector<1x1x128xf32>
    %8 = vector.shape_cast %7 : vector<1x1x128xf32> to vector<1x128xf32>
    %c1_8 = arith.constant 1 : index
    %c0_9 = arith.constant 0 : index
    %c0_10 = arith.constant 0 : index
    %9 = vector.load %arg4[%c1_8, %c0_9, %c0_10] : memref<2x1x128xf32, #tpu.memory_space<vmem>>, vector<1x1x128xf32>
    %10 = vector.shape_cast %9 : vector<1x1x128xf32> to vector<1x128xf32>
    %c0_i32_11 = arith.constant 0 : i32
    %c0_12 = arith.constant 0 : index
    %c0_13 = arith.constant 0 : index
    %11 = vector.load %arg6[%c0_12, %c0_13] : memref<8x128xf32, #tpu.memory_space<vmem>>, vector<8x128xf32>
    %c0_14 = arith.constant 0 : index
    %c0_15 = arith.constant 0 : index
    %12 = vector.load %arg7[%c0_14, %c0_15] : memref<8x128xf32, #tpu.memory_space<vmem>>, vector<8x128xf32>
    %13 = arith.index_cast %c0_i32_11 : i32 to index
    %c0_16 = arith.constant 0 : index
    %c0_17 = arith.constant 0 : index
    %14 = vector.load %arg1[%13, %c0_16, %c0_17] : memref<8x8x384xf32, #tpu.memory_space<vmem>>, vector<1x8x384xf32>
    %15 = vector.shape_cast %14 : vector<1x8x384xf32> to vector<8x384xf32>
    %cst = arith.constant dense<0.000000e+00> : vector<8x384xf32>
    %16 = tpu.matmul %11, %4, %cst {dimension_numbers = #tpu.dot_dimension_numbers<[1], [0], [0], [1], [0, 0, 1, 1], [], []>} : vector<8x128xf32>, vector<128x384xf32>, vector<8x384xf32> -> vector<8x384xf32>
    %17 = vector.extract_strided_slice %15 {offsets = [0, 0], sizes = [8, 256], strides = [1, 1]} : vector<8x384xf32> to vector<8x256xf32>
    %18 = vector.extract_strided_slice %16 {offsets = [0, 0], sizes = [8, 256], strides = [1, 1]} : vector<8x384xf32> to vector<8x256xf32>
    %19 = arith.addf %17, %18 : vector<8x256xf32>
    %20 = arith.negf %19 : vector<8x256xf32>
    %21 = math.exp %20 : vector<8x256xf32>
    %cst_18 = arith.constant 1.000000e+00 : f32
    %22 = vector.broadcast %cst_18 : f32 to vector<8x256xf32>
    %23 = arith.addf %22, %21 : vector<8x256xf32>
    %24 = arith.divf %22, %23 : vector<8x256xf32>
    %25 = vector.extract_strided_slice %24 {offsets = [0, 0], sizes = [8, 128], strides = [1, 1]} : vector<8x256xf32> to vector<8x128xf32>
    %26 = vector.extract_strided_slice %24 {offsets = [0, 128], sizes = [8, 128], strides = [1, 1]} : vector<8x256xf32> to vector<8x128xf32>
    %27 = vector.extract_strided_slice %15 {offsets = [0, 256], sizes = [8, 128], strides = [1, 1]} : vector<8x384xf32> to vector<8x128xf32>
    %28 = vector.extract_strided_slice %16 {offsets = [0, 256], sizes = [8, 128], strides = [1, 1]} : vector<8x384xf32> to vector<8x128xf32>
    %29 = vector.broadcast %8 : vector<1x128xf32> to vector<8x128xf32>
    %30 = arith.addf %28, %29 : vector<8x128xf32>
    %31 = arith.mulf %25, %30 : vector<8x128xf32>
    %32 = arith.addf %27, %31 : vector<8x128xf32>
    %33 = math.tanh %32 : vector<8x128xf32>
    %cst_19 = arith.constant 1.000000e+00 : f32
    %34 = vector.broadcast %cst_19 : f32 to vector<8x128xf32>
    %35 = arith.subf %34, %26 : vector<8x128xf32>
    %36 = arith.mulf %35, %33 : vector<8x128xf32>
    %37 = arith.mulf %26, %11 : vector<8x128xf32>
    %38 = arith.addf %36, %37 : vector<8x128xf32>
    %c7_i32 = arith.constant 7 : i32
    %39 = arith.subi %c7_i32, %c0_i32_11 : i32
    %40 = arith.index_cast %39 : i32 to index
    %c0_20 = arith.constant 0 : index
    %c0_21 = arith.constant 0 : index
    %41 = vector.load %arg2[%40, %c0_20, %c0_21] : memref<8x8x384xf32, #tpu.memory_space<vmem>>, vector<1x8x384xf32>
    %42 = vector.shape_cast %41 : vector<1x8x384xf32> to vector<8x384xf32>
    %cst_22 = arith.constant dense<0.000000e+00> : vector<8x384xf32>
    %43 = tpu.matmul %12, %6, %cst_22 {dimension_numbers = #tpu.dot_dimension_numbers<[1], [0], [0], [1], [0, 0, 1, 1], [], []>} : vector<8x128xf32>, vector<128x384xf32>, vector<8x384xf32> -> vector<8x384xf32>
    %44 = vector.extract_strided_slice %42 {offsets = [0, 0], sizes = [8, 256], strides = [1, 1]} : vector<8x384xf32> to vector<8x256xf32>
    %45 = vector.extract_strided_slice %43 {offsets = [0, 0], sizes = [8, 256], strides = [1, 1]} : vector<8x384xf32> to vector<8x256xf32>
    %46 = arith.addf %44, %45 : vector<8x256xf32>
    %47 = arith.negf %46 : vector<8x256xf32>
    %48 = math.exp %47 : vector<8x256xf32>
    %cst_23 = arith.constant 1.000000e+00 : f32
    %49 = vector.broadcast %cst_23 : f32 to vector<8x256xf32>
    %50 = arith.addf %49, %48 : vector<8x256xf32>
    %51 = arith.divf %49, %50 : vector<8x256xf32>
    %52 = vector.extract_strided_slice %51 {offsets = [0, 0], sizes = [8, 128], strides = [1, 1]} : vector<8x256xf32> to vector<8x128xf32>
    %53 = vector.extract_strided_slice %51 {offsets = [0, 128], sizes = [8, 128], strides = [1, 1]} : vector<8x256xf32> to vector<8x128xf32>
    %54 = vector.extract_strided_slice %42 {offsets = [0, 256], sizes = [8, 128], strides = [1, 1]} : vector<8x384xf32> to vector<8x128xf32>
    %55 = vector.extract_strided_slice %43 {offsets = [0, 256], sizes = [8, 128], strides = [1, 1]} : vector<8x384xf32> to vector<8x128xf32>
    %56 = vector.broadcast %10 : vector<1x128xf32> to vector<8x128xf32>
    %57 = arith.addf %55, %56 : vector<8x128xf32>
    %58 = arith.mulf %52, %57 : vector<8x128xf32>
    %59 = arith.addf %54, %58 : vector<8x128xf32>
    %60 = math.tanh %59 : vector<8x128xf32>
    %cst_24 = arith.constant 1.000000e+00 : f32
    %61 = vector.broadcast %cst_24 : f32 to vector<8x128xf32>
    %62 = arith.subf %61, %53 : vector<8x128xf32>
    %63 = arith.mulf %62, %60 : vector<8x128xf32>
    %64 = arith.mulf %53, %12 : vector<8x128xf32>
    %65 = arith.addf %63, %64 : vector<8x128xf32>
    %c0_25 = arith.constant 0 : index
    %c0_26 = arith.constant 0 : index
    %66 = vector.load %arg8[%c0_25, %c0_26] : memref<8x128xf32, #tpu.memory_space<vmem>>, vector<8x128xf32>
    %67 = arith.addf %66, %38 : vector<8x128xf32>
    %68 = arith.addf %67, %65 : vector<8x128xf32>
    %c0_27 = arith.constant 0 : index
    %c0_28 = arith.constant 0 : index
    %69 = vector.load %arg8[%c0_27, %c0_28] : memref<8x128xf32, #tpu.memory_space<vmem>>, vector<8x128xf32>
    tpu.vector_store %arg8[%c0_27, %c0_28], %68 {strides = array<i32>} : memref<8x128xf32, #tpu.memory_space<vmem>>, vector<8x128xf32>,
    %c0_29 = arith.constant 0 : index
    %c0_30 = arith.constant 0 : index
    %70 = vector.load %arg6[%c0_29, %c0_30] : memref<8x128xf32, #tpu.memory_space<vmem>>, vector<8x128xf32>
    tpu.vector_store %arg6[%c0_29, %c0_30], %38 {strides = array<i32>} : memref<8x128xf32, #tpu.memory_space<vmem>>, vector<8x128xf32>,
    %c0_31 = arith.constant 0 : index
    %c0_32 = arith.constant 0 : index
    %71 = vector.load %arg7[%c0_31, %c0_32] : memref<8x128xf32, #tpu.memory_space<vmem>>, vector<8x128xf32>
    tpu.vector_store %arg7[%c0_31, %c0_32], %65 {strides = array<i32>} : memref<8x128xf32, #tpu.memory_space<vmem>>, vector<8x128xf32>,
    %c1_i32 = arith.constant 1 : i32
    %c0_33 = arith.constant 0 : index
    %c0_34 = arith.constant 0 : index
    %72 = vector.load %arg6[%c0_33, %c0_34] : memref<8x128xf32, #tpu.memory_space<vmem>>, vector<8x128xf32>
    %c0_35 = arith.constant 0 : index
    %c0_36 = arith.constant 0 : index
    %73 = vector.load %arg7[%c0_35, %c0_36] : memref<8x128xf32, #tpu.memory_space<vmem>>, vector<8x128xf32>
    %74 = arith.index_cast %c1_i32 : i32 to index
    %c0_37 = arith.constant 0 : index
    %c0_38 = arith.constant 0 : index
    %75 = vector.load %arg1[%74, %c0_37, %c0_38] : memref<8x8x384xf32, #tpu.memory_space<vmem>>, vector<1x8x384xf32>
    %76 = vector.shape_cast %75 : vector<1x8x384xf32> to vector<8x384xf32>
    %cst_39 = arith.constant dense<0.000000e+00> : vector<8x384xf32>
    %77 = tpu.matmul %72, %4, %cst_39 {dimension_numbers = #tpu.dot_dimension_numbers<[1], [0], [0], [1], [0, 0, 1, 1], [], []>} : vector<8x128xf32>, vector<128x384xf32>, vector<8x384xf32> -> vector<8x384xf32>
    %78 = vector.extract_strided_slice %76 {offsets = [0, 0], sizes = [8, 256], strides = [1, 1]} : vector<8x384xf32> to vector<8x256xf32>
    %79 = vector.extract_strided_slice %77 {offsets = [0, 0], sizes = [8, 256], strides = [1, 1]} : vector<8x384xf32> to vector<8x256xf32>
    %80 = arith.addf %78, %79 : vector<8x256xf32>
    %81 = arith.negf %80 : vector<8x256xf32>
    %82 = math.exp %81 : vector<8x256xf32>
    %cst_40 = arith.constant 1.000000e+00 : f32
    %83 = vector.broadcast %cst_40 : f32 to vector<8x256xf32>
    %84 = arith.addf %83, %82 : vector<8x256xf32>
    %85 = arith.divf %83, %84 : vector<8x256xf32>
    %86 = vector.extract_strided_slice %85 {offsets = [0, 0], sizes = [8, 128], strides = [1, 1]} : vector<8x256xf32> to vector<8x128xf32>
    %87 = vector.extract_strided_slice %85 {offsets = [0, 128], sizes = [8, 128], strides = [1, 1]} : vector<8x256xf32> to vector<8x128xf32>
    %88 = vector.extract_strided_slice %76 {offsets = [0, 256], sizes = [8, 128], strides = [1, 1]} : vector<8x384xf32> to vector<8x128xf32>
    %89 = vector.extract_strided_slice %77 {offsets = [0, 256], sizes = [8, 128], strides = [1, 1]} : vector<8x384xf32> to vector<8x128xf32>
    %90 = vector.broadcast %8 : vector<1x128xf32> to vector<8x128xf32>
    %91 = arith.addf %89, %90 : vector<8x128xf32>
    %92 = arith.mulf %86, %91 : vector<8x128xf32>
    %93 = arith.addf %88, %92 : vector<8x128xf32>
    %94 = math.tanh %93 : vector<8x128xf32>
    %cst_41 = arith.constant 1.000000e+00 : f32
    %95 = vector.broadcast %cst_41 : f32 to vector<8x128xf32>
    %96 = arith.subf %95, %87 : vector<8x128xf32>
    %97 = arith.mulf %96, %94 : vector<8x128xf32>
    %98 = arith.mulf %87, %72 : vector<8x128xf32>
    %99 = arith.addf %97, %98 : vector<8x128xf32>
    %c7_i32_42 = arith.constant 7 : i32
    %100 = arith.subi %c7_i32_42, %c1_i32 : i32
    %101 = arith.index_cast %100 : i32 to index
    %c0_43 = arith.constant 0 : index
    %c0_44 = arith.constant 0 : index
    %102 = vector.load %arg2[%101, %c0_43, %c0_44] : memref<8x8x384xf32, #tpu.memory_space<vmem>>, vector<1x8x384xf32>
    %103 = vector.shape_cast %102 : vector<1x8x384xf32> to vector<8x384xf32>
    %cst_45 = arith.constant dense<0.000000e+00> : vector<8x384xf32>
    %104 = tpu.matmul %73, %6, %cst_45 {dimension_numbers = #tpu.dot_dimension_numbers<[1], [0], [0], [1], [0, 0, 1, 1], [], []>} : vector<8x128xf32>, vector<128x384xf32>, vector<8x384xf32> -> vector<8x384xf32>
    %105 = vector.extract_strided_slice %103 {offsets = [0, 0], sizes = [8, 256], strides = [1, 1]} : vector<8x384xf32> to vector<8x256xf32>
    %106 = vector.extract_strided_slice %104 {offsets = [0, 0], sizes = [8, 256], strides = [1, 1]} : vector<8x384xf32> to vector<8x256xf32>
    %107 = arith.addf %105, %106 : vector<8x256xf32>
    %108 = arith.negf %107 : vector<8x256xf32>
    %109 = math.exp %108 : vector<8x256xf32>
    %cst_46 = arith.constant 1.000000e+00 : f32
    %110 = vector.broadcast %cst_46 : f32 to vector<8x256xf32>
    %111 = arith.addf %110, %109 : vector<8x256xf32>
    %112 = arith.divf %110, %111 : vector<8x256xf32>
    %113 = vector.extract_strided_slice %112 {offsets = [0, 0], sizes = [8, 128], strides = [1, 1]} : vector<8x256xf32> to vector<8x128xf32>
    %114 = vector.extract_strided_slice %112 {offsets = [0, 128], sizes = [8, 128], strides = [1, 1]} : vector<8x256xf32> to vector<8x128xf32>
    %115 = vector.extract_strided_slice %103 {offsets = [0, 256], sizes = [8, 128], strides = [1, 1]} : vector<8x384xf32> to vector<8x128xf32>
    %116 = vector.extract_strided_slice %104 {offsets = [0, 256], sizes = [8, 128], strides = [1, 1]} : vector<8x384xf32> to vector<8x128xf32>
    %117 = vector.broadcast %10 : vector<1x128xf32> to vector<8x128xf32>
    %118 = arith.addf %116, %117 : vector<8x128xf32>
    %119 = arith.mulf %113, %118 : vector<8x128xf32>
    %120 = arith.addf %115, %119 : vector<8x128xf32>
    %121 = math.tanh %120 : vector<8x128xf32>
    %cst_47 = arith.constant 1.000000e+00 : f32
    %122 = vector.broadcast %cst_47 : f32 to vector<8x128xf32>
    %123 = arith.subf %122, %114 : vector<8x128xf32>
    %124 = arith.mulf %123, %121 : vector<8x128xf32>
    %125 = arith.mulf %114, %73 : vector<8x128xf32>
    %126 = arith.addf %124, %125 : vector<8x128xf32>
    %c0_48 = arith.constant 0 : index
    %c0_49 = arith.constant 0 : index
    %127 = vector.load %arg8[%c0_48, %c0_49] : memref<8x128xf32, #tpu.memory_space<vmem>>, vector<8x128xf32>
    %128 = arith.addf %127, %99 : vector<8x128xf32>
    %129 = arith.addf %128, %126 : vector<8x128xf32>
    %c0_50 = arith.constant 0 : index
    %c0_51 = arith.constant 0 : index
    %130 = vector.load %arg8[%c0_50, %c0_51] : memref<8x128xf32, #tpu.memory_space<vmem>>, vector<8x128xf32>
    tpu.vector_store %arg8[%c0_50, %c0_51], %129 {strides = array<i32>} : memref<8x128xf32, #tpu.memory_space<vmem>>, vector<8x128xf32>,
    %c0_52 = arith.constant 0 : index
    %c0_53 = arith.constant 0 : index
    %131 = vector.load %arg6[%c0_52, %c0_53] : memref<8x128xf32, #tpu.memory_space<vmem>>, vector<8x128xf32>
    tpu.vector_store %arg6[%c0_52, %c0_53], %99 {strides = array<i32>} : memref<8x128xf32, #tpu.memory_space<vmem>>, vector<8x128xf32>,
    %c0_54 = arith.constant 0 : index
    %c0_55 = arith.constant 0 : index
    %132 = vector.load %arg7[%c0_54, %c0_55] : memref<8x128xf32, #tpu.memory_space<vmem>>, vector<8x128xf32>
    tpu.vector_store %arg7[%c0_54, %c0_55], %126 {strides = array<i32>} : memref<8x128xf32, #tpu.memory_space<vmem>>, vector<8x128xf32>,
    %c2_i32 = arith.constant 2 : i32
    %c0_56 = arith.constant 0 : index
    %c0_57 = arith.constant 0 : index
    %133 = vector.load %arg6[%c0_56, %c0_57] : memref<8x128xf32, #tpu.memory_space<vmem>>, vector<8x128xf32>
    %c0_58 = arith.constant 0 : index
    %c0_59 = arith.constant 0 : index
    %134 = vector.load %arg7[%c0_58, %c0_59] : memref<8x128xf32, #tpu.memory_space<vmem>>, vector<8x128xf32>
    %135 = arith.index_cast %c2_i32 : i32 to index
    %c0_60 = arith.constant 0 : index
    %c0_61 = arith.constant 0 : index
    %136 = vector.load %arg1[%135, %c0_60, %c0_61] : memref<8x8x384xf32, #tpu.memory_space<vmem>>, vector<1x8x384xf32>
    %137 = vector.shape_cast %136 : vector<1x8x384xf32> to vector<8x384xf32>
    %cst_62 = arith.constant dense<0.000000e+00> : vector<8x384xf32>
    %138 = tpu.matmul %133, %4, %cst_62 {dimension_numbers = #tpu.dot_dimension_numbers<[1], [0], [0], [1], [0, 0, 1, 1], [], []>} : vector<8x128xf32>, vector<128x384xf32>, vector<8x384xf32> -> vector<8x384xf32>
    %139 = vector.extract_strided_slice %137 {offsets = [0, 0], sizes = [8, 256], strides = [1, 1]} : vector<8x384xf32> to vector<8x256xf32>
    %140 = vector.extract_strided_slice %138 {offsets = [0, 0], sizes = [8, 256], strides = [1, 1]} : vector<8x384xf32> to vector<8x256xf32>
    %141 = arith.addf %139, %140 : vector<8x256xf32>
    %142 = arith.negf %141 : vector<8x256xf32>
    %143 = math.exp %142 : vector<8x256xf32>
    %cst_63 = arith.constant 1.000000e+00 : f32
    %144 = vector.broadcast %cst_63 : f32 to vector<8x256xf32>
    %145 = arith.addf %144, %143 : vector<8x256xf32>
    %146 = arith.divf %144, %145 : vector<8x256xf32>
    %147 = vector.extract_strided_slice %146 {offsets = [0, 0], sizes = [8, 128], strides = [1, 1]} : vector<8x256xf32> to vector<8x128xf32>
    %148 = vector.extract_strided_slice %146 {offsets = [0, 128], sizes = [8, 128], strides = [1, 1]} : vector<8x256xf32> to vector<8x128xf32>
    %149 = vector.extract_strided_slice %137 {offsets = [0, 256], sizes = [8, 128], strides = [1, 1]} : vector<8x384xf32> to vector<8x128xf32>
    %150 = vector.extract_strided_slice %138 {offsets = [0, 256], sizes = [8, 128], strides = [1, 1]} : vector<8x384xf32> to vector<8x128xf32>
    %151 = vector.broadcast %8 : vector<1x128xf32> to vector<8x128xf32>
    %152 = arith.addf %150, %151 : vector<8x128xf32>
    %153 = arith.mulf %147, %152 : vector<8x128xf32>
    %154 = arith.addf %149, %153 : vector<8x128xf32>
    %155 = math.tanh %154 : vector<8x128xf32>
    %cst_64 = arith.constant 1.000000e+00 : f32
    %156 = vector.broadcast %cst_64 : f32 to vector<8x128xf32>
    %157 = arith.subf %156, %148 : vector<8x128xf32>
    %158 = arith.mulf %157, %155 : vector<8x128xf32>
    %159 = arith.mulf %148, %133 : vector<8x128xf32>
    %160 = arith.addf %158, %159 : vector<8x128xf32>
    %c7_i32_65 = arith.constant 7 : i32
    %161 = arith.subi %c7_i32_65, %c2_i32 : i32
    %162 = arith.index_cast %161 : i32 to index
    %c0_66 = arith.constant 0 : index
    %c0_67 = arith.constant 0 : index
    %163 = vector.load %arg2[%162, %c0_66, %c0_67] : memref<8x8x384xf32, #tpu.memory_space<vmem>>, vector<1x8x384xf32>
    %164 = vector.shape_cast %163 : vector<1x8x384xf32> to vector<8x384xf32>
    %cst_68 = arith.constant dense<0.000000e+00> : vector<8x384xf32>
    %165 = tpu.matmul %134, %6, %cst_68 {dimension_numbers = #tpu.dot_dimension_numbers<[1], [0], [0], [1], [0, 0, 1, 1], [], []>} : vector<8x128xf32>, vector<128x384xf32>, vector<8x384xf32> -> vector<8x384xf32>
    %166 = vector.extract_strided_slice %164 {offsets = [0, 0], sizes = [8, 256], strides = [1, 1]} : vector<8x384xf32> to vector<8x256xf32>
    %167 = vector.extract_strided_slice %165 {offsets = [0, 0], sizes = [8, 256], strides = [1, 1]} : vector<8x384xf32> to vector<8x256xf32>
    %168 = arith.addf %166, %167 : vector<8x256xf32>
    %169 = arith.negf %168 : vector<8x256xf32>
    %170 = math.exp %169 : vector<8x256xf32>
    %cst_69 = arith.constant 1.000000e+00 : f32
    %171 = vector.broadcast %cst_69 : f32 to vector<8x256xf32>
    %172 = arith.addf %171, %170 : vector<8x256xf32>
    %173 = arith.divf %171, %172 : vector<8x256xf32>
    %174 = vector.extract_strided_slice %173 {offsets = [0, 0], sizes = [8, 128], strides = [1, 1]} : vector<8x256xf32> to vector<8x128xf32>
    %175 = vector.extract_strided_slice %173 {offsets = [0, 128], sizes = [8, 128], strides = [1, 1]} : vector<8x256xf32> to vector<8x128xf32>
    %176 = vector.extract_strided_slice %164 {offsets = [0, 256], sizes = [8, 128], strides = [1, 1]} : vector<8x384xf32> to vector<8x128xf32>
    %177 = vector.extract_strided_slice %165 {offsets = [0, 256], sizes = [8, 128], strides = [1, 1]} : vector<8x384xf32> to vector<8x128xf32>
    %178 = vector.broadcast %10 : vector<1x128xf32> to vector<8x128xf32>
    %179 = arith.addf %177, %178 : vector<8x128xf32>
    %180 = arith.mulf %174, %179 : vector<8x128xf32>
    %181 = arith.addf %176, %180 : vector<8x128xf32>
    %182 = math.tanh %181 : vector<8x128xf32>
    %cst_70 = arith.constant 1.000000e+00 : f32
    %183 = vector.broadcast %cst_70 : f32 to vector<8x128xf32>
    %184 = arith.subf %183, %175 : vector<8x128xf32>
    %185 = arith.mulf %184, %182 : vector<8x128xf32>
    %186 = arith.mulf %175, %134 : vector<8x128xf32>
    %187 = arith.addf %185, %186 : vector<8x128xf32>
    %c0_71 = arith.constant 0 : index
    %c0_72 = arith.constant 0 : index
    %188 = vector.load %arg8[%c0_71, %c0_72] : memref<8x128xf32, #tpu.memory_space<vmem>>, vector<8x128xf32>
    %189 = arith.addf %188, %160 : vector<8x128xf32>
    %190 = arith.addf %189, %187 : vector<8x128xf32>
    %c0_73 = arith.constant 0 : index
    %c0_74 = arith.constant 0 : index
    %191 = vector.load %arg8[%c0_73, %c0_74] : memref<8x128xf32, #tpu.memory_space<vmem>>, vector<8x128xf32>
    tpu.vector_store %arg8[%c0_73, %c0_74], %190 {strides = array<i32>} : memref<8x128xf32, #tpu.memory_space<vmem>>, vector<8x128xf32>,
    %c0_75 = arith.constant 0 : index
    %c0_76 = arith.constant 0 : index
    %192 = vector.load %arg6[%c0_75, %c0_76] : memref<8x128xf32, #tpu.memory_space<vmem>>, vector<8x128xf32>
    tpu.vector_store %arg6[%c0_75, %c0_76], %160 {strides = array<i32>} : memref<8x128xf32, #tpu.memory_space<vmem>>, vector<8x128xf32>,
    %c0_77 = arith.constant 0 : index
    %c0_78 = arith.constant 0 : index
    %193 = vector.load %arg7[%c0_77, %c0_78] : memref<8x128xf32, #tpu.memory_space<vmem>>, vector<8x128xf32>
    tpu.vector_store %arg7[%c0_77, %c0_78], %187 {strides = array<i32>} : memref<8x128xf32, #tpu.memory_space<vmem>>, vector<8x128xf32>,
    %c3_i32 = arith.constant 3 : i32
    %c0_79 = arith.constant 0 : index
    %c0_80 = arith.constant 0 : index
    %194 = vector.load %arg6[%c0_79, %c0_80] : memref<8x128xf32, #tpu.memory_space<vmem>>, vector<8x128xf32>
    %c0_81 = arith.constant 0 : index
    %c0_82 = arith.constant 0 : index
    %195 = vector.load %arg7[%c0_81, %c0_82] : memref<8x128xf32, #tpu.memory_space<vmem>>, vector<8x128xf32>
    %196 = arith.index_cast %c3_i32 : i32 to index
    %c0_83 = arith.constant 0 : index
    %c0_84 = arith.constant 0 : index
    %197 = vector.load %arg1[%196, %c0_83, %c0_84] : memref<8x8x384xf32, #tpu.memory_space<vmem>>, vector<1x8x384xf32>
    %198 = vector.shape_cast %197 : vector<1x8x384xf32> to vector<8x384xf32>
    %cst_85 = arith.constant dense<0.000000e+00> : vector<8x384xf32>
    %199 = tpu.matmul %194, %4, %cst_85 {dimension_numbers = #tpu.dot_dimension_numbers<[1], [0], [0], [1], [0, 0, 1, 1], [], []>} : vector<8x128xf32>, vector<128x384xf32>, vector<8x384xf32> -> vector<8x384xf32>
    %200 = vector.extract_strided_slice %198 {offsets = [0, 0], sizes = [8, 256], strides = [1, 1]} : vector<8x384xf32> to vector<8x256xf32>
    %201 = vector.extract_strided_slice %199 {offsets = [0, 0], sizes = [8, 256], strides = [1, 1]} : vector<8x384xf32> to vector<8x256xf32>
    %202 = arith.addf %200, %201 : vector<8x256xf32>
    %203 = arith.negf %202 : vector<8x256xf32>
    %204 = math.exp %203 : vector<8x256xf32>
    %cst_86 = arith.constant 1.000000e+00 : f32
    %205 = vector.broadcast %cst_86 : f32 to vector<8x256xf32>
    %206 = arith.addf %205, %204 : vector<8x256xf32>
    %207 = arith.divf %205, %206 : vector<8x256xf32>
    %208 = vector.extract_strided_slice %207 {offsets = [0, 0], sizes = [8, 128], strides = [1, 1]} : vector<8x256xf32> to vector<8x128xf32>
    %209 = vector.extract_strided_slice %207 {offsets = [0, 128], sizes = [8, 128], strides = [1, 1]} : vector<8x256xf32> to vector<8x128xf32>
    %210 = vector.extract_strided_slice %198 {offsets = [0, 256], sizes = [8, 128], strides = [1, 1]} : vector<8x384xf32> to vector<8x128xf32>
    %211 = vector.extract_strided_slice %199 {offsets = [0, 256], sizes = [8, 128], strides = [1, 1]} : vector<8x384xf32> to vector<8x128xf32>
    %212 = vector.broadcast %8 : vector<1x128xf32> to vector<8x128xf32>
    %213 = arith.addf %211, %212 : vector<8x128xf32>
    %214 = arith.mulf %208, %213 : vector<8x128xf32>
    %215 = arith.addf %210, %214 : vector<8x128xf32>
    %216 = math.tanh %215 : vector<8x128xf32>
    %cst_87 = arith.constant 1.000000e+00 : f32
    %217 = vector.broadcast %cst_87 : f32 to vector<8x128xf32>
    %218 = arith.subf %217, %209 : vector<8x128xf32>
    %219 = arith.mulf %218, %216 : vector<8x128xf32>
    %220 = arith.mulf %209, %194 : vector<8x128xf32>
    %221 = arith.addf %219, %220 : vector<8x128xf32>
    %c7_i32_88 = arith.constant 7 : i32
    %222 = arith.subi %c7_i32_88, %c3_i32 : i32
    %223 = arith.index_cast %222 : i32 to index
    %c0_89 = arith.constant 0 : index
    %c0_90 = arith.constant 0 : index
    %224 = vector.load %arg2[%223, %c0_89, %c0_90] : memref<8x8x384xf32, #tpu.memory_space<vmem>>, vector<1x8x384xf32>
    %225 = vector.shape_cast %224 : vector<1x8x384xf32> to vector<8x384xf32>
    %cst_91 = arith.constant dense<0.000000e+00> : vector<8x384xf32>
    %226 = tpu.matmul %195, %6, %cst_91 {dimension_numbers = #tpu.dot_dimension_numbers<[1], [0], [0], [1], [0, 0, 1, 1], [], []>} : vector<8x128xf32>, vector<128x384xf32>, vector<8x384xf32> -> vector<8x384xf32>
    %227 = vector.extract_strided_slice %225 {offsets = [0, 0], sizes = [8, 256], strides = [1, 1]} : vector<8x384xf32> to vector<8x256xf32>
    %228 = vector.extract_strided_slice %226 {offsets = [0, 0], sizes = [8, 256], strides = [1, 1]} : vector<8x384xf32> to vector<8x256xf32>
    %229 = arith.addf %227, %228 : vector<8x256xf32>
    %230 = arith.negf %229 : vector<8x256xf32>
    %231 = math.exp %230 : vector<8x256xf32>
    %cst_92 = arith.constant 1.000000e+00 : f32
    %232 = vector.broadcast %cst_92 : f32 to vector<8x256xf32>
    %233 = arith.addf %232, %231 : vector<8x256xf32>
    %234 = arith.divf %232, %233 : vector<8x256xf32>
    %235 = vector.extract_strided_slice %234 {offsets = [0, 0], sizes = [8, 128], strides = [1, 1]} : vector<8x256xf32> to vector<8x128xf32>
    %236 = vector.extract_strided_slice %234 {offsets = [0, 128], sizes = [8, 128], strides = [1, 1]} : vector<8x256xf32> to vector<8x128xf32>
    %237 = vector.extract_strided_slice %225 {offsets = [0, 256], sizes = [8, 128], strides = [1, 1]} : vector<8x384xf32> to vector<8x128xf32>
    %238 = vector.extract_strided_slice %226 {offsets = [0, 256], sizes = [8, 128], strides = [1, 1]} : vector<8x384xf32> to vector<8x128xf32>
    %239 = vector.broadcast %10 : vector<1x128xf32> to vector<8x128xf32>
    %240 = arith.addf %238, %239 : vector<8x128xf32>
    %241 = arith.mulf %235, %240 : vector<8x128xf32>
    %242 = arith.addf %237, %241 : vector<8x128xf32>
    %243 = math.tanh %242 : vector<8x128xf32>
    %cst_93 = arith.constant 1.000000e+00 : f32
    %244 = vector.broadcast %cst_93 : f32 to vector<8x128xf32>
    %245 = arith.subf %244, %236 : vector<8x128xf32>
    %246 = arith.mulf %245, %243 : vector<8x128xf32>
    %247 = arith.mulf %236, %195 : vector<8x128xf32>
    %248 = arith.addf %246, %247 : vector<8x128xf32>
    %c0_94 = arith.constant 0 : index
    %c0_95 = arith.constant 0 : index
    %249 = vector.load %arg8[%c0_94, %c0_95] : memref<8x128xf32, #tpu.memory_space<vmem>>, vector<8x128xf32>
    %250 = arith.addf %249, %221 : vector<8x128xf32>
    %251 = arith.addf %250, %248 : vector<8x128xf32>
    %c0_96 = arith.constant 0 : index
    %c0_97 = arith.constant 0 : index
    %252 = vector.load %arg8[%c0_96, %c0_97] : memref<8x128xf32, #tpu.memory_space<vmem>>, vector<8x128xf32>
    tpu.vector_store %arg8[%c0_96, %c0_97], %251 {strides = array<i32>} : memref<8x128xf32, #tpu.memory_space<vmem>>, vector<8x128xf32>,
    %c0_98 = arith.constant 0 : index
    %c0_99 = arith.constant 0 : index
    %253 = vector.load %arg6[%c0_98, %c0_99] : memref<8x128xf32, #tpu.memory_space<vmem>>, vector<8x128xf32>
    tpu.vector_store %arg6[%c0_98, %c0_99], %221 {strides = array<i32>} : memref<8x128xf32, #tpu.memory_space<vmem>>, vector<8x128xf32>,
    %c0_100 = arith.constant 0 : index
    %c0_101 = arith.constant 0 : index
    %254 = vector.load %arg7[%c0_100, %c0_101] : memref<8x128xf32, #tpu.memory_space<vmem>>, vector<8x128xf32>
    tpu.vector_store %arg7[%c0_100, %c0_101], %248 {strides = array<i32>} : memref<8x128xf32, #tpu.memory_space<vmem>>, vector<8x128xf32>,
    %c4_i32 = arith.constant 4 : i32
    %c0_102 = arith.constant 0 : index
    %c0_103 = arith.constant 0 : index
    %255 = vector.load %arg6[%c0_102, %c0_103] : memref<8x128xf32, #tpu.memory_space<vmem>>, vector<8x128xf32>
    %c0_104 = arith.constant 0 : index
    %c0_105 = arith.constant 0 : index
    %256 = vector.load %arg7[%c0_104, %c0_105] : memref<8x128xf32, #tpu.memory_space<vmem>>, vector<8x128xf32>
    %257 = arith.index_cast %c4_i32 : i32 to index
    %c0_106 = arith.constant 0 : index
    %c0_107 = arith.constant 0 : index
    %258 = vector.load %arg1[%257, %c0_106, %c0_107] : memref<8x8x384xf32, #tpu.memory_space<vmem>>, vector<1x8x384xf32>
    %259 = vector.shape_cast %258 : vector<1x8x384xf32> to vector<8x384xf32>
    %cst_108 = arith.constant dense<0.000000e+00> : vector<8x384xf32>
    %260 = tpu.matmul %255, %4, %cst_108 {dimension_numbers = #tpu.dot_dimension_numbers<[1], [0], [0], [1], [0, 0, 1, 1], [], []>} : vector<8x128xf32>, vector<128x384xf32>, vector<8x384xf32> -> vector<8x384xf32>
    %261 = vector.extract_strided_slice %259 {offsets = [0, 0], sizes = [8, 256], strides = [1, 1]} : vector<8x384xf32> to vector<8x256xf32>
    %262 = vector.extract_strided_slice %260 {offsets = [0, 0], sizes = [8, 256], strides = [1, 1]} : vector<8x384xf32> to vector<8x256xf32>
    %263 = arith.addf %261, %262 : vector<8x256xf32>
    %264 = arith.negf %263 : vector<8x256xf32>
    %265 = math.exp %264 : vector<8x256xf32>
    %cst_109 = arith.constant 1.000000e+00 : f32
    %266 = vector.broadcast %cst_109 : f32 to vector<8x256xf32>
    %267 = arith.addf %266, %265 : vector<8x256xf32>
    %268 = arith.divf %266, %267 : vector<8x256xf32>
    %269 = vector.extract_strided_slice %268 {offsets = [0, 0], sizes = [8, 128], strides = [1, 1]} : vector<8x256xf32> to vector<8x128xf32>
    %270 = vector.extract_strided_slice %268 {offsets = [0, 128], sizes = [8, 128], strides = [1, 1]} : vector<8x256xf32> to vector<8x128xf32>
    %271 = vector.extract_strided_slice %259 {offsets = [0, 256], sizes = [8, 128], strides = [1, 1]} : vector<8x384xf32> to vector<8x128xf32>
    %272 = vector.extract_strided_slice %260 {offsets = [0, 256], sizes = [8, 128], strides = [1, 1]} : vector<8x384xf32> to vector<8x128xf32>
    %273 = vector.broadcast %8 : vector<1x128xf32> to vector<8x128xf32>
    %274 = arith.addf %272, %273 : vector<8x128xf32>
    %275 = arith.mulf %269, %274 : vector<8x128xf32>
    %276 = arith.addf %271, %275 : vector<8x128xf32>
    %277 = math.tanh %276 : vector<8x128xf32>
    %cst_110 = arith.constant 1.000000e+00 : f32
    %278 = vector.broadcast %cst_110 : f32 to vector<8x128xf32>
    %279 = arith.subf %278, %270 : vector<8x128xf32>
    %280 = arith.mulf %279, %277 : vector<8x128xf32>
    %281 = arith.mulf %270, %255 : vector<8x128xf32>
    %282 = arith.addf %280, %281 : vector<8x128xf32>
    %c7_i32_111 = arith.constant 7 : i32
    %283 = arith.subi %c7_i32_111, %c4_i32 : i32
    %284 = arith.index_cast %283 : i32 to index
    %c0_112 = arith.constant 0 : index
    %c0_113 = arith.constant 0 : index
    %285 = vector.load %arg2[%284, %c0_112, %c0_113] : memref<8x8x384xf32, #tpu.memory_space<vmem>>, vector<1x8x384xf32>
    %286 = vector.shape_cast %285 : vector<1x8x384xf32> to vector<8x384xf32>
    %cst_114 = arith.constant dense<0.000000e+00> : vector<8x384xf32>
    %287 = tpu.matmul %256, %6, %cst_114 {dimension_numbers = #tpu.dot_dimension_numbers<[1], [0], [0], [1], [0, 0, 1, 1], [], []>} : vector<8x128xf32>, vector<128x384xf32>, vector<8x384xf32> -> vector<8x384xf32>
    %288 = vector.extract_strided_slice %286 {offsets = [0, 0], sizes = [8, 256], strides = [1, 1]} : vector<8x384xf32> to vector<8x256xf32>
    %289 = vector.extract_strided_slice %287 {offsets = [0, 0], sizes = [8, 256], strides = [1, 1]} : vector<8x384xf32> to vector<8x256xf32>
    %290 = arith.addf %288, %289 : vector<8x256xf32>
    %291 = arith.negf %290 : vector<8x256xf32>
    %292 = math.exp %291 : vector<8x256xf32>
    %cst_115 = arith.constant 1.000000e+00 : f32
    %293 = vector.broadcast %cst_115 : f32 to vector<8x256xf32>
    %294 = arith.addf %293, %292 : vector<8x256xf32>
    %295 = arith.divf %293, %294 : vector<8x256xf32>
    %296 = vector.extract_strided_slice %295 {offsets = [0, 0], sizes = [8, 128], strides = [1, 1]} : vector<8x256xf32> to vector<8x128xf32>
    %297 = vector.extract_strided_slice %295 {offsets = [0, 128], sizes = [8, 128], strides = [1, 1]} : vector<8x256xf32> to vector<8x128xf32>
    %298 = vector.extract_strided_slice %286 {offsets = [0, 256], sizes = [8, 128], strides = [1, 1]} : vector<8x384xf32> to vector<8x128xf32>
    %299 = vector.extract_strided_slice %287 {offsets = [0, 256], sizes = [8, 128], strides = [1, 1]} : vector<8x384xf32> to vector<8x128xf32>
    %300 = vector.broadcast %10 : vector<1x128xf32> to vector<8x128xf32>
    %301 = arith.addf %299, %300 : vector<8x128xf32>
    %302 = arith.mulf %296, %301 : vector<8x128xf32>
    %303 = arith.addf %298, %302 : vector<8x128xf32>
    %304 = math.tanh %303 : vector<8x128xf32>
    %cst_116 = arith.constant 1.000000e+00 : f32
    %305 = vector.broadcast %cst_116 : f32 to vector<8x128xf32>
    %306 = arith.subf %305, %297 : vector<8x128xf32>
    %307 = arith.mulf %306, %304 : vector<8x128xf32>
    %308 = arith.mulf %297, %256 : vector<8x128xf32>
    %309 = arith.addf %307, %308 : vector<8x128xf32>
    %c0_117 = arith.constant 0 : index
    %c0_118 = arith.constant 0 : index
    %310 = vector.load %arg8[%c0_117, %c0_118] : memref<8x128xf32, #tpu.memory_space<vmem>>, vector<8x128xf32>
    %311 = arith.addf %310, %282 : vector<8x128xf32>
    %312 = arith.addf %311, %309 : vector<8x128xf32>
    %c0_119 = arith.constant 0 : index
    %c0_120 = arith.constant 0 : index
    %313 = vector.load %arg8[%c0_119, %c0_120] : memref<8x128xf32, #tpu.memory_space<vmem>>, vector<8x128xf32>
    tpu.vector_store %arg8[%c0_119, %c0_120], %312 {strides = array<i32>} : memref<8x128xf32, #tpu.memory_space<vmem>>, vector<8x128xf32>,
    %c0_121 = arith.constant 0 : index
    %c0_122 = arith.constant 0 : index
    %314 = vector.load %arg6[%c0_121, %c0_122] : memref<8x128xf32, #tpu.memory_space<vmem>>, vector<8x128xf32>
    tpu.vector_store %arg6[%c0_121, %c0_122], %282 {strides = array<i32>} : memref<8x128xf32, #tpu.memory_space<vmem>>, vector<8x128xf32>,
    %c0_123 = arith.constant 0 : index
    %c0_124 = arith.constant 0 : index
    %315 = vector.load %arg7[%c0_123, %c0_124] : memref<8x128xf32, #tpu.memory_space<vmem>>, vector<8x128xf32>
    tpu.vector_store %arg7[%c0_123, %c0_124], %309 {strides = array<i32>} : memref<8x128xf32, #tpu.memory_space<vmem>>, vector<8x128xf32>,
    %c5_i32 = arith.constant 5 : i32
    %c0_125 = arith.constant 0 : index
    %c0_126 = arith.constant 0 : index
    %316 = vector.load %arg6[%c0_125, %c0_126] : memref<8x128xf32, #tpu.memory_space<vmem>>, vector<8x128xf32>
    %c0_127 = arith.constant 0 : index
    %c0_128 = arith.constant 0 : index
    %317 = vector.load %arg7[%c0_127, %c0_128] : memref<8x128xf32, #tpu.memory_space<vmem>>, vector<8x128xf32>
    %318 = arith.index_cast %c5_i32 : i32 to index
    %c0_129 = arith.constant 0 : index
    %c0_130 = arith.constant 0 : index
    %319 = vector.load %arg1[%318, %c0_129, %c0_130] : memref<8x8x384xf32, #tpu.memory_space<vmem>>, vector<1x8x384xf32>
    %320 = vector.shape_cast %319 : vector<1x8x384xf32> to vector<8x384xf32>
    %cst_131 = arith.constant dense<0.000000e+00> : vector<8x384xf32>
    %321 = tpu.matmul %316, %4, %cst_131 {dimension_numbers = #tpu.dot_dimension_numbers<[1], [0], [0], [1], [0, 0, 1, 1], [], []>} : vector<8x128xf32>, vector<128x384xf32>, vector<8x384xf32> -> vector<8x384xf32>
    %322 = vector.extract_strided_slice %320 {offsets = [0, 0], sizes = [8, 256], strides = [1, 1]} : vector<8x384xf32> to vector<8x256xf32>
    %323 = vector.extract_strided_slice %321 {offsets = [0, 0], sizes = [8, 256], strides = [1, 1]} : vector<8x384xf32> to vector<8x256xf32>
    %324 = arith.addf %322, %323 : vector<8x256xf32>
    %325 = arith.negf %324 : vector<8x256xf32>
    %326 = math.exp %325 : vector<8x256xf32>
    %cst_132 = arith.constant 1.000000e+00 : f32
    %327 = vector.broadcast %cst_132 : f32 to vector<8x256xf32>
    %328 = arith.addf %327, %326 : vector<8x256xf32>
    %329 = arith.divf %327, %328 : vector<8x256xf32>
    %330 = vector.extract_strided_slice %329 {offsets = [0, 0], sizes = [8, 128], strides = [1, 1]} : vector<8x256xf32> to vector<8x128xf32>
    %331 = vector.extract_strided_slice %329 {offsets = [0, 128], sizes = [8, 128], strides = [1, 1]} : vector<8x256xf32> to vector<8x128xf32>
    %332 = vector.extract_strided_slice %320 {offsets = [0, 256], sizes = [8, 128], strides = [1, 1]} : vector<8x384xf32> to vector<8x128xf32>
    %333 = vector.extract_strided_slice %321 {offsets = [0, 256], sizes = [8, 128], strides = [1, 1]} : vector<8x384xf32> to vector<8x128xf32>
    %334 = vector.broadcast %8 : vector<1x128xf32> to vector<8x128xf32>
    %335 = arith.addf %333, %334 : vector<8x128xf32>
    %336 = arith.mulf %330, %335 : vector<8x128xf32>
    %337 = arith.addf %332, %336 : vector<8x128xf32>
    %338 = math.tanh %337 : vector<8x128xf32>
    %cst_133 = arith.constant 1.000000e+00 : f32
    %339 = vector.broadcast %cst_133 : f32 to vector<8x128xf32>
    %340 = arith.subf %339, %331 : vector<8x128xf32>
    %341 = arith.mulf %340, %338 : vector<8x128xf32>
    %342 = arith.mulf %331, %316 : vector<8x128xf32>
    %343 = arith.addf %341, %342 : vector<8x128xf32>
    %c7_i32_134 = arith.constant 7 : i32
    %344 = arith.subi %c7_i32_134, %c5_i32 : i32
    %345 = arith.index_cast %344 : i32 to index
    %c0_135 = arith.constant 0 : index
    %c0_136 = arith.constant 0 : index
    %346 = vector.load %arg2[%345, %c0_135, %c0_136] : memref<8x8x384xf32, #tpu.memory_space<vmem>>, vector<1x8x384xf32>
    %347 = vector.shape_cast %346 : vector<1x8x384xf32> to vector<8x384xf32>
    %cst_137 = arith.constant dense<0.000000e+00> : vector<8x384xf32>
    %348 = tpu.matmul %317, %6, %cst_137 {dimension_numbers = #tpu.dot_dimension_numbers<[1], [0], [0], [1], [0, 0, 1, 1], [], []>} : vector<8x128xf32>, vector<128x384xf32>, vector<8x384xf32> -> vector<8x384xf32>
    %349 = vector.extract_strided_slice %347 {offsets = [0, 0], sizes = [8, 256], strides = [1, 1]} : vector<8x384xf32> to vector<8x256xf32>
    %350 = vector.extract_strided_slice %348 {offsets = [0, 0], sizes = [8, 256], strides = [1, 1]} : vector<8x384xf32> to vector<8x256xf32>
    %351 = arith.addf %349, %350 : vector<8x256xf32>
    %352 = arith.negf %351 : vector<8x256xf32>
    %353 = math.exp %352 : vector<8x256xf32>
    %cst_138 = arith.constant 1.000000e+00 : f32
    %354 = vector.broadcast %cst_138 : f32 to vector<8x256xf32>
    %355 = arith.addf %354, %353 : vector<8x256xf32>
    %356 = arith.divf %354, %355 : vector<8x256xf32>
    %357 = vector.extract_strided_slice %356 {offsets = [0, 0], sizes = [8, 128], strides = [1, 1]} : vector<8x256xf32> to vector<8x128xf32>
    %358 = vector.extract_strided_slice %356 {offsets = [0, 128], sizes = [8, 128], strides = [1, 1]} : vector<8x256xf32> to vector<8x128xf32>
    %359 = vector.extract_strided_slice %347 {offsets = [0, 256], sizes = [8, 128], strides = [1, 1]} : vector<8x384xf32> to vector<8x128xf32>
    %360 = vector.extract_strided_slice %348 {offsets = [0, 256], sizes = [8, 128], strides = [1, 1]} : vector<8x384xf32> to vector<8x128xf32>
    %361 = vector.broadcast %10 : vector<1x128xf32> to vector<8x128xf32>
    %362 = arith.addf %360, %361 : vector<8x128xf32>
    %363 = arith.mulf %357, %362 : vector<8x128xf32>
    %364 = arith.addf %359, %363 : vector<8x128xf32>
    %365 = math.tanh %364 : vector<8x128xf32>
    %cst_139 = arith.constant 1.000000e+00 : f32
    %366 = vector.broadcast %cst_139 : f32 to vector<8x128xf32>
    %367 = arith.subf %366, %358 : vector<8x128xf32>
    %368 = arith.mulf %367, %365 : vector<8x128xf32>
    %369 = arith.mulf %358, %317 : vector<8x128xf32>
    %370 = arith.addf %368, %369 : vector<8x128xf32>
    %c0_140 = arith.constant 0 : index
    %c0_141 = arith.constant 0 : index
    %371 = vector.load %arg8[%c0_140, %c0_141] : memref<8x128xf32, #tpu.memory_space<vmem>>, vector<8x128xf32>
    %372 = arith.addf %371, %343 : vector<8x128xf32>
    %373 = arith.addf %372, %370 : vector<8x128xf32>
    %c0_142 = arith.constant 0 : index
    %c0_143 = arith.constant 0 : index
    %374 = vector.load %arg8[%c0_142, %c0_143] : memref<8x128xf32, #tpu.memory_space<vmem>>, vector<8x128xf32>
    tpu.vector_store %arg8[%c0_142, %c0_143], %373 {strides = array<i32>} : memref<8x128xf32, #tpu.memory_space<vmem>>, vector<8x128xf32>,
    %c0_144 = arith.constant 0 : index
    %c0_145 = arith.constant 0 : index
    %375 = vector.load %arg6[%c0_144, %c0_145] : memref<8x128xf32, #tpu.memory_space<vmem>>, vector<8x128xf32>
    tpu.vector_store %arg6[%c0_144, %c0_145], %343 {strides = array<i32>} : memref<8x128xf32, #tpu.memory_space<vmem>>, vector<8x128xf32>,
    %c0_146 = arith.constant 0 : index
    %c0_147 = arith.constant 0 : index
    %376 = vector.load %arg7[%c0_146, %c0_147] : memref<8x128xf32, #tpu.memory_space<vmem>>, vector<8x128xf32>
    tpu.vector_store %arg7[%c0_146, %c0_147], %370 {strides = array<i32>} : memref<8x128xf32, #tpu.memory_space<vmem>>, vector<8x128xf32>,
    %c6_i32 = arith.constant 6 : i32
    %c0_148 = arith.constant 0 : index
    %c0_149 = arith.constant 0 : index
    %377 = vector.load %arg6[%c0_148, %c0_149] : memref<8x128xf32, #tpu.memory_space<vmem>>, vector<8x128xf32>
    %c0_150 = arith.constant 0 : index
    %c0_151 = arith.constant 0 : index
    %378 = vector.load %arg7[%c0_150, %c0_151] : memref<8x128xf32, #tpu.memory_space<vmem>>, vector<8x128xf32>
    %379 = arith.index_cast %c6_i32 : i32 to index
    %c0_152 = arith.constant 0 : index
    %c0_153 = arith.constant 0 : index
    %380 = vector.load %arg1[%379, %c0_152, %c0_153] : memref<8x8x384xf32, #tpu.memory_space<vmem>>, vector<1x8x384xf32>
    %381 = vector.shape_cast %380 : vector<1x8x384xf32> to vector<8x384xf32>
    %cst_154 = arith.constant dense<0.000000e+00> : vector<8x384xf32>
    %382 = tpu.matmul %377, %4, %cst_154 {dimension_numbers = #tpu.dot_dimension_numbers<[1], [0], [0], [1], [0, 0, 1, 1], [], []>} : vector<8x128xf32>, vector<128x384xf32>, vector<8x384xf32> -> vector<8x384xf32>
    %383 = vector.extract_strided_slice %381 {offsets = [0, 0], sizes = [8, 256], strides = [1, 1]} : vector<8x384xf32> to vector<8x256xf32>
    %384 = vector.extract_strided_slice %382 {offsets = [0, 0], sizes = [8, 256], strides = [1, 1]} : vector<8x384xf32> to vector<8x256xf32>
    %385 = arith.addf %383, %384 : vector<8x256xf32>
    %386 = arith.negf %385 : vector<8x256xf32>
    %387 = math.exp %386 : vector<8x256xf32>
    %cst_155 = arith.constant 1.000000e+00 : f32
    %388 = vector.broadcast %cst_155 : f32 to vector<8x256xf32>
    %389 = arith.addf %388, %387 : vector<8x256xf32>
    %390 = arith.divf %388, %389 : vector<8x256xf32>
    %391 = vector.extract_strided_slice %390 {offsets = [0, 0], sizes = [8, 128], strides = [1, 1]} : vector<8x256xf32> to vector<8x128xf32>
    %392 = vector.extract_strided_slice %390 {offsets = [0, 128], sizes = [8, 128], strides = [1, 1]} : vector<8x256xf32> to vector<8x128xf32>
    %393 = vector.extract_strided_slice %381 {offsets = [0, 256], sizes = [8, 128], strides = [1, 1]} : vector<8x384xf32> to vector<8x128xf32>
    %394 = vector.extract_strided_slice %382 {offsets = [0, 256], sizes = [8, 128], strides = [1, 1]} : vector<8x384xf32> to vector<8x128xf32>
    %395 = vector.broadcast %8 : vector<1x128xf32> to vector<8x128xf32>
    %396 = arith.addf %394, %395 : vector<8x128xf32>
    %397 = arith.mulf %391, %396 : vector<8x128xf32>
    %398 = arith.addf %393, %397 : vector<8x128xf32>
    %399 = math.tanh %398 : vector<8x128xf32>
    %cst_156 = arith.constant 1.000000e+00 : f32
    %400 = vector.broadcast %cst_156 : f32 to vector<8x128xf32>
    %401 = arith.subf %400, %392 : vector<8x128xf32>
    %402 = arith.mulf %401, %399 : vector<8x128xf32>
    %403 = arith.mulf %392, %377 : vector<8x128xf32>
    %404 = arith.addf %402, %403 : vector<8x128xf32>
    %c7_i32_157 = arith.constant 7 : i32
    %405 = arith.subi %c7_i32_157, %c6_i32 : i32
    %406 = arith.index_cast %405 : i32 to index
    %c0_158 = arith.constant 0 : index
    %c0_159 = arith.constant 0 : index
    %407 = vector.load %arg2[%406, %c0_158, %c0_159] : memref<8x8x384xf32, #tpu.memory_space<vmem>>, vector<1x8x384xf32>
    %408 = vector.shape_cast %407 : vector<1x8x384xf32> to vector<8x384xf32>
    %cst_160 = arith.constant dense<0.000000e+00> : vector<8x384xf32>
    %409 = tpu.matmul %378, %6, %cst_160 {dimension_numbers = #tpu.dot_dimension_numbers<[1], [0], [0], [1], [0, 0, 1, 1], [], []>} : vector<8x128xf32>, vector<128x384xf32>, vector<8x384xf32> -> vector<8x384xf32>
    %410 = vector.extract_strided_slice %408 {offsets = [0, 0], sizes = [8, 256], strides = [1, 1]} : vector<8x384xf32> to vector<8x256xf32>
    %411 = vector.extract_strided_slice %409 {offsets = [0, 0], sizes = [8, 256], strides = [1, 1]} : vector<8x384xf32> to vector<8x256xf32>
    %412 = arith.addf %410, %411 : vector<8x256xf32>
    %413 = arith.negf %412 : vector<8x256xf32>
    %414 = math.exp %413 : vector<8x256xf32>
    %cst_161 = arith.constant 1.000000e+00 : f32
    %415 = vector.broadcast %cst_161 : f32 to vector<8x256xf32>
    %416 = arith.addf %415, %414 : vector<8x256xf32>
    %417 = arith.divf %415, %416 : vector<8x256xf32>
    %418 = vector.extract_strided_slice %417 {offsets = [0, 0], sizes = [8, 128], strides = [1, 1]} : vector<8x256xf32> to vector<8x128xf32>
    %419 = vector.extract_strided_slice %417 {offsets = [0, 128], sizes = [8, 128], strides = [1, 1]} : vector<8x256xf32> to vector<8x128xf32>
    %420 = vector.extract_strided_slice %408 {offsets = [0, 256], sizes = [8, 128], strides = [1, 1]} : vector<8x384xf32> to vector<8x128xf32>
    %421 = vector.extract_strided_slice %409 {offsets = [0, 256], sizes = [8, 128], strides = [1, 1]} : vector<8x384xf32> to vector<8x128xf32>
    %422 = vector.broadcast %10 : vector<1x128xf32> to vector<8x128xf32>
    %423 = arith.addf %421, %422 : vector<8x128xf32>
    %424 = arith.mulf %418, %423 : vector<8x128xf32>
    %425 = arith.addf %420, %424 : vector<8x128xf32>
    %426 = math.tanh %425 : vector<8x128xf32>
    %cst_162 = arith.constant 1.000000e+00 : f32
    %427 = vector.broadcast %cst_162 : f32 to vector<8x128xf32>
    %428 = arith.subf %427, %419 : vector<8x128xf32>
    %429 = arith.mulf %428, %426 : vector<8x128xf32>
    %430 = arith.mulf %419, %378 : vector<8x128xf32>
    %431 = arith.addf %429, %430 : vector<8x128xf32>
    %c0_163 = arith.constant 0 : index
    %c0_164 = arith.constant 0 : index
    %432 = vector.load %arg8[%c0_163, %c0_164] : memref<8x128xf32, #tpu.memory_space<vmem>>, vector<8x128xf32>
    %433 = arith.addf %432, %404 : vector<8x128xf32>
    %434 = arith.addf %433, %431 : vector<8x128xf32>
    %c0_165 = arith.constant 0 : index
    %c0_166 = arith.constant 0 : index
    %435 = vector.load %arg8[%c0_165, %c0_166] : memref<8x128xf32, #tpu.memory_space<vmem>>, vector<8x128xf32>
    tpu.vector_store %arg8[%c0_165, %c0_166], %434 {strides = array<i32>} : memref<8x128xf32, #tpu.memory_space<vmem>>, vector<8x128xf32>,
    %c0_167 = arith.constant 0 : index
    %c0_168 = arith.constant 0 : index
    %436 = vector.load %arg6[%c0_167, %c0_168] : memref<8x128xf32, #tpu.memory_space<vmem>>, vector<8x128xf32>
    tpu.vector_store %arg6[%c0_167, %c0_168], %404 {strides = array<i32>} : memref<8x128xf32, #tpu.memory_space<vmem>>, vector<8x128xf32>,
    %c0_169 = arith.constant 0 : index
    %c0_170 = arith.constant 0 : index
    %437 = vector.load %arg7[%c0_169, %c0_170] : memref<8x128xf32, #tpu.memory_space<vmem>>, vector<8x128xf32>
    tpu.vector_store %arg7[%c0_169, %c0_170], %431 {strides = array<i32>} : memref<8x128xf32, #tpu.memory_space<vmem>>, vector<8x128xf32>,
    %c7_i32_171 = arith.constant 7 : i32
    %c0_172 = arith.constant 0 : index
    %c0_173 = arith.constant 0 : index
    %438 = vector.load %arg6[%c0_172, %c0_173] : memref<8x128xf32, #tpu.memory_space<vmem>>, vector<8x128xf32>
    %c0_174 = arith.constant 0 : index
    %c0_175 = arith.constant 0 : index
    %439 = vector.load %arg7[%c0_174, %c0_175] : memref<8x128xf32, #tpu.memory_space<vmem>>, vector<8x128xf32>
    %440 = arith.index_cast %c7_i32_171 : i32 to index
    %c0_176 = arith.constant 0 : index
    %c0_177 = arith.constant 0 : index
    %441 = vector.load %arg1[%440, %c0_176, %c0_177] : memref<8x8x384xf32, #tpu.memory_space<vmem>>, vector<1x8x384xf32>
    %442 = vector.shape_cast %441 : vector<1x8x384xf32> to vector<8x384xf32>
    %cst_178 = arith.constant dense<0.000000e+00> : vector<8x384xf32>
    %443 = tpu.matmul %438, %4, %cst_178 {dimension_numbers = #tpu.dot_dimension_numbers<[1], [0], [0], [1], [0, 0, 1, 1], [], []>} : vector<8x128xf32>, vector<128x384xf32>, vector<8x384xf32> -> vector<8x384xf32>
    %444 = vector.extract_strided_slice %442 {offsets = [0, 0], sizes = [8, 256], strides = [1, 1]} : vector<8x384xf32> to vector<8x256xf32>
    %445 = vector.extract_strided_slice %443 {offsets = [0, 0], sizes = [8, 256], strides = [1, 1]} : vector<8x384xf32> to vector<8x256xf32>
    %446 = arith.addf %444, %445 : vector<8x256xf32>
    %447 = arith.negf %446 : vector<8x256xf32>
    %448 = math.exp %447 : vector<8x256xf32>
    %cst_179 = arith.constant 1.000000e+00 : f32
    %449 = vector.broadcast %cst_179 : f32 to vector<8x256xf32>
    %450 = arith.addf %449, %448 : vector<8x256xf32>
    %451 = arith.divf %449, %450 : vector<8x256xf32>
    %452 = vector.extract_strided_slice %451 {offsets = [0, 0], sizes = [8, 128], strides = [1, 1]} : vector<8x256xf32> to vector<8x128xf32>
    %453 = vector.extract_strided_slice %451 {offsets = [0, 128], sizes = [8, 128], strides = [1, 1]} : vector<8x256xf32> to vector<8x128xf32>
    %454 = vector.extract_strided_slice %442 {offsets = [0, 256], sizes = [8, 128], strides = [1, 1]} : vector<8x384xf32> to vector<8x128xf32>
    %455 = vector.extract_strided_slice %443 {offsets = [0, 256], sizes = [8, 128], strides = [1, 1]} : vector<8x384xf32> to vector<8x128xf32>
    %456 = vector.broadcast %8 : vector<1x128xf32> to vector<8x128xf32>
    %457 = arith.addf %455, %456 : vector<8x128xf32>
    %458 = arith.mulf %452, %457 : vector<8x128xf32>
    %459 = arith.addf %454, %458 : vector<8x128xf32>
    %460 = math.tanh %459 : vector<8x128xf32>
    %cst_180 = arith.constant 1.000000e+00 : f32
    %461 = vector.broadcast %cst_180 : f32 to vector<8x128xf32>
    %462 = arith.subf %461, %453 : vector<8x128xf32>
    %463 = arith.mulf %462, %460 : vector<8x128xf32>
    %464 = arith.mulf %453, %438 : vector<8x128xf32>
    %465 = arith.addf %463, %464 : vector<8x128xf32>
    %c7_i32_181 = arith.constant 7 : i32
    %466 = arith.subi %c7_i32_181, %c7_i32_171 : i32
    %467 = arith.index_cast %466 : i32 to index
    %c0_182 = arith.constant 0 : index
    %c0_183 = arith.constant 0 : index
    %468 = vector.load %arg2[%467, %c0_182, %c0_183] : memref<8x8x384xf32, #tpu.memory_space<vmem>>, vector<1x8x384xf32>
    %469 = vector.shape_cast %468 : vector<1x8x384xf32> to vector<8x384xf32>
    %cst_184 = arith.constant dense<0.000000e+00> : vector<8x384xf32>
    %470 = tpu.matmul %439, %6, %cst_184 {dimension_numbers = #tpu.dot_dimension_numbers<[1], [0], [0], [1], [0, 0, 1, 1], [], []>} : vector<8x128xf32>, vector<128x384xf32>, vector<8x384xf32> -> vector<8x384xf32>
    %471 = vector.extract_strided_slice %469 {offsets = [0, 0], sizes = [8, 256], strides = [1, 1]} : vector<8x384xf32> to vector<8x256xf32>
    %472 = vector.extract_strided_slice %470 {offsets = [0, 0], sizes = [8, 256], strides = [1, 1]} : vector<8x384xf32> to vector<8x256xf32>
    %473 = arith.addf %471, %472 : vector<8x256xf32>
    %474 = arith.negf %473 : vector<8x256xf32>
    %475 = math.exp %474 : vector<8x256xf32>
    %cst_185 = arith.constant 1.000000e+00 : f32
    %476 = vector.broadcast %cst_185 : f32 to vector<8x256xf32>
    %477 = arith.addf %476, %475 : vector<8x256xf32>
    %478 = arith.divf %476, %477 : vector<8x256xf32>
    %479 = vector.extract_strided_slice %478 {offsets = [0, 0], sizes = [8, 128], strides = [1, 1]} : vector<8x256xf32> to vector<8x128xf32>
    %480 = vector.extract_strided_slice %478 {offsets = [0, 128], sizes = [8, 128], strides = [1, 1]} : vector<8x256xf32> to vector<8x128xf32>
    %481 = vector.extract_strided_slice %469 {offsets = [0, 256], sizes = [8, 128], strides = [1, 1]} : vector<8x384xf32> to vector<8x128xf32>
    %482 = vector.extract_strided_slice %470 {offsets = [0, 256], sizes = [8, 128], strides = [1, 1]} : vector<8x384xf32> to vector<8x128xf32>
    %483 = vector.broadcast %10 : vector<1x128xf32> to vector<8x128xf32>
    %484 = arith.addf %482, %483 : vector<8x128xf32>
    %485 = arith.mulf %479, %484 : vector<8x128xf32>
    %486 = arith.addf %481, %485 : vector<8x128xf32>
    %487 = math.tanh %486 : vector<8x128xf32>
    %cst_186 = arith.constant 1.000000e+00 : f32
    %488 = vector.broadcast %cst_186 : f32 to vector<8x128xf32>
    %489 = arith.subf %488, %480 : vector<8x128xf32>
    %490 = arith.mulf %489, %487 : vector<8x128xf32>
    %491 = arith.mulf %480, %439 : vector<8x128xf32>
    %492 = arith.addf %490, %491 : vector<8x128xf32>
    %c0_187 = arith.constant 0 : index
    %c0_188 = arith.constant 0 : index
    %493 = vector.load %arg8[%c0_187, %c0_188] : memref<8x128xf32, #tpu.memory_space<vmem>>, vector<8x128xf32>
    %494 = arith.addf %493, %465 : vector<8x128xf32>
    %495 = arith.addf %494, %492 : vector<8x128xf32>
    %c0_189 = arith.constant 0 : index
    %c0_190 = arith.constant 0 : index
    %496 = vector.load %arg8[%c0_189, %c0_190] : memref<8x128xf32, #tpu.memory_space<vmem>>, vector<8x128xf32>
    tpu.vector_store %arg8[%c0_189, %c0_190], %495 {strides = array<i32>} : memref<8x128xf32, #tpu.memory_space<vmem>>, vector<8x128xf32>,
    %c0_191 = arith.constant 0 : index
    %c0_192 = arith.constant 0 : index
    %497 = vector.load %arg6[%c0_191, %c0_192] : memref<8x128xf32, #tpu.memory_space<vmem>>, vector<8x128xf32>
    tpu.vector_store %arg6[%c0_191, %c0_192], %465 {strides = array<i32>} : memref<8x128xf32, #tpu.memory_space<vmem>>, vector<8x128xf32>,
    %c0_193 = arith.constant 0 : index
    %c0_194 = arith.constant 0 : index
    %498 = vector.load %arg7[%c0_193, %c0_194] : memref<8x128xf32, #tpu.memory_space<vmem>>, vector<8x128xf32>
    tpu.vector_store %arg7[%c0_193, %c0_194], %492 {strides = array<i32>} : memref<8x128xf32, #tpu.memory_space<vmem>>, vector<8x128xf32>,
    %c8_i32 = arith.constant 8 : i32
    %c0_i32_195 = arith.constant 0 : i32
    %499 = arith.cmpi eq, %arg0, %c0_i32_195 : i32
    %500 = arith.extui %499 : i1 to i32
    %c0_i32_196 = arith.constant 0 : i32
    %501 = arith.cmpi ne, %500, %c0_i32_196 : i32
    scf.if %501 {
      %c0_197 = arith.constant 0 : index
      %c0_198 = arith.constant 0 : index
      %502 = vector.load %arg8[%c0_197, %c0_198] : memref<8x128xf32, #tpu.memory_space<vmem>>, vector<8x128xf32>
      %cst_199 = arith.constant 6.250000e-02 : f32
      %503 = vector.broadcast %cst_199 : f32 to vector<8x128xf32>
      %504 = arith.mulf %502, %503 : vector<8x128xf32>
      %c0_200 = arith.constant 0 : index
      %c0_201 = arith.constant 0 : index
      %505 = vector.load %arg5[%c0_200, %c0_201] : memref<8x128xf32, #tpu.memory_space<vmem>>, vector<8x128xf32>
      tpu.vector_store %arg5[%c0_200, %c0_201], %504 {strides = array<i32>} : memref<8x128xf32, #tpu.memory_space<vmem>>, vector<8x128xf32>,
    } else {
    }
    return
  }
  func.func @transform_0(%arg0: i32) -> (i32, i32, i32) {
    %c0_i32 = arith.constant 0 : i32
    %c0_i32_0 = arith.constant 0 : i32
    %c0_i32_1 = arith.constant 0 : i32
    return %arg0, %c0_i32, %c0_i32_0 : i32, i32, i32
  }
  func.func @transform_1(%arg0: i32) -> (i32, i32, i32) {
    %c0_i32 = arith.constant 0 : i32
    %0 = arith.subi %c0_i32, %arg0 : i32
    %c0_i32_0 = arith.constant 0 : i32
    %c1_i32 = arith.constant 1 : i32
    %c0_i32_1 = arith.constant 0 : i32
    return %0, %c0_i32_0, %c1_i32 : i32, i32, i32
  }
  func.func @transform_2(%arg0: i32) -> (i32, i32, i32) {
    %c0_i32 = arith.constant 0 : i32
    %c0_i32_0 = arith.constant 0 : i32
    %c0_i32_1 = arith.constant 0 : i32
    %c0_i32_2 = arith.constant 0 : i32
    return %c0_i32, %c0_i32_0, %c0_i32_1 : i32, i32, i32
  }
  func.func @transform_3(%arg0: i32) -> (i32, i32, i32) {
    %c0_i32 = arith.constant 0 : i32
    %c0_i32_0 = arith.constant 0 : i32
    %c0_i32_1 = arith.constant 0 : i32
    %c0_i32_2 = arith.constant 0 : i32
    return %c0_i32, %c0_i32_0, %c0_i32_1 : i32, i32, i32
  }
  func.func @transform_4(%arg0: i32) -> (i32, i32) {
    %c0_i32 = arith.constant 0 : i32
    %c0_i32_0 = arith.constant 0 : i32
    %c0_i32_1 = arith.constant 0 : i32
    return %c0_i32, %c0_i32_0 : i32, i32
  }
}

</mosaic_0001>

<llo_original>
// kernel: encoder_forward.2
$region0: #{encoder_forward.2}
  #allocation0 [shape = 'u32[]', space=smem, size = 0x4, offset = 0x4, fixed_abs, tag = 'smem constant byte address 0x4 - core index']
  #allocation1 [shape = 'u32[144,128]{1,0:T(1,128)}', space=vmem, size = 0x12000, scoped, tag = 'internal scratch']
  %s0 = inlined_call_operand.vmem [shape: f32[64,16], index: 0, kind: input, shape index: {}]
  %s1 = inlined_call_operand.vmem [shape: f32[16,768], index: 1, kind: input, shape index: {}]
  %s2 = inlined_call_operand.vmem [shape: f32[1,768], index: 2, kind: input, shape index: {}]
  %s3 = inlined_call_operand.vmem [shape: f32[64,768], index: 3, kind: output, shape index: {}]
  %s4 = sld [smem:[#allocation0]]
  $region22: #{encoder_forward.2} parent=0
    _
  %s6 = ssub.s32 1, %s4
  %s7 = scalar_select 0, %s6, %s4
  // Predicated region
  $region2: #{encoder_forward.2} parent=0 // pred_check
    _
  $region3: #{encoder_forward.2} parent=0 // pred_check_branch
    %9 = sbr.rel (0) target = $region5
  $region4: #{encoder_forward.2} parent=0 // pred_region
    _
  $region5: #{encoder_forward.2} parent=0 // pred_fallthru
    _
  // Predicated region
  $region6: #{encoder_forward.2} parent=0 // pred_check
    _
  $region7: #{encoder_forward.2} parent=0 // pred_check_branch
    %11 = sbr.rel (0) target = $region9
  $region8: #{encoder_forward.2} parent=0 // pred_region
    _
  $region9: #{encoder_forward.2} parent=0 // pred_fallthru
    _
  // Predicated region
  $region10: #{encoder_forward.2} parent=0 // pred_check
    _
  $region11: #{encoder_forward.2} parent=0 // pred_check_branch
    %13 = sbr.rel (0) target = $region13
  $region12: #{encoder_forward.2} parent=0 // pred_region
    _
  $region13: #{encoder_forward.2} parent=0 // pred_fallthru
    _
  %v14 = vld [vmem:[%s0] sm:$0xff]
  %v15 = vld [vmem:[%s0 + $0x8] sm:$0xff]
  %v16 = vld [vmem:[%s0 + $0x10] sm:$0xff]
  %v17 = vld [vmem:[%s0 + $0x18] sm:$0xff]
  %v18 = vld [vmem:[%s0 + $0x20] sm:$0xff]
  %v19 = vld [vmem:[%s0 + $0x28] sm:$0xff]
  %v20 = vld [vmem:[%s0 + $0x30] sm:$0xff]
  %v21 = vld [vmem:[%s0 + $0x38] sm:$0xff]
  %v22 = vld [vmem:[%s1] sm:$0xff]
  %v23 = vld [vmem:[%s1 + $0x8] sm:$0xff]
  %v24 = vld [vmem:[%s1 + $0x10] sm:$0xff]
  %v25 = vld [vmem:[%s1 + $0x18] sm:$0xff]
  %v26 = vld [vmem:[%s1 + $0x20] sm:$0xff]
  %v27 = vld [vmem:[%s1 + $0x28] sm:$0xff]
  %v28 = vld [vmem:[%s1 + $0x30] sm:$0xff]
  %v29 = vld [vmem:[%s1 + $0x38] sm:$0xff]
  %v30 = vld [vmem:[%s1 + $0x40] sm:$0xff]
  %v31 = vld [vmem:[%s1 + $0x48] sm:$0xff]
  %v32 = vld [vmem:[%s1 + $0x50] sm:$0xff]
  %v33 = vld [vmem:[%s1 + $0x58] sm:$0xff]
  %v34 = vld [vmem:[%s2] sm:$0x3f]
  %v36 = vlaneseq
  %v37 = vshrl.u32 %v36, 7
  %v38 = vsub.s32 0, %v37
  %v39 = vrot.slane %v34, %v38
  %v40 = vlaneseq
  %v41 = vshrl.u32 %v40, 7
  %v42 = vsub.s32 1, %v41
  %v43 = vrot.slane %v34, %v42
  %v44 = vlaneseq
  %v45 = vshrl.u32 %v44, 7
  %v46 = vsub.s32 2, %v45
  %v47 = vrot.slane %v34, %v46
  %v48 = vlaneseq
  %v49 = vshrl.u32 %v48, 7
  %v50 = vsub.s32 3, %v49
  %v51 = vrot.slane %v34, %v50
  %v52 = vlaneseq
  %v53 = vshrl.u32 %v52, 7
  %v54 = vsub.s32 4, %v53
  %v55 = vrot.slane %v34, %v54
  %v56 = vlaneseq
  %v57 = vshrl.u32 %v56, 7
  %v58 = vsub.s32 5, %v57
  %v59 = vrot.slane %v34, %v58
  %vm66 = vcmask 130048
  %v68 = vsel %vm66, %v14, 0
  %v71 = vsel %vm66, %v15, 0
  %v74 = vsel %vm66, %v16, 0
  %v77 = vsel %vm66, %v17, 0
  %v80 = vsel %vm66, %v18, 0
  %v83 = vsel %vm66, %v19, 0
  %v86 = vsel %vm66, %v20, 0
  %v89 = vsel %vm66, %v21, 0
  %91 = vmatprep.subr.mxu0 0.0
  %92 = vmatpush1.msra.mxu0 0.0
  %93 = vmatprep.subr.mxu0 0.0
  %94 = vmatpush1.msra.mxu0 0.0
  %95 = vmatprep.subr.mxu0 0.0
  %96 = vmatpush1.msra.mxu0 0.0
  %97 = vmatprep.subr.mxu0 0.0
  %98 = vmatpush1.msra.mxu0 0.0
  %99 = vmatprep.subr.mxu0 0.0
  %100 = vmatpush1.msra.mxu0 0.0
  %101 = vmatprep.subr.mxu0 0.0
  %102 = vmatpush1.msra.mxu0 0.0
  %103 = vmatprep.subr.mxu0 0.0
  %104 = vmatpush1.msra.mxu0 0.0
  %105 = vmatprep.subr.mxu0 0.0
  %106 = vmatpush1.msra.mxu0 0.0
  %107 = vmatprep.subr.mxu0 0.0
  %108 = vmatpush1.msra.mxu0 0.0
  %109 = vmatprep.subr.mxu0 0.0
  %110 = vmatpush1.msra.mxu0 0.0
  %111 = vmatprep.subr.mxu0 0.0
  %112 = vmatpush1.msra.mxu0 0.0
  %113 = vmatprep.subr.mxu0 0.0
  %114 = vmatpush1.msra.mxu0 0.0
  %115 = vmatprep.subr.mxu0 0.0
  %116 = vmatpush1.msra.mxu0 0.0
  %117 = vmatprep.subr.mxu0 0.0
  %118 = vmatpush1.msra.mxu0 0.0
  %119 = vmatprep.subr.mxu0 %v29
  %120 = vmatpush1.msra.mxu0 %v28
  %121 = vmatprep.subr.mxu0 %v23
  %122 = vmatpush1.msra.mxu0 %v22
  %123 = vmatprep.subr.mxu0 0.0
  %124 = vmatpush2.msra.mxu0 0.0
  %125 = vmatprep.subr.mxu0 0.0
  %126 = vmatpush2.msra.mxu0 0.0
  %127 = vmatprep.subr.mxu0 0.0
  %128 = vmatpush2.msra.mxu0 0.0
  %129 = vmatprep.subr.mxu0 0.0
  %130 = vmatpush2.msra.mxu0 0.0
  %131 = vmatprep.subr.mxu0 0.0
  %132 = vmatpush2.msra.mxu0 0.0
  %133 = vmatprep.subr.mxu0 0.0
  %134 = vmatpush2.msra.mxu0 0.0
  %135 = vmatprep.subr.mxu0 0.0
  %136 = vmatpush2.msra.mxu0 0.0
  %137 = vmatprep.subr.mxu0 0.0
  %138 = vmatpush2.msra.mxu0 0.0
  %139 = vmatprep.subr.mxu0 0.0
  %140 = vmatpush2.msra.mxu0 0.0
  %141 = vmatprep.subr.mxu0 0.0
  %142 = vmatpush2.msra.mxu0 0.0
  %143 = vmatprep.subr.mxu0 0.0
  %144 = vmatpush2.msra.mxu0 0.0
  %145 = vmatprep.subr.mxu0 0.0
  %146 = vmatpush2.msra.mxu0 0.0
  %147 = vmatprep.subr.mxu0 0.0
  %148 = vmatpush2.msra.mxu0 0.0
  %149 = vmatprep.subr.mxu0 0.0
  %150 = vmatpush2.msra.mxu0 0.0
  %151 = vmatprep.subr.mxu0 0.0
  %152 = vmatpush2.msra.mxu0 0.0
  %153 = vmatprep.subr.mxu0 0.0
  %154 = vmatpush2.msra.mxu0 0.0
  %155 = vmatprep.mubr.f32.mxu0 0.0
  %156 = vmatmul.mubr.f32.gmra.mxu0 %v68
  %v157 = vpop.f32.mrf.mxu0
  %v158 = vadd.f32 %v39, %v157
  %v159 = vpop.f32.mrf.mxu0
  %v160 = vadd.f32 %v43, %v159
  %161 = vmatprep.mubr.f32.mxu0 0.0
  %162 = vmatmul.mubr.f32.gmra.mxu0 %v71
  %v163 = vpop.f32.mrf.mxu0
  %v164 = vadd.f32 %v39, %v163
  %v165 = vpop.f32.mrf.mxu0
  %v166 = vadd.f32 %v43, %v165
  %167 = vmatprep.mubr.f32.mxu0 0.0
  %168 = vmatmul.mubr.f32.gmra.mxu0 %v74
  %v169 = vpop.f32.mrf.mxu0
  %v170 = vadd.f32 %v39, %v169
  %v171 = vpop.f32.mrf.mxu0
  %v172 = vadd.f32 %v43, %v171
  %173 = vmatprep.mubr.f32.mxu0 0.0
  %174 = vmatmul.mubr.f32.gmra.mxu0 %v77
  %v175 = vpop.f32.mrf.mxu0
  %v176 = vadd.f32 %v39, %v175
  %v177 = vpop.f32.mrf.mxu0
  %v178 = vadd.f32 %v43, %v177
  %179 = vmatprep.mubr.f32.mxu0 0.0
  %180 = vmatmul.mubr.f32.gmra.mxu0 %v80
  %v181 = vpop.f32.mrf.mxu0
  %v182 = vadd.f32 %v39, %v181
  %v183 = vpop.f32.mrf.mxu0
  %v184 = vadd.f32 %v43, %v183
  %185 = vmatprep.mubr.f32.mxu0 0.0
  %186 = vmatmul.mubr.f32.gmra.mxu0 %v83
  %v187 = vpop.f32.mrf.mxu0
  %v188 = vadd.f32 %v39, %v187
  %v189 = vpop.f32.mrf.mxu0
  %v190 = vadd.f32 %v43, %v189
  %191 = vmatprep.mubr.f32.mxu0 0.0
  %192 = vmatmul.mubr.f32.gmra.mxu0 %v86
  %v193 = vpop.f32.mrf.mxu0
  %v194 = vadd.f32 %v39, %v193
  %v195 = vpop.f32.mrf.mxu0
  %v196 = vadd.f32 %v43, %v195
  %197 = vmatprep.mubr.f32.mxu0 0.0
  %198 = vmatmul.mubr.f32.gmra.mxu0 %v89
  %v199 = vpop.f32.mrf.mxu0
  %v200 = vadd.f32 %v39, %v199
  %v201 = vpop.f32.mrf.mxu0
  %v202 = vadd.f32 %v43, %v201
  %203 = vdwg.mxu0
  %204 = vmatprep.subr.mxu0 0.0
  %205 = vmatpush1.msra.mxu0 0.0
  %206 = vmatprep.subr.mxu0 0.0
  %207 = vmatpush1.msra.mxu0 0.0
  %208 = vmatprep.subr.mxu0 0.0
  %209 = vmatpush1.msra.mxu0 0.0
  %210 = vmatprep.subr.mxu0 0.0
  %211 = vmatpush1.msra.mxu0 0.0
  %212 = vmatprep.subr.mxu0 0.0
  %213 = vmatpush1.msra.mxu0 0.0
  %214 = vmatprep.subr.mxu0 0.0
  %215 = vmatpush1.msra.mxu0 0.0
  %216 = vmatprep.subr.mxu0 0.0
  %217 = vmatpush1.msra.mxu0 0.0
  %218 = vmatprep.subr.mxu0 0.0
  %219 = vmatpush1.msra.mxu0 0.0
  %220 = vmatprep.subr.mxu0 0.0
  %221 = vmatpush1.msra.mxu0 0.0
  %222 = vmatprep.subr.mxu0 0.0
  %223 = vmatpush1.msra.mxu0 0.0
  %224 = vmatprep.subr.mxu0 0.0
  %225 = vmatpush1.msra.mxu0 0.0
  %226 = vmatprep.subr.mxu0 0.0
  %227 = vmatpush1.msra.mxu0 0.0
  %228 = vmatprep.subr.mxu0 0.0
  %229 = vmatpush1.msra.mxu0 0.0
  %230 = vmatprep.subr.mxu0 0.0
  %231 = vmatpush1.msra.mxu0 0.0
  %232 = vmatprep.subr.mxu0 %v31
  %233 = vmatpush1.msra.mxu0 %v30
  %234 = vmatprep.subr.mxu0 %v25
  %235 = vmatpush1.msra.mxu0 %v24
  %236 = vmatprep.subr.mxu0 0.0
  %237 = vmatpush2.msra.mxu0 0.0
  %238 = vmatprep.subr.mxu0 0.0
  %239 = vmatpush2.msra.mxu0 0.0
  %240 = vmatprep.subr.mxu0 0.0
  %241 = vmatpush2.msra.mxu0 0.0
  %242 = vmatprep.subr.mxu0 0.0
  %243 = vmatpush2.msra.mxu0 0.0
  %244 = vmatprep.subr.mxu0 0.0
  %245 = vmatpush2.msra.mxu0 0.0
  %246 = vmatprep.subr.mxu0 0.0
  %247 = vmatpush2.msra.mxu0 0.0
  %248 = vmatprep.subr.mxu0 0.0
  %249 = vmatpush2.msra.mxu0 0.0
  %250 = vmatprep.subr.mxu0 0.0
  %251 = vmatpush2.msra.mxu0 0.0
  %252 = vmatprep.subr.mxu0 0.0
  %253 = vmatpush2.msra.mxu0 0.0
  %254 = vmatprep.subr.mxu0 0.0
  %255 = vmatpush2.msra.mxu0 0.0
  %256 = vmatprep.subr.mxu0 0.0
  %257 = vmatpush2.msra.mxu0 0.0
  %258 = vmatprep.subr.mxu0 0.0
  %259 = vmatpush2.msra.mxu0 0.0
  %260 = vmatprep.subr.mxu0 0.0
  %261 = vmatpush2.msra.mxu0 0.0
  %262 = vmatprep.subr.mxu0 0.0
  %263 = vmatpush2.msra.mxu0 0.0
  %264 = vmatprep.subr.mxu0 0.0
  %265 = vmatpush2.msra.mxu0 0.0
  %266 = vmatprep.subr.mxu0 0.0
  %267 = vmatpush2.msra.mxu0 0.0
  %268 = vmatprep.mubr.f32.mxu0 0.0
  %269 = vmatmul.mubr.f32.gmra.mxu0 %v68
  %v270 = vpop.f32.mrf.mxu0
  %v271 = vadd.f32 %v47, %v270
  %v272 = vpop.f32.mrf.mxu0
  %v273 = vadd.f32 %v51, %v272
  %274 = vmatprep.mubr.f32.mxu0 0.0
  %275 = vmatmul.mubr.f32.gmra.mxu0 %v71
  %v276 = vpop.f32.mrf.mxu0
  %v277 = vadd.f32 %v47, %v276
  %v278 = vpop.f32.mrf.mxu0
  %v279 = vadd.f32 %v51, %v278
  %280 = vmatprep.mubr.f32.mxu0 0.0
  %281 = vmatmul.mubr.f32.gmra.mxu0 %v74
  %v282 = vpop.f32.mrf.mxu0
  %v283 = vadd.f32 %v47, %v282
  %v284 = vpop.f32.mrf.mxu0
  %v285 = vadd.f32 %v51, %v284
  %286 = vmatprep.mubr.f32.mxu0 0.0
  %287 = vmatmul.mubr.f32.gmra.mxu0 %v77
  %v288 = vpop.f32.mrf.mxu0
  %v289 = vadd.f32 %v47, %v288
  %v290 = vpop.f32.mrf.mxu0
  %v291 = vadd.f32 %v51, %v290
  %292 = vmatprep.mubr.f32.mxu0 0.0
  %293 = vmatmul.mubr.f32.gmra.mxu0 %v80
  %v294 = vpop.f32.mrf.mxu0
  %v295 = vadd.f32 %v47, %v294
  %v296 = vpop.f32.mrf.mxu0
  %v297 = vadd.f32 %v51, %v296
  %298 = vmatprep.mubr.f32.mxu0 0.0
  %299 = vmatmul.mubr.f32.gmra.mxu0 %v83
  %v300 = vpop.f32.mrf.mxu0
  %v301 = vadd.f32 %v47, %v300
  %v302 = vpop.f32.mrf.mxu0
  %v303 = vadd.f32 %v51, %v302
  %304 = vmatprep.mubr.f32.mxu0 0.0
  %305 = vmatmul.mubr.f32.gmra.mxu0 %v86
  %v306 = vpop.f32.mrf.mxu0
  %v307 = vadd.f32 %v47, %v306
  %v308 = vpop.f32.mrf.mxu0
  %v309 = vadd.f32 %v51, %v308
  %310 = vmatprep.mubr.f32.mxu0 0.0
  %311 = vmatmul.mubr.f32.gmra.mxu0 %v89
  %v312 = vpop.f32.mrf.mxu0
  %v313 = vadd.f32 %v47, %v312
  %v314 = vpop.f32.mrf.mxu0
  %v315 = vadd.f32 %v51, %v314
  %316 = vdwg.mxu0
  %317 = vmatprep.subr.mxu0 0.0
  %318 = vmatpush1.msra.mxu0 0.0
  %319 = vmatprep.subr.mxu0 0.0
  %320 = vmatpush1.msra.mxu0 0.0
  %321 = vmatprep.subr.mxu0 0.0
  %322 = vmatpush1.msra.mxu0 0.0
  %323 = vmatprep.subr.mxu0 0.0
  %324 = vmatpush1.msra.mxu0 0.0
  %325 = vmatprep.subr.mxu0 0.0
  %326 = vmatpush1.msra.mxu0 0.0
  %327 = vmatprep.subr.mxu0 0.0
  %328 = vmatpush1.msra.mxu0 0.0
  %329 = vmatprep.subr.mxu0 0.0
  %330 = vmatpush1.msra.mxu0 0.0
  %331 = vmatprep.subr.mxu0 0.0
  %332 = vmatpush1.msra.mxu0 0.0
  %333 = vmatprep.subr.mxu0 0.0
  %334 = vmatpush1.msra.mxu0 0.0
  %335 = vmatprep.subr.mxu0 0.0
  %336 = vmatpush1.msra.mxu0 0.0
  %337 = vmatprep.subr.mxu0 0.0
  %338 = vmatpush1.msra.mxu0 0.0
  %339 = vmatprep.subr.mxu0 0.0
  %340 = vmatpush1.msra.mxu0 0.0
  %341 = vmatprep.subr.mxu0 0.0
  %342 = vmatpush1.msra.mxu0 0.0
  %343 = vmatprep.subr.mxu0 0.0
  %344 = vmatpush1.msra.mxu0 0.0
  %345 = vmatprep.subr.mxu0 %v33
  %346 = vmatpush1.msra.mxu0 %v32
  %347 = vmatprep.subr.mxu0 %v27
  %348 = vmatpush1.msra.mxu0 %v26
  %349 = vmatprep.subr.mxu0 0.0
  %350 = vmatpush2.msra.mxu0 0.0
  %351 = vmatprep.subr.mxu0 0.0
  %352 = vmatpush2.msra.mxu0 0.0
  %353 = vmatprep.subr.mxu0 0.0
  %354 = vmatpush2.msra.mxu0 0.0
  %355 = vmatprep.subr.mxu0 0.0
  %356 = vmatpush2.msra.mxu0 0.0
  %357 = vmatprep.subr.mxu0 0.0
  %358 = vmatpush2.msra.mxu0 0.0
  %359 = vmatprep.subr.mxu0 0.0
  %360 = vmatpush2.msra.mxu0 0.0
  %361 = vmatprep.subr.mxu0 0.0
  %362 = vmatpush2.msra.mxu0 0.0
  %363 = vmatprep.subr.mxu0 0.0
  %364 = vmatpush2.msra.mxu0 0.0
  %365 = vmatprep.subr.mxu0 0.0
  %366 = vmatpush2.msra.mxu0 0.0
  %367 = vmatprep.subr.mxu0 0.0
  %368 = vmatpush2.msra.mxu0 0.0
  %369 = vmatprep.subr.mxu0 0.0
  %370 = vmatpush2.msra.mxu0 0.0
  %371 = vmatprep.subr.mxu0 0.0
  %372 = vmatpush2.msra.mxu0 0.0
  %373 = vmatprep.subr.mxu0 0.0
  %374 = vmatpush2.msra.mxu0 0.0
  %375 = vmatprep.subr.mxu0 0.0
  %376 = vmatpush2.msra.mxu0 0.0
  %377 = vmatprep.subr.mxu0 0.0
  %378 = vmatpush2.msra.mxu0 0.0
  %379 = vmatprep.subr.mxu0 0.0
  %380 = vmatpush2.msra.mxu0 0.0
  %381 = vmatprep.mubr.f32.mxu0 0.0
  %382 = vmatmul.mubr.f32.gmra.mxu0 %v68
  %v383 = vpop.f32.mrf.mxu0
  %v384 = vadd.f32 %v55, %v383
  %v385 = vpop.f32.mrf.mxu0
  %v386 = vadd.f32 %v59, %v385
  %387 = vmatprep.mubr.f32.mxu0 0.0
  %388 = vmatmul.mubr.f32.gmra.mxu0 %v71
  %v389 = vpop.f32.mrf.mxu0
  %v390 = vadd.f32 %v55, %v389
  %v391 = vpop.f32.mrf.mxu0
  %v392 = vadd.f32 %v59, %v391
  %393 = vmatprep.mubr.f32.mxu0 0.0
  %394 = vmatmul.mubr.f32.gmra.mxu0 %v74
  %v395 = vpop.f32.mrf.mxu0
  %v396 = vadd.f32 %v55, %v395
  %v397 = vpop.f32.mrf.mxu0
  %v398 = vadd.f32 %v59, %v397
  %399 = vmatprep.mubr.f32.mxu0 0.0
  %400 = vmatmul.mubr.f32.gmra.mxu0 %v77
  %v401 = vpop.f32.mrf.mxu0
  %v402 = vadd.f32 %v55, %v401
  %v403 = vpop.f32.mrf.mxu0
  %v404 = vadd.f32 %v59, %v403
  %405 = vmatprep.mubr.f32.mxu0 0.0
  %406 = vmatmul.mubr.f32.gmra.mxu0 %v80
  %v407 = vpop.f32.mrf.mxu0
  %v408 = vadd.f32 %v55, %v407
  %v409 = vpop.f32.mrf.mxu0
  %v410 = vadd.f32 %v59, %v409
  %411 = vmatprep.mubr.f32.mxu0 0.0
  %412 = vmatmul.mubr.f32.gmra.mxu0 %v83
  %v413 = vpop.f32.mrf.mxu0
  %v414 = vadd.f32 %v55, %v413
  %v415 = vpop.f32.mrf.mxu0
  %v416 = vadd.f32 %v59, %v415
  %417 = vmatprep.mubr.f32.mxu0 0.0
  %418 = vmatmul.mubr.f32.gmra.mxu0 %v86
  %v419 = vpop.f32.mrf.mxu0
  %v420 = vadd.f32 %v55, %v419
  %v421 = vpop.f32.mrf.mxu0
  %v422 = vadd.f32 %v59, %v421
  %423 = vmatprep.mubr.f32.mxu0 0.0
  %424 = vmatmul.mubr.f32.gmra.mxu0 %v89
  %v425 = vpop.f32.mrf.mxu0
  %v426 = vadd.f32 %v55, %v425
  %v427 = vpop.f32.mrf.mxu0
  %v428 = vadd.f32 %v59, %v427
  %429 = vdwg.mxu0
  %430 = vst [vmem:[%s3] sm:$0xff] %v158
  %431 = vst [vmem:[%s3 + $0x8] sm:$0xff] %v160
  %432 = vst [vmem:[%s3 + $0x10] sm:$0xff] %v271
  %433 = vst [vmem:[%s3 + $0x18] sm:$0xff] %v273
  %434 = vst [vmem:[%s3 + $0x20] sm:$0xff] %v384
  %435 = vst [vmem:[%s3 + $0x28] sm:$0xff] %v386
  %436 = vst [vmem:[%s3 + $0x30] sm:$0xff] %v164
  %437 = vst [vmem:[%s3 + $0x38] sm:$0xff] %v166
  %438 = vst [vmem:[%s3 + $0x40] sm:$0xff] %v277
  %439 = vst [vmem:[%s3 + $0x48] sm:$0xff] %v279
  %440 = vst [vmem:[%s3 + $0x50] sm:$0xff] %v390
  %441 = vst [vmem:[%s3 + $0x58] sm:$0xff] %v392
  %442 = vst [vmem:[%s3 + $0x60] sm:$0xff] %v170
  %443 = vst [vmem:[%s3 + $0x68] sm:$0xff] %v172
  %444 = vst [vmem:[%s3 + $0x70] sm:$0xff] %v283
  %445 = vst [vmem:[%s3 + $0x78] sm:$0xff] %v285
  %446 = vst [vmem:[%s3 + $0x80] sm:$0xff] %v396
  %447 = vst [vmem:[%s3 + $0x88] sm:$0xff] %v398
  %448 = vst [vmem:[%s3 + $0x90] sm:$0xff] %v176
  %449 = vst [vmem:[%s3 + $0x98] sm:$0xff] %v178
  %450 = vst [vmem:[%s3 + $0xa0] sm:$0xff] %v289
  %451 = vst [vmem:[%s3 + $0xa8] sm:$0xff] %v291
  %452 = vst [vmem:[%s3 + $0xb0] sm:$0xff] %v402
  %453 = vst [vmem:[%s3 + $0xb8] sm:$0xff] %v404
  %454 = vst [vmem:[%s3 + $0xc0] sm:$0xff] %v182
  %455 = vst [vmem:[%s3 + $0xc8] sm:$0xff] %v184
  %456 = vst [vmem:[%s3 + $0xd0] sm:$0xff] %v295
  %457 = vst [vmem:[%s3 + $0xd8] sm:$0xff] %v297
  %458 = vst [vmem:[%s3 + $0xe0] sm:$0xff] %v408
  %459 = vst [vmem:[%s3 + $0xe8] sm:$0xff] %v410
  %460 = vst [vmem:[%s3 + $0xf0] sm:$0xff] %v188
  %461 = vst [vmem:[%s3 + $0xf8] sm:$0xff] %v190
  %462 = vst [vmem:[%s3 + $0x100] sm:$0xff] %v301
  %463 = vst [vmem:[%s3 + $0x108] sm:$0xff] %v303
  %464 = vst [vmem:[%s3 + $0x110] sm:$0xff] %v414
  %465 = vst [vmem:[%s3 + $0x118] sm:$0xff] %v416
  %466 = vst [vmem:[%s3 + $0x120] sm:$0xff] %v194
  %467 = vst [vmem:[%s3 + $0x128] sm:$0xff] %v196
  %468 = vst [vmem:[%s3 + $0x130] sm:$0xff] %v307
  %469 = vst [vmem:[%s3 + $0x138] sm:$0xff] %v309
  %470 = vst [vmem:[%s3 + $0x140] sm:$0xff] %v420
  %471 = vst [vmem:[%s3 + $0x148] sm:$0xff] %v422
  %472 = vst [vmem:[%s3 + $0x150] sm:$0xff] %v200
  %473 = vst [vmem:[%s3 + $0x158] sm:$0xff] %v202
  %474 = vst [vmem:[%s3 + $0x160] sm:$0xff] %v313
  %475 = vst [vmem:[%s3 + $0x168] sm:$0xff] %v315
  %476 = vst [vmem:[%s3 + $0x170] sm:$0xff] %v426
  %477 = vst [vmem:[%s3 + $0x178] sm:$0xff] %v428
  // Predicated region
  $region14: #{encoder_forward.2} parent=0 // pred_check
    _
  $region15: #{encoder_forward.2} parent=0 // pred_check_branch
    %479 = sbr.rel (0) target = $region17
  $region16: #{encoder_forward.2} parent=0 // pred_region
    _
  $region17: #{encoder_forward.2} parent=0 // pred_fallthru
    _
  // Predicated region
  $region18: #{encoder_forward.2} parent=0 // pred_check
    _
  $region19: #{encoder_forward.2} parent=0 // pred_check_branch
    %481 = sbr.rel (0) target = $region21
  $region20: #{encoder_forward.2} parent=0 // pred_region
    _
  $region21: #{encoder_forward.2} parent=0 // pred_fallthru
    _

// kernel: encoder_forward.3
$region0: #{encoder_forward.3}
  #allocation0 [shape = 'u32[]', space=smem, size = 0x4, offset = 0x4, fixed_abs, tag = 'smem constant byte address 0x4 - core index']
  #allocation1 [shape = 'u32[144,128]{1,0:T(1,128)}', space=vmem, size = 0x12000, scoped, tag = 'internal scratch']
  #allocation2 [shape = 'f32[8,128]{1,0:T(8,128)}', space=vmem, size = 0x1000, scoped, tag = 'scratch operand']
  #allocation3 [shape = 'f32[8,128]{1,0:T(8,128)}', space=vmem, size = 0x1000, scoped, tag = 'scratch operand']
  #allocation4 [shape = 'f32[8,128]{1,0:T(8,128)}', space=vmem, size = 0x1000, scoped, tag = 'scratch operand']
  %s0 = inlined_call_operand.vmem [shape: f32[8,8,768], index: 0, kind: input, shape index: {}, may-alias: {0,1}]
  %s1 = inlined_call_operand.vmem [shape: f32[8,8,768], index: 1, kind: input, shape index: {}, may-alias: {0,1}]
  %s2 = inlined_call_operand.vmem [shape: f32[2,128,384], index: 2, kind: input, shape index: {}]
  %s3 = inlined_call_operand.vmem [shape: f32[2,1,128], index: 3, kind: input, shape index: {}]
  %s4 = inlined_call_operand.vmem [shape: f32[8,128], index: 4, kind: output, shape index: {}]
  %s5 = sld [smem:[#allocation0]]
  $region80: #{encoder_forward.3} parent=0
    _
  %s7 = ssub.s32 1, %s5
  %s8 = scalar_select 0, %s7, %s5
  $region1: #{encoder_forward.3} parent=0
    #allocation5 [shape = 'u8[98304]{0}', space=vmem, size = 0x18000, scoped, tag = 'input window, operand 0, single buffered']
    #allocation6 [shape = 'u8[98304]{0}', space=vmem, size = 0x18000, scoped, tag = 'input window, operand 1, single buffered']
    // Predicated region
    $region2: #{encoder_forward.3} parent=1 // pred_check
      _
    $region3: #{encoder_forward.3} parent=1 // pred_check_branch
      %10 = sbr.rel (0) target = $region5
    $region4: #{encoder_forward.3} parent=1 // pred_region
      // Predicated region
      $region6: #{encoder_forward.3} parent=4 // pred_check
        _
      $region7: #{encoder_forward.3} parent=4 // pred_check_branch
        %12 = sbr.rel (0) target = $region9
      $region8: #{encoder_forward.3} parent=4 // pred_region
        // Predicated region
        $region10: #{encoder_forward.3} parent=8 // pred_check
          _
        $region11: #{encoder_forward.3} parent=8 // pred_check_branch
          %14 = sbr.rel (0) target = $region13
        $region12: #{encoder_forward.3} parent=8 // pred_region
          loop: start=0, step=1, limit=1
          $region14: #{encoder_forward.3} parent=12 // loop_pre_header
            _
          $region15: #{encoder_forward.3} parent=12 // loop_header
            %s16 = sphi 0, %s20
            %p17 = scmp.ge.s32.totalorder %s16, 1
            %s21 = sphi %s0, %s0
            %s22 = sphi [#allocation5], [#allocation5]
          $region16: #{encoder_forward.3} parent=12 // loop_header_branch
            %19 = sbr.rel (%p17) target = $region20
          $region17: #{encoder_forward.3} parent=12 // loop_body
            %v23 = vld [vmem:[%s21] sm:$0xff]
            %24 = vst [vmem:[%s22] sm:$0xff] %v23
            %v25 = vld [vmem:[%s21 + $0x8] sm:$0xff]
            %26 = vst [vmem:[%s22 + $0x8] sm:$0xff] %v25
            %v27 = vld [vmem:[%s21 + $0x10] sm:$0xff]
            %28 = vst [vmem:[%s22 + $0x10] sm:$0xff] %v27
            %v29 = vld [vmem:[%s21 + $0x30] sm:$0xff]
            %30 = vst [vmem:[%s22 + $0x18] sm:$0xff] %v29
            %v31 = vld [vmem:[%s21 + $0x38] sm:$0xff]
            %32 = vst [vmem:[%s22 + $0x20] sm:$0xff] %v31
            %v33 = vld [vmem:[%s21 + $0x40] sm:$0xff]
            %34 = vst [vmem:[%s22 + $0x28] sm:$0xff] %v33
            %v35 = vld [vmem:[%s21 + $0x60] sm:$0xff]
            %36 = vst [vmem:[%s22 + $0x30] sm:$0xff] %v35
            %v37 = vld [vmem:[%s21 + $0x68] sm:$0xff]
            %38 = vst [vmem:[%s22 + $0x38] sm:$0xff] %v37
            %v39 = vld [vmem:[%s21 + $0x70] sm:$0xff]
            %40 = vst [vmem:[%s22 + $0x40] sm:$0xff] %v39
            %v41 = vld [vmem:[%s21 + $0x90] sm:$0xff]
            %42 = vst [vmem:[%s22 + $0x48] sm:$0xff] %v41
            %v43 = vld [vmem:[%s21 + $0x98] sm:$0xff]
            %44 = vst [vmem:[%s22 + $0x50] sm:$0xff] %v43
            %v45 = vld [vmem:[%s21 + $0xa0] sm:$0xff]
            %46 = vst [vmem:[%s22 + $0x58] sm:$0xff] %v45
            %v47 = vld [vmem:[%s21 + $0xc0] sm:$0xff]
            %48 = vst [vmem:[%s22 + $0x60] sm:$0xff] %v47
            %v49 = vld [vmem:[%s21 + $0xc8] sm:$0xff]
            %50 = vst [vmem:[%s22 + $0x68] sm:$0xff] %v49
            %v51 = vld [vmem:[%s21 + $0xd0] sm:$0xff]
            %52 = vst [vmem:[%s22 + $0x70] sm:$0xff] %v51
            %v53 = vld [vmem:[%s21 + $0xf0] sm:$0xff]
            %54 = vst [vmem:[%s22 + $0x78] sm:$0xff] %v53
            %v55 = vld [vmem:[%s21 + $0xf8] sm:$0xff]
            %56 = vst [vmem:[%s22 + $0x80] sm:$0xff] %v55
            %v57 = vld [vmem:[%s21 + $0x100] sm:$0xff]
            %58 = vst [vmem:[%s22 + $0x88] sm:$0xff] %v57
            %v59 = vld [vmem:[%s21 + $0x120] sm:$0xff]
            %60 = vst [vmem:[%s22 + $0x90] sm:$0xff] %v59
            %v61 = vld [vmem:[%s21 + $0x128] sm:$0xff]
            %62 = vst [vmem:[%s22 + $0x98] sm:$0xff] %v61
            %v63 = vld [vmem:[%s21 + $0x130] sm:$0xff]
            %64 = vst [vmem:[%s22 + $0xa0] sm:$0xff] %v63
            %v65 = vld [vmem:[%s21 + $0x150] sm:$0xff]
            %66 = vst [vmem:[%s22 + $0xa8] sm:$0xff] %v65
            %v67 = vld [vmem:[%s21 + $0x158] sm:$0xff]
            %68 = vst [vmem:[%s22 + $0xb0] sm:$0xff] %v67
            %v69 = vld [vmem:[%s21 + $0x160] sm:$0xff]
            %70 = vst [vmem:[%s22 + $0xb8] sm:$0xff] %v69
          $region18: #{encoder_forward.3} parent=12 // loop_footer
            %s20 = sadd.s32 1, %s16
          $region19: #{encoder_forward.3} parent=12 // loop_footer_branch
            %15 = sbr.rel target = $region15
          $region20: #{encoder_forward.3} parent=12 // loop_exit
            _
        $region13: #{encoder_forward.3} parent=8 // pred_fallthru
          _
        // Predicated region
        $region21: #{encoder_forward.3} parent=8 // pred_check
          _
        $region22: #{encoder_forward.3} parent=8 // pred_check_branch
          %72 = sbr.rel target = $region24
        $region23: #{encoder_forward.3} parent=8 // pred_region
          _
        $region24: #{encoder_forward.3} parent=8 // pred_fallthru
          _
      $region9: #{encoder_forward.3} parent=4 // pred_fallthru
        _
      %73 = vnop
    $region5: #{encoder_forward.3} parent=1 // pred_fallthru
      _
    // Predicated region
    $region25: #{encoder_forward.3} parent=1 // pred_check
      _
    $region26: #{encoder_forward.3} parent=1 // pred_check_branch
      %75 = sbr.rel (0) target = $region28
    $region27: #{encoder_forward.3} parent=1 // pred_region
      %s76 = ssub.s32 0, 0
      %s77 = smul.u32 8, %s76
      %s78 = smul.addr %s77, 6
      %s79 = sadd.s32 3, %s78
      %s80 = smul.addr %s79, 8
      %s81 = scalar_lea.vmem %s1, %s80
      // Predicated region
      $region29: #{encoder_forward.3} parent=27 // pred_check
        _
      $region30: #{encoder_forward.3} parent=27 // pred_check_branch
        %83 = sbr.rel (0) target = $region32
      $region31: #{encoder_forward.3} parent=27 // pred_region
        // Predicated region
        $region33: #{encoder_forward.3} parent=31 // pred_check
          _
        $region34: #{encoder_forward.3} parent=31 // pred_check_branch
          %85 = sbr.rel (0) target = $region36
        $region35: #{encoder_forward.3} parent=31 // pred_region
          loop: start=0, step=1, limit=1
          $region37: #{encoder_forward.3} parent=35 // loop_pre_header
            _
          $region38: #{encoder_forward.3} parent=35 // loop_header
            %s87 = sphi 0, %s91
            %p88 = scmp.ge.s32.totalorder %s87, 1
            %s92 = sphi %s81, %s81
            %s93 = sphi [#allocation6], [#allocation6]
          $region39: #{encoder_forward.3} parent=35 // loop_header_branch
            %90 = sbr.rel (%p88) target = $region43
          $region40: #{encoder_forward.3} parent=35 // loop_body
            %v94 = vld [vmem:[%s92] sm:$0xff]
            %95 = vst [vmem:[%s93] sm:$0xff] %v94
            %v96 = vld [vmem:[%s92 + $0x8] sm:$0xff]
            %97 = vst [vmem:[%s93 + $0x8] sm:$0xff] %v96
            %v98 = vld [vmem:[%s92 + $0x10] sm:$0xff]
            %99 = vst [vmem:[%s93 + $0x10] sm:$0xff] %v98
            %v100 = vld [vmem:[%s92 + $0x30] sm:$0xff]
            %101 = vst [vmem:[%s93 + $0x18] sm:$0xff] %v100
            %v102 = vld [vmem:[%s92 + $0x38] sm:$0xff]
            %103 = vst [vmem:[%s93 + $0x20] sm:$0xff] %v102
            %v104 = vld [vmem:[%s92 + $0x40] sm:$0xff]
            %105 = vst [vmem:[%s93 + $0x28] sm:$0xff] %v104
            %v106 = vld [vmem:[%s92 + $0x60] sm:$0xff]
            %107 = vst [vmem:[%s93 + $0x30] sm:$0xff] %v106
            %v108 = vld [vmem:[%s92 + $0x68] sm:$0xff]
            %109 = vst [vmem:[%s93 + $0x38] sm:$0xff] %v108
            %v110 = vld [vmem:[%s92 + $0x70] sm:$0xff]
            %111 = vst [vmem:[%s93 + $0x40] sm:$0xff] %v110
            %v112 = vld [vmem:[%s92 + $0x90] sm:$0xff]
            %113 = vst [vmem:[%s93 + $0x48] sm:$0xff] %v112
            %v114 = vld [vmem:[%s92 + $0x98] sm:$0xff]
            %115 = vst [vmem:[%s93 + $0x50] sm:$0xff] %v114
            %v116 = vld [vmem:[%s92 + $0xa0] sm:$0xff]
            %117 = vst [vmem:[%s93 + $0x58] sm:$0xff] %v116
            %v118 = vld [vmem:[%s92 + $0xc0] sm:$0xff]
            %119 = vst [vmem:[%s93 + $0x60] sm:$0xff] %v118
            %v120 = vld [vmem:[%s92 + $0xc8] sm:$0xff]
            %121 = vst [vmem:[%s93 + $0x68] sm:$0xff] %v120
            %v122 = vld [vmem:[%s92 + $0xd0] sm:$0xff]
            %123 = vst [vmem:[%s93 + $0x70] sm:$0xff] %v122
            %v124 = vld [vmem:[%s92 + $0xf0] sm:$0xff]
            %125 = vst [vmem:[%s93 + $0x78] sm:$0xff] %v124
            %v126 = vld [vmem:[%s92 + $0xf8] sm:$0xff]
            %127 = vst [vmem:[%s93 + $0x80] sm:$0xff] %v126
            %v128 = vld [vmem:[%s92 + $0x100] sm:$0xff]
            %129 = vst [vmem:[%s93 + $0x88] sm:$0xff] %v128
            %v130 = vld [vmem:[%s92 + $0x120] sm:$0xff]
            %131 = vst [vmem:[%s93 + $0x90] sm:$0xff] %v130
            %v132 = vld [vmem:[%s92 + $0x128] sm:$0xff]
            %133 = vst [vmem:[%s93 + $0x98] sm:$0xff] %v132
            %v134 = vld [vmem:[%s92 + $0x130] sm:$0xff]
            %135 = vst [vmem:[%s93 + $0xa0] sm:$0xff] %v134
            %v136 = vld [vmem:[%s92 + $0x150] sm:$0xff]
            %137 = vst [vmem:[%s93 + $0xa8] sm:$0xff] %v136
            %v138 = vld [vmem:[%s92 + $0x158] sm:$0xff]
            %139 = vst [vmem:[%s93 + $0xb0] sm:$0xff] %v138
            %v140 = vld [vmem:[%s92 + $0x160] sm:$0xff]
            %141 = vst [vmem:[%s93 + $0xb8] sm:$0xff] %v140
          $region41: #{encoder_forward.3} parent=35 // loop_footer
            %s91 = sadd.s32 1, %s87
          $region42: #{encoder_forward.3} parent=35 // loop_footer_branch
            %86 = sbr.rel target = $region38
          $region43: #{encoder_forward.3} parent=35 // loop_exit
            _
        $region36: #{encoder_forward.3} parent=31 // pred_fallthru
          _
        // Predicated region
        $region44: #{encoder_forward.3} parent=31 // pred_check
          _
        $region45: #{encoder_forward.3} parent=31 // pred_check_branch
          %143 = sbr.rel target = $region47
        $region46: #{encoder_forward.3} parent=31 // pred_region
          _
        $region47: #{encoder_forward.3} parent=31 // pred_fallthru
          _
      $region32: #{encoder_forward.3} parent=27 // pred_fallthru
        _
      %144 = vnop
    $region28: #{encoder_forward.3} parent=1 // pred_fallthru
      _
    // Predicated region
    $region48: #{encoder_forward.3} parent=1 // pred_check
      _
    $region49: #{encoder_forward.3} parent=1 // pred_check_branch
      %146 = sbr.rel (0) target = $region51
    $region50: #{encoder_forward.3} parent=1 // pred_region
      _
    $region51: #{encoder_forward.3} parent=1 // pred_fallthru
      _
    // Predicated region
    $region52: #{encoder_forward.3} parent=1 // pred_check
      _
    $region53: #{encoder_forward.3} parent=1 // pred_check_branch
      %148 = sbr.rel (0) target = $region55
    $region54: #{encoder_forward.3} parent=1 // pred_region
      _
    $region55: #{encoder_forward.3} parent=1 // pred_fallthru
      _
    // Predicated region
    $region56: #{encoder_forward.3} parent=1 // pred_check
      _
    $region57: #{encoder_forward.3} parent=1 // pred_check_branch
      %150 = sbr.rel (0) target = $region59
    $region58: #{encoder_forward.3} parent=1 // pred_region
      _
    $region59: #{encoder_forward.3} parent=1 // pred_fallthru
      _
    // Predicated region
    $region60: #{encoder_forward.3} parent=1 // pred_check
      _
    $region61: #{encoder_forward.3} parent=1 // pred_check_branch
      %152 = sbr.rel (0) target = $region63
    $region62: #{encoder_forward.3} parent=1 // pred_region
      _
    $region63: #{encoder_forward.3} parent=1 // pred_fallthru
      _
    %s153 = ssub.s32 0, 0
    %s154 = smul.u32 8, %s153
    %p155 = scmp.eq.s32.totalorder 0, 0
    // Predicated region
    $region64: #{encoder_forward.3} parent=1 // pred_check
      %p156 = pneg %p155
    $region65: #{encoder_forward.3} parent=1 // pred_check_branch
      %158 = sbr.rel (%p156) target = $region67
    $region66: #{encoder_forward.3} parent=1 // pred_region
      %159 = vst [vmem:[#allocation2] sm:$0xff] 0.0
      %160 = vst [vmem:[#allocation3] sm:$0xff] 0.0
      %161 = vst [vmem:[#allocation4] sm:$0xff] 0.0
    $region67: #{encoder_forward.3} parent=1 // pred_fallthru
      _
    %v162 = vld [vmem:[%s2] sm:$0xff]
    %v163 = vld [vmem:[%s2 + $0x8] sm:$0xff]
    %v164 = vld [vmem:[%s2 + $0x10] sm:$0xff]
    %v165 = vld [vmem:[%s2 + $0x18] sm:$0xff]
    %v166 = vld [vmem:[%s2 + $0x20] sm:$0xff]
    %v167 = vld [vmem:[%s2 + $0x28] sm:$0xff]
    %v168 = vld [vmem:[%s2 + $0x30] sm:$0xff]
    %v169 = vld [vmem:[%s2 + $0x38] sm:$0xff]
    %v170 = vld [vmem:[%s2 + $0x40] sm:$0xff]
    %v171 = vld [vmem:[%s2 + $0x48] sm:$0xff]
    %v172 = vld [vmem:[%s2 + $0x50] sm:$0xff]
    %v173 = vld [vmem:[%s2 + $0x58] sm:$0xff]
    %v174 = vld [vmem:[%s2 + $0x60] sm:$0xff]
    %v175 = vld [vmem:[%s2 + $0x68] sm:$0xff]
    %v176 = vld [vmem:[%s2 + $0x70] sm:$0xff]
    %v177 = vld [vmem:[%s2 + $0x78] sm:$0xff]
    %v178 = vld [vmem:[%s2 + $0x80] sm:$0xff]
    %v179 = vld [vmem:[%s2 + $0x88] sm:$0xff]
    %v180 = vld [vmem:[%s2 + $0x90] sm:$0xff]
    %v181 = vld [vmem:[%s2 + $0x98] sm:$0xff]
    %v182 = vld [vmem:[%s2 + $0xa0] sm:$0xff]
    %v183 = vld [vmem:[%s2 + $0xa8] sm:$0xff]
    %v184 = vld [vmem:[%s2 + $0xb0] sm:$0xff]
    %v185 = vld [vmem:[%s2 + $0xb8] sm:$0xff]
    %v186 = vld [vmem:[%s2 + $0xc0] sm:$0xff]
    %v187 = vld [vmem:[%s2 + $0xc8] sm:$0xff]
    %v188 = vld [vmem:[%s2 + $0xd0] sm:$0xff]
    %v189 = vld [vmem:[%s2 + $0xd8] sm:$0xff]
    %v190 = vld [vmem:[%s2 + $0xe0] sm:$0xff]
    %v191 = vld [vmem:[%s2 + $0xe8] sm:$0xff]
    %v192 = vld [vmem:[%s2 + $0xf0] sm:$0xff]
    %v193 = vld [vmem:[%s2 + $0xf8] sm:$0xff]
    %v194 = vld [vmem:[%s2 + $0x100] sm:$0xff]
    %v195 = vld [vmem:[%s2 + $0x108] sm:$0xff]
    %v196 = vld [vmem:[%s2 + $0x110] sm:$0xff]
    %v197 = vld [vmem:[%s2 + $0x118] sm:$0xff]
    %v198 = vld [vmem:[%s2 + $0x120] sm:$0xff]
    %v199 = vld [vmem:[%s2 + $0x128] sm:$0xff]
    %v200 = vld [vmem:[%s2 + $0x130] sm:$0xff]
    %v201 = vld [vmem:[%s2 + $0x138] sm:$0xff]
    %v202 = vld [vmem:[%s2 + $0x140] sm:$0xff]
    %v203 = vld [vmem:[%s2 + $0x148] sm:$0xff]
    %v204 = vld [vmem:[%s2 + $0x150] sm:$0xff]
    %v205 = vld [vmem:[%s2 + $0x158] sm:$0xff]
    %v206 = vld [vmem:[%s2 + $0x160] sm:$0xff]
    %v207 = vld [vmem:[%s2 + $0x168] sm:$0xff]
    %v208 = vld [vmem:[%s2 + $0x170] sm:$0xff]
    %v209 = vld [vmem:[%s2 + $0x178] sm:$0xff]
    %s210 = scalar_lea.vmem %s2, 384
    %v211 = vld [vmem:[%s210] sm:$0xff]
    %v212 = vld [vmem:[%s210 + $0x8] sm:$0xff]
    %v213 = vld [vmem:[%s210 + $0x10] sm:$0xff]
    %v214 = vld [vmem:[%s210 + $0x18] sm:$0xff]
    %v215 = vld [vmem:[%s210 + $0x20] sm:$0xff]
    %v216 = vld [vmem:[%s210 + $0x28] sm:$0xff]
    %v217 = vld [vmem:[%s210 + $0x30] sm:$0xff]
    %v218 = vld [vmem:[%s210 + $0x38] sm:$0xff]
    %v219 = vld [vmem:[%s210 + $0x40] sm:$0xff]
    %v220 = vld [vmem:[%s210 + $0x48] sm:$0xff]
    %v221 = vld [vmem:[%s210 + $0x50] sm:$0xff]
    %v222 = vld [vmem:[%s210 + $0x58] sm:$0xff]
    %v223 = vld [vmem:[%s210 + $0x60] sm:$0xff]
    %v224 = vld [vmem:[%s210 + $0x68] sm:$0xff]
    %v225 = vld [vmem:[%s210 + $0x70] sm:$0xff]
    %v226 = vld [vmem:[%s210 + $0x78] sm:$0xff]
    %v227 = vld [vmem:[%s210 + $0x80] sm:$0xff]
    %v228 = vld [vmem:[%s210 + $0x88] sm:$0xff]
    %v229 = vld [vmem:[%s210 + $0x90] sm:$0xff]
    %v230 = vld [vmem:[%s210 + $0x98] sm:$0xff]
    %v231 = vld [vmem:[%s210 + $0xa0] sm:$0xff]
    %v232 = vld [vmem:[%s210 + $0xa8] sm:$0xff]
    %v233 = vld [vmem:[%s210 + $0xb0] sm:$0xff]
    %v234 = vld [vmem:[%s210 + $0xb8] sm:$0xff]
    %v235 = vld [vmem:[%s210 + $0xc0] sm:$0xff]
    %v236 = vld [vmem:[%s210 + $0xc8] sm:$0xff]
    %v237 = vld [vmem:[%s210 + $0xd0] sm:$0xff]
    %v238 = vld [vmem:[%s210 + $0xd8] sm:$0xff]
    %v239 = vld [vmem:[%s210 + $0xe0] sm:$0xff]
    %v240 = vld [vmem:[%s210 + $0xe8] sm:$0xff]
    %v241 = vld [vmem:[%s210 + $0xf0] sm:$0xff]
    %v242 = vld [vmem:[%s210 + $0xf8] sm:$0xff]
    %v243 = vld [vmem:[%s210 + $0x100] sm:$0xff]
    %v244 = vld [vmem:[%s210 + $0x108] sm:$0xff]
    %v245 = vld [vmem:[%s210 + $0x110] sm:$0xff]
    %v246 = vld [vmem:[%s210 + $0x118] sm:$0xff]
    %v247 = vld [vmem:[%s210 + $0x120] sm:$0xff]
    %v248 = vld [vmem:[%s210 + $0x128] sm:$0xff]
    %v249 = vld [vmem:[%s210 + $0x130] sm:$0xff]
    %v250 = vld [vmem:[%s210 + $0x138] sm:$0xff]
    %v251 = vld [vmem:[%s210 + $0x140] sm:$0xff]
    %v252 = vld [vmem:[%s210 + $0x148] sm:$0xff]
    %v253 = vld [vmem:[%s210 + $0x150] sm:$0xff]
    %v254 = vld [vmem:[%s210 + $0x158] sm:$0xff]
    %v255 = vld [vmem:[%s210 + $0x160] sm:$0xff]
    %v256 = vld [vmem:[%s210 + $0x168] sm:$0xff]
    %v257 = vld [vmem:[%s210 + $0x170] sm:$0xff]
    %v258 = vld [vmem:[%s210 + $0x178] sm:$0xff]
    %v259 = vld [vmem:[%s3] sm:$0x1]
    %s260 = scalar_lea.vmem %s3, 1
    %v261 = vld [vmem:[%s260] sm:$0x1]
    %v262 = vld [vmem:[#allocation2] sm:$0xff]
    %v263 = vld [vmem:[#allocation3] sm:$0xff]
    %v264 = vld [vmem:[#allocation5] sm:$0xff]
    %v265 = vld [vmem:[#allocation5 + $0x8] sm:$0xff]
    %v266 = vld [vmem:[#allocation5 + $0x10] sm:$0xff]
    %267 = vmatprep.subr.mxu0 %v208
    %268 = vmatpush1.msra.mxu0 %v207
    %269 = vmatprep.subr.mxu0 %v205
    %270 = vmatpush1.msra.mxu0 %v204
    %271 = vmatprep.subr.mxu0 %v202
    %272 = vmatpush1.msra.mxu0 %v201
    %273 = vmatprep.subr.mxu0 %v199
    %274 = vmatpush1.msra.mxu0 %v198
    %275 = vmatprep.subr.mxu0 %v196
    %276 = vmatpush1.msra.mxu0 %v195
    %277 = vmatprep.subr.mxu0 %v193
    %278 = vmatpush1.msra.mxu0 %v192
    %279 = vmatprep.subr.mxu0 %v190
    %280 = vmatpush1.msra.mxu0 %v189
    %281 = vmatprep.subr.mxu0 %v187
    %282 = vmatpush1.msra.mxu0 %v186
    %283 = vmatprep.subr.mxu0 %v184
    %284 = vmatpush1.msra.mxu0 %v183
    %285 = vmatprep.subr.mxu0 %v181
    %286 = vmatpush1.msra.mxu0 %v180
    %287 = vmatprep.subr.mxu0 %v178
    %288 = vmatpush1.msra.mxu0 %v177
    %289 = vmatprep.subr.mxu0 %v175
    %290 = vmatpush1.msra.mxu0 %v174
    %291 = vmatprep.subr.mxu0 %v172
    %292 = vmatpush1.msra.mxu0 %v171
    %293 = vmatprep.subr.mxu0 %v169
    %294 = vmatpush1.msra.mxu0 %v168
    %295 = vmatprep.subr.mxu0 %v166
    %296 = vmatpush1.msra.mxu0 %v165
    %297 = vmatprep.subr.mxu0 %v163
    %298 = vmatpush1.msra.mxu0 %v162
    %299 = vmatprep.subr.mxu0 0.0
    %300 = vmatpush2.msra.mxu0 0.0
    %301 = vmatprep.subr.mxu0 0.0
    %302 = vmatpush2.msra.mxu0 0.0
    %303 = vmatprep.subr.mxu0 0.0
    %304 = vmatpush2.msra.mxu0 0.0
    %305 = vmatprep.subr.mxu0 0.0
    %306 = vmatpush2.msra.mxu0 0.0
    %307 = vmatprep.subr.mxu0 0.0
    %308 = vmatpush2.msra.mxu0 0.0
    %309 = vmatprep.subr.mxu0 0.0
    %310 = vmatpush2.msra.mxu0 0.0
    %311 = vmatprep.subr.mxu0 0.0
    %312 = vmatpush2.msra.mxu0 0.0
    %313 = vmatprep.subr.mxu0 0.0
    %314 = vmatpush2.msra.mxu0 0.0
    %315 = vmatprep.subr.mxu0 0.0
    %316 = vmatpush2.msra.mxu0 0.0
    %317 = vmatprep.subr.mxu0 0.0
    %318 = vmatpush2.msra.mxu0 0.0
    %319 = vmatprep.subr.mxu0 0.0
    %320 = vmatpush2.msra.mxu0 0.0
    %321 = vmatprep.subr.mxu0 0.0
    %322 = vmatpush2.msra.mxu0 0.0
    %323 = vmatprep.subr.mxu0 0.0
    %324 = vmatpush2.msra.mxu0 0.0
    %325 = vmatprep.subr.mxu0 0.0
    %326 = vmatpush2.msra.mxu0 0.0
    %327 = vmatprep.subr.mxu0 0.0
    %328 = vmatpush2.msra.mxu0 0.0
    %329 = vmatprep.subr.mxu0 0.0
    %330 = vmatpush2.msra.mxu0 0.0
    %331 = vmatprep.mubr.f32.mxu0 0.0
    %332 = vmatmul.mubr.f32.gmra.mxu0 %v262
    %v333 = vpop.f32.mrf.mxu0
    %v334 = vadd.f32 0.0, %v333
    %v335 = vpop.f32.mrf.mxu0
    %v336 = vadd.f32 0.0, %v335
    %337 = vdwg.mxu0
    %338 = vmatprep.subr.mxu0 0.0
    %339 = vmatpush1.msra.mxu0 %v209
    %340 = vmatprep.subr.mxu0 0.0
    %341 = vmatpush1.msra.mxu0 %v206
    %342 = vmatprep.subr.mxu0 0.0
    %343 = vmatpush1.msra.mxu0 %v203
    %344 = vmatprep.subr.mxu0 0.0
    %345 = vmatpush1.msra.mxu0 %v200
    %346 = vmatprep.subr.mxu0 0.0
    %347 = vmatpush1.msra.mxu0 %v197
    %348 = vmatprep.subr.mxu0 0.0
    %349 = vmatpush1.msra.mxu0 %v194
    %350 = vmatprep.subr.mxu0 0.0
    %351 = vmatpush1.msra.mxu0 %v191
    %352 = vmatprep.subr.mxu0 0.0
    %353 = vmatpush1.msra.mxu0 %v188
    %354 = vmatprep.subr.mxu0 0.0
    %355 = vmatpush1.msra.mxu0 %v185
    %356 = vmatprep.subr.mxu0 0.0
    %357 = vmatpush1.msra.mxu0 %v182
    %358 = vmatprep.subr.mxu0 0.0
    %359 = vmatpush1.msra.mxu0 %v179
    %360 = vmatprep.subr.mxu0 0.0
    %361 = vmatpush1.msra.mxu0 %v176
    %362 = vmatprep.subr.mxu0 0.0
    %363 = vmatpush1.msra.mxu0 %v173
    %364 = vmatprep.subr.mxu0 0.0
    %365 = vmatpush1.msra.mxu0 %v170
    %366 = vmatprep.subr.mxu0 0.0
    %367 = vmatpush1.msra.mxu0 %v167
    %368 = vmatprep.subr.mxu0 0.0
    %369 = vmatpush1.msra.mxu0 %v164
    %370 = vmatprep.subr.mxu0 0.0
    %371 = vmatpush2.msra.mxu0 0.0
    %372 = vmatprep.subr.mxu0 0.0
    %373 = vmatpush2.msra.mxu0 0.0
    %374 = vmatprep.subr.mxu0 0.0
    %375 = vmatpush2.msra.mxu0 0.0
    %376 = vmatprep.subr.mxu0 0.0
    %377 = vmatpush2.msra.mxu0 0.0
    %378 = vmatprep.subr.mxu0 0.0
    %379 = vmatpush2.msra.mxu0 0.0
    %380 = vmatprep.subr.mxu0 0.0
    %381 = vmatpush2.msra.mxu0 0.0
    %382 = vmatprep.subr.mxu0 0.0
    %383 = vmatpush2.msra.mxu0 0.0
    %384 = vmatprep.subr.mxu0 0.0
    %385 = vmatpush2.msra.mxu0 0.0
    %386 = vmatprep.subr.mxu0 0.0
    %387 = vmatpush2.msra.mxu0 0.0
    %388 = vmatprep.subr.mxu0 0.0
    %389 = vmatpush2.msra.mxu0 0.0
    %390 = vmatprep.subr.mxu0 0.0
    %391 = vmatpush2.msra.mxu0 0.0
    %392 = vmatprep.subr.mxu0 0.0
    %393 = vmatpush2.msra.mxu0 0.0
    %394 = vmatprep.subr.mxu0 0.0
    %395 = vmatpush2.msra.mxu0 0.0
    %396 = vmatprep.subr.mxu0 0.0
    %397 = vmatpush2.msra.mxu0 0.0
    %398 = vmatprep.subr.mxu0 0.0
    %399 = vmatpush2.msra.mxu0 0.0
    %400 = vmatprep.subr.mxu0 0.0
    %401 = vmatpush2.msra.mxu0 0.0
    %402 = vmatprep.mubr.f32.mxu0 0.0
    %403 = vmatmul.mubr.f32.gmra.mxu0 %v262
    %v404 = vpop.f32.mrf.mxu0
    %v405 = vadd.f32 0.0, %v404
    %v406 = vpop.f32.mrf.mxu0
    %407 = vdwg.mxu0
    %v408 = vadd.f32 %v264, %v334
    %v409 = vadd.f32 %v265, %v336
    %v410 = vxor.u32 %v408, 2147483648
    %v411 = vxor.u32 %v409, 2147483648
    %v412 = vmul.f32 %v410, 1.442695
    %v413 = vpow.pop %v412
    %v414 = vmul.f32 %v411, 1.442695
    %v415 = vpow.pop %v414
    %v416 = vadd.f32 %v413, 1.0
    %v417 = vadd.f32 %v415, 1.0
    %v418 = vrcp.pop %v416
    %v419 = vmul.f32 1.0, %v418
    %v420 = vrcp.pop %v417
    %v421 = vmul.f32 1.0, %v420
    %v423 = vlaneseq
    %v424 = vshrl.u32 %v423, 7
    %v425 = vsub.s32 0, %v424
    %v426 = vrot.slane %v259, %v425
    %v428 = vadd.f32 %v405, %v426
    %v429 = vmul.f32 %v419, %v428
    %v430 = vadd.f32 %v266, %v429
    %v431 = vtanh.pop %v430
    %v432 = vsub.f32 1.0, %v421
    %v433 = vmul.f32 %v432, %v431
    %v434 = vmul.f32 %v421, %v262
    %v435 = vadd.f32 %v433, %v434
    %s436 = scalar_lea.vmem [#allocation6], 168
    %v437 = vld [vmem:[%s436] sm:$0xff]
    %v438 = vld [vmem:[%s436 + $0x8] sm:$0xff]
    %v439 = vld [vmem:[%s436 + $0x10] sm:$0xff]
    %440 = vmatprep.subr.mxu0 %v257
    %441 = vmatpush1.msra.mxu0 %v256
    %442 = vmatprep.subr.mxu0 %v254
    %443 = vmatpush1.msra.mxu0 %v253
    %444 = vmatprep.subr.mxu0 %v251
    %445 = vmatpush1.msra.mxu0 %v250
    %446 = vmatprep.subr.mxu0 %v248
    %447 = vmatpush1.msra.mxu0 %v247
    %448 = vmatprep.subr.mxu0 %v245
    %449 = vmatpush1.msra.mxu0 %v244
    %450 = vmatprep.subr.mxu0 %v242
    %451 = vmatpush1.msra.mxu0 %v241
    %452 = vmatprep.subr.mxu0 %v239
    %453 = vmatpush1.msra.mxu0 %v238
    %454 = vmatprep.subr.mxu0 %v236
    %455 = vmatpush1.msra.mxu0 %v235
    %456 = vmatprep.subr.mxu0 %v233
    %457 = vmatpush1.msra.mxu0 %v232
    %458 = vmatprep.subr.mxu0 %v230
    %459 = vmatpush1.msra.mxu0 %v229
    %460 = vmatprep.subr.mxu0 %v227
    %461 = vmatpush1.msra.mxu0 %v226
    %462 = vmatprep.subr.mxu0 %v224
    %463 = vmatpush1.msra.mxu0 %v223
    %464 = vmatprep.subr.mxu0 %v221
    %465 = vmatpush1.msra.mxu0 %v220
    %466 = vmatprep.subr.mxu0 %v218
    %467 = vmatpush1.msra.mxu0 %v217
    %468 = vmatprep.subr.mxu0 %v215
    %469 = vmatpush1.msra.mxu0 %v214
    %470 = vmatprep.subr.mxu0 %v212
    %471 = vmatpush1.msra.mxu0 %v211
    %472 = vmatprep.subr.mxu0 0.0
    %473 = vmatpush2.msra.mxu0 0.0
    %474 = vmatprep.subr.mxu0 0.0
    %475 = vmatpush2.msra.mxu0 0.0
    %476 = vmatprep.subr.mxu0 0.0
    %477 = vmatpush2.msra.mxu0 0.0
    %478 = vmatprep.subr.mxu0 0.0
    %479 = vmatpush2.msra.mxu0 0.0
    %480 = vmatprep.subr.mxu0 0.0
    %481 = vmatpush2.msra.mxu0 0.0
    %482 = vmatprep.subr.mxu0 0.0
    %483 = vmatpush2.msra.mxu0 0.0
    %484 = vmatprep.subr.mxu0 0.0
    %485 = vmatpush2.msra.mxu0 0.0
    %486 = vmatprep.subr.mxu0 0.0
    %487 = vmatpush2.msra.mxu0 0.0
    %488 = vmatprep.subr.mxu0 0.0
    %489 = vmatpush2.msra.mxu0 0.0
    %490 = vmatprep.subr.mxu0 0.0
    %491 = vmatpush2.msra.mxu0 0.0
    %492 = vmatprep.subr.mxu0 0.0
    %493 = vmatpush2.msra.mxu0 0.0
    %494 = vmatprep.subr.mxu0 0.0
    %495 = vmatpush2.msra.mxu0 0.0
    %496 = vmatprep.subr.mxu0 0.0
    %497 = vmatpush2.msra.mxu0 0.0
    %498 = vmatprep.subr.mxu0 0.0
    %499 = vmatpush2.msra.mxu0 0.0
    %500 = vmatprep.subr.mxu0 0.0
    %501 = vmatpush2.msra.mxu0 0.0
    %502 = vmatprep.subr.mxu0 0.0
    %503 = vmatpush2.msra.mxu0 0.0
    %504 = vmatprep.mubr.f32.mxu0 0.0
    %505 = vmatmul.mubr.f32.gmra.mxu0 %v263
    %v506 = vpop.f32.mrf.mxu0
    %v507 = vadd.f32 0.0, %v506
    %v508 = vpop.f32.mrf.mxu0
    %v509 = vadd.f32 0.0, %v508
    %510 = vdwg.mxu0
    %511 = vmatprep.subr.mxu0 0.0
    %512 = vmatpush1.msra.mxu0 %v258
    %513 = vmatprep.subr.mxu0 0.0
    %514 = vmatpush1.msra.mxu0 %v255
    %515 = vmatprep.subr.mxu0 0.0
    %516 = vmatpush1.msra.mxu0 %v252
    %517 = vmatprep.subr.mxu0 0.0
    %518 = vmatpush1.msra.mxu0 %v249
    %519 = vmatprep.subr.mxu0 0.0
    %520 = vmatpush1.msra.mxu0 %v246
    %521 = vmatprep.subr.mxu0 0.0
    %522 = vmatpush1.msra.mxu0 %v243
    %523 = vmatprep.subr.mxu0 0.0
    %524 = vmatpush1.msra.mxu0 %v240
    %525 = vmatprep.subr.mxu0 0.0
    %526 = vmatpush1.msra.mxu0 %v237
    %527 = vmatprep.subr.mxu0 0.0
    %528 = vmatpush1.msra.mxu0 %v234
    %529 = vmatprep.subr.mxu0 0.0
    %530 = vmatpush1.msra.mxu0 %v231
    %531 = vmatprep.subr.mxu0 0.0
    %532 = vmatpush1.msra.mxu0 %v228
    %533 = vmatprep.subr.mxu0 0.0
    %534 = vmatpush1.msra.mxu0 %v225
    %535 = vmatprep.subr.mxu0 0.0
    %536 = vmatpush1.msra.mxu0 %v222
    %537 = vmatprep.subr.mxu0 0.0
    %538 = vmatpush1.msra.mxu0 %v219
    %539 = vmatprep.subr.mxu0 0.0
    %540 = vmatpush1.msra.mxu0 %v216
    %541 = vmatprep.subr.mxu0 0.0
    %542 = vmatpush1.msra.mxu0 %v213
    %543 = vmatprep.subr.mxu0 0.0
    %544 = vmatpush2.msra.mxu0 0.0
    %545 = vmatprep.subr.mxu0 0.0
    %546 = vmatpush2.msra.mxu0 0.0
    %547 = vmatprep.subr.mxu0 0.0
    %548 = vmatpush2.msra.mxu0 0.0
    %549 = vmatprep.subr.mxu0 0.0
    %550 = vmatpush2.msra.mxu0 0.0
    %551 = vmatprep.subr.mxu0 0.0
    %552 = vmatpush2.msra.mxu0 0.0
    %553 = vmatprep.subr.mxu0 0.0
    %554 = vmatpush2.msra.mxu0 0.0
    %555 = vmatprep.subr.mxu0 0.0
    %556 = vmatpush2.msra.mxu0 0.0
    %557 = vmatprep.subr.mxu0 0.0
    %558 = vmatpush2.msra.mxu0 0.0
    %559 = vmatprep.subr.mxu0 0.0
    %560 = vmatpush2.msra.mxu0 0.0
    %561 = vmatprep.subr.mxu0 0.0
    %562 = vmatpush2.msra.mxu0 0.0
    %563 = vmatprep.subr.mxu0 0.0
    %564 = vmatpush2.msra.mxu0 0.0
    %565 = vmatprep.subr.mxu0 0.0
    %566 = vmatpush2.msra.mxu0 0.0
    %567 = vmatprep.subr.mxu0 0.0
    %568 = vmatpush2.msra.mxu0 0.0
    %569 = vmatprep.subr.mxu0 0.0
    %570 = vmatpush2.msra.mxu0 0.0
    %571 = vmatprep.subr.mxu0 0.0
    %572 = vmatpush2.msra.mxu0 0.0
    %573 = vmatprep.subr.mxu0 0.0
    %574 = vmatpush2.msra.mxu0 0.0
    %575 = vmatprep.mubr.f32.mxu0 0.0
    %576 = vmatmul.mubr.f32.gmra.mxu0 %v263
    %v577 = vpop.f32.mrf.mxu0
    %v578 = vadd.f32 0.0, %v577
    %v579 = vpop.f32.mrf.mxu0
    %580 = vdwg.mxu0
    %v581 = vadd.f32 %v437, %v507
    %v582 = vadd.f32 %v438, %v509
    %v583 = vxor.u32 %v581, 2147483648
    %v584 = vxor.u32 %v582, 2147483648
    %v585 = vmul.f32 %v583, 1.442695
    %v586 = vpow.pop %v585
    %v587 = vmul.f32 %v584, 1.442695
    %v588 = vpow.pop %v587
    %v589 = vadd.f32 %v586, 1.0
    %v590 = vadd.f32 %v588, 1.0
    %v591 = vrcp.pop %v589
    %v592 = vmul.f32 1.0, %v591
    %v593 = vrcp.pop %v590
    %v594 = vmul.f32 1.0, %v593
    %v596 = vlaneseq
    %v597 = vshrl.u32 %v596, 7
    %v598 = vsub.s32 0, %v597
    %v599 = vrot.slane %v261, %v598
    %v601 = vadd.f32 %v578, %v599
    %v602 = vmul.f32 %v592, %v601
    %v603 = vadd.f32 %v439, %v602
    %v604 = vtanh.pop %v603
    %v605 = vsub.f32 1.0, %v594
    %v606 = vmul.f32 %v605, %v604
    %v607 = vmul.f32 %v594, %v263
    %v608 = vadd.f32 %v606, %v607
    %v609 = vld [vmem:[#allocation4] sm:$0xff]
    %v610 = vadd.f32 %v609, %v435
    %v611 = vadd.f32 %v610, %v608
    %612 = vst [vmem:[#allocation4] sm:$0xff] %v611
    %613 = vst [vmem:[#allocation2] sm:$0xff] %v435
    %614 = vst [vmem:[#allocation3] sm:$0xff] %v608
    %v615 = vld [vmem:[#allocation2] sm:$0xff]
    %v616 = vld [vmem:[#allocation3] sm:$0xff]
    %s617 = scalar_lea.vmem [#allocation5], 24
    %v618 = vld [vmem:[%s617] sm:$0xff]
    %v619 = vld [vmem:[%s617 + $0x8] sm:$0xff]
    %v620 = vld [vmem:[%s617 + $0x10] sm:$0xff]
    %621 = vmatprep.subr.mxu0 %v208
    %622 = vmatpush1.msra.mxu0 %v207
    %623 = vmatprep.subr.mxu0 %v205
    %624 = vmatpush1.msra.mxu0 %v204
    %625 = vmatprep.subr.mxu0 %v202
    %626 = vmatpush1.msra.mxu0 %v201
    %627 = vmatprep.subr.mxu0 %v199
    %628 = vmatpush1.msra.mxu0 %v198
    %629 = vmatprep.subr.mxu0 %v196
    %630 = vmatpush1.msra.mxu0 %v195
    %631 = vmatprep.subr.mxu0 %v193
    %632 = vmatpush1.msra.mxu0 %v192
    %633 = vmatprep.subr.mxu0 %v190
    %634 = vmatpush1.msra.mxu0 %v189
    %635 = vmatprep.subr.mxu0 %v187
    %636 = vmatpush1.msra.mxu0 %v186
    %637 = vmatprep.subr.mxu0 %v184
    %638 = vmatpush1.msra.mxu0 %v183
    %639 = vmatprep.subr.mxu0 %v181
    %640 = vmatpush1.msra.mxu0 %v180
    %641 = vmatprep.subr.mxu0 %v178
    %642 = vmatpush1.msra.mxu0 %v177
    %643 = vmatprep.subr.mxu0 %v175
    %644 = vmatpush1.msra.mxu0 %v174
    %645 = vmatprep.subr.mxu0 %v172
    %646 = vmatpush1.msra.mxu0 %v171
    %647 = vmatprep.subr.mxu0 %v169
    %648 = vmatpush1.msra.mxu0 %v168
    %649 = vmatprep.subr.mxu0 %v166
    %650 = vmatpush1.msra.mxu0 %v165
    %651 = vmatprep.subr.mxu0 %v163
    %652 = vmatpush1.msra.mxu0 %v162
    %653 = vmatprep.subr.mxu0 0.0
    %654 = vmatpush2.msra.mxu0 0.0
    %655 = vmatprep.subr.mxu0 0.0
    %656 = vmatpush2.msra.mxu0 0.0
    %657 = vmatprep.subr.mxu0 0.0
    %658 = vmatpush2.msra.mxu0 0.0
    %659 = vmatprep.subr.mxu0 0.0
    %660 = vmatpush2.msra.mxu0 0.0
    %661 = vmatprep.subr.mxu0 0.0
    %662 = vmatpush2.msra.mxu0 0.0
    %663 = vmatprep.subr.mxu0 0.0
    %664 = vmatpush2.msra.mxu0 0.0
    %665 = vmatprep.subr.mxu0 0.0
    %666 = vmatpush2.msra.mxu0 0.0
    %667 = vmatprep.subr.mxu0 0.0
    %668 = vmatpush2.msra.mxu0 0.0
    %669 = vmatprep.subr.mxu0 0.0
    %670 = vmatpush2.msra.mxu0 0.0
    %671 = vmatprep.subr.mxu0 0.0
    %672 = vmatpush2.msra.mxu0 0.0
    %673 = vmatprep.subr.mxu0 0.0
    %674 = vmatpush2.msra.mxu0 0.0
    %675 = vmatprep.subr.mxu0 0.0
    %676 = vmatpush2.msra.mxu0 0.0
    %677 = vmatprep.subr.mxu0 0.0
    %678 = vmatpush2.msra.mxu0 0.0
    %679 = vmatprep.subr.mxu0 0.0
    %680 = vmatpush2.msra.mxu0 0.0
    %681 = vmatprep.subr.mxu0 0.0
    %682 = vmatpush2.msra.mxu0 0.0
    %683 = vmatprep.subr.mxu0 0.0
    %684 = vmatpush2.msra.mxu0 0.0
    %685 = vmatprep.mubr.f32.mxu0 0.0
    %686 = vmatmul.mubr.f32.gmra.mxu0 %v615
    %v687 = vpop.f32.mrf.mxu0
    %v688 = vadd.f32 0.0, %v687
    %v689 = vpop.f32.mrf.mxu0
    %v690 = vadd.f32 0.0, %v689
    %691 = vdwg.mxu0
    %692 = vmatprep.subr.mxu0 0.0
    %693 = vmatpush1.msra.mxu0 %v209
    %694 = vmatprep.subr.mxu0 0.0
    %695 = vmatpush1.msra.mxu0 %v206
    %696 = vmatprep.subr.mxu0 0.0
    %697 = vmatpush1.msra.mxu0 %v203
    %698 = vmatprep.subr.mxu0 0.0
    %699 = vmatpush1.msra.mxu0 %v200
    %700 = vmatprep.subr.mxu0 0.0
    %701 = vmatpush1.msra.mxu0 %v197
    %702 = vmatprep.subr.mxu0 0.0
    %703 = vmatpush1.msra.mxu0 %v194
    %704 = vmatprep.subr.mxu0 0.0
    %705 = vmatpush1.msra.mxu0 %v191
    %706 = vmatprep.subr.mxu0 0.0
    %707 = vmatpush1.msra.mxu0 %v188
    %708 = vmatprep.subr.mxu0 0.0
    %709 = vmatpush1.msra.mxu0 %v185
    %710 = vmatprep.subr.mxu0 0.0
    %711 = vmatpush1.msra.mxu0 %v182
    %712 = vmatprep.subr.mxu0 0.0
    %713 = vmatpush1.msra.mxu0 %v179
    %714 = vmatprep.subr.mxu0 0.0
    %715 = vmatpush1.msra.mxu0 %v176
    %716 = vmatprep.subr.mxu0 0.0
    %717 = vmatpush1.msra.mxu0 %v173
    %718 = vmatprep.subr.mxu0 0.0
    %719 = vmatpush1.msra.mxu0 %v170
    %720 = vmatprep.subr.mxu0 0.0
    %721 = vmatpush1.msra.mxu0 %v167
    %722 = vmatprep.subr.mxu0 0.0
    %723 = vmatpush1.msra.mxu0 %v164
    %724 = vmatprep.subr.mxu0 0.0
    %725 = vmatpush2.msra.mxu0 0.0
    %726 = vmatprep.subr.mxu0 0.0
    %727 = vmatpush2.msra.mxu0 0.0
    %728 = vmatprep.subr.mxu0 0.0
    %729 = vmatpush2.msra.mxu0 0.0
    %730 = vmatprep.subr.mxu0 0.0
    %731 = vmatpush2.msra.mxu0 0.0
    %732 = vmatprep.subr.mxu0 0.0
    %733 = vmatpush2.msra.mxu0 0.0
    %734 = vmatprep.subr.mxu0 0.0
    %735 = vmatpush2.msra.mxu0 0.0
    %736 = vmatprep.subr.mxu0 0.0
    %737 = vmatpush2.msra.mxu0 0.0
    %738 = vmatprep.subr.mxu0 0.0
    %739 = vmatpush2.msra.mxu0 0.0
    %740 = vmatprep.subr.mxu0 0.0
    %741 = vmatpush2.msra.mxu0 0.0
    %742 = vmatprep.subr.mxu0 0.0
    %743 = vmatpush2.msra.mxu0 0.0
    %744 = vmatprep.subr.mxu0 0.0
    %745 = vmatpush2.msra.mxu0 0.0
    %746 = vmatprep.subr.mxu0 0.0
    %747 = vmatpush2.msra.mxu0 0.0
    %748 = vmatprep.subr.mxu0 0.0
    %749 = vmatpush2.msra.mxu0 0.0
    %750 = vmatprep.subr.mxu0 0.0
    %751 = vmatpush2.msra.mxu0 0.0
    %752 = vmatprep.subr.mxu0 0.0
    %753 = vmatpush2.msra.mxu0 0.0
    %754 = vmatprep.subr.mxu0 0.0
    %755 = vmatpush2.msra.mxu0 0.0
    %756 = vmatprep.mubr.f32.mxu0 0.0
    %757 = vmatmul.mubr.f32.gmra.mxu0 %v615
    %v758 = vpop.f32.mrf.mxu0
    %v759 = vadd.f32 0.0, %v758
    %v760 = vpop.f32.mrf.mxu0
    %761 = vdwg.mxu0
    %v762 = vadd.f32 %v618, %v688
    %v763 = vadd.f32 %v619, %v690
    %v764 = vxor.u32 %v762, 2147483648
    %v765 = vxor.u32 %v763, 2147483648
    %v766 = vmul.f32 %v764, 1.442695
    %v767 = vpow.pop %v766
    %v768 = vmul.f32 %v765, 1.442695
    %v769 = vpow.pop %v768
    %v770 = vadd.f32 %v767, 1.0
    %v771 = vadd.f32 %v769, 1.0
    %v772 = vrcp.pop %v770
    %v773 = vmul.f32 1.0, %v772
    %v774 = vrcp.pop %v771
    %v775 = vmul.f32 1.0, %v774
    %v776 = vadd.f32 %v759, %v426
    %v777 = vmul.f32 %v773, %v776
    %v778 = vadd.f32 %v620, %v777
    %v779 = vtanh.pop %v778
    %v780 = vsub.f32 1.0, %v775
    %v781 = vmul.f32 %v780, %v779
    %v782 = vmul.f32 %v775, %v615
    %v783 = vadd.f32 %v781, %v782
    %s784 = scalar_lea.vmem [#allocation6], 144
    %v785 = vld [vmem:[%s784] sm:$0xff]
    %v786 = vld [vmem:[%s784 + $0x8] sm:$0xff]
    %v787 = vld [vmem:[%s784 + $0x10] sm:$0xff]
    %788 = vmatprep.subr.mxu0 %v257
    %789 = vmatpush1.msra.mxu0 %v256
    %790 = vmatprep.subr.mxu0 %v254
    %791 = vmatpush1.msra.mxu0 %v253
    %792 = vmatprep.subr.mxu0 %v251
    %793 = vmatpush1.msra.mxu0 %v250
    %794 = vmatprep.subr.mxu0 %v248
    %795 = vmatpush1.msra.mxu0 %v247
    %796 = vmatprep.subr.mxu0 %v245
    %797 = vmatpush1.msra.mxu0 %v244
    %798 = vmatprep.subr.mxu0 %v242
    %799 = vmatpush1.msra.mxu0 %v241
    %800 = vmatprep.subr.mxu0 %v239
    %801 = vmatpush1.msra.mxu0 %v238
    %802 = vmatprep.subr.mxu0 %v236
    %803 = vmatpush1.msra.mxu0 %v235
    %804 = vmatprep.subr.mxu0 %v233
    %805 = vmatpush1.msra.mxu0 %v232
    %806 = vmatprep.subr.mxu0 %v230
    %807 = vmatpush1.msra.mxu0 %v229
    %808 = vmatprep.subr.mxu0 %v227
    %809 = vmatpush1.msra.mxu0 %v226
    %810 = vmatprep.subr.mxu0 %v224
    %811 = vmatpush1.msra.mxu0 %v223
    %812 = vmatprep.subr.mxu0 %v221
    %813 = vmatpush1.msra.mxu0 %v220
    %814 = vmatprep.subr.mxu0 %v218
    %815 = vmatpush1.msra.mxu0 %v217
    %816 = vmatprep.subr.mxu0 %v215
    %817 = vmatpush1.msra.mxu0 %v214
    %818 = vmatprep.subr.mxu0 %v212
    %819 = vmatpush1.msra.mxu0 %v211
    %820 = vmatprep.subr.mxu0 0.0
    %821 = vmatpush2.msra.mxu0 0.0
    %822 = vmatprep.subr.mxu0 0.0
    %823 = vmatpush2.msra.mxu0 0.0
    %824 = vmatprep.subr.mxu0 0.0
    %825 = vmatpush2.msra.mxu0 0.0
    %826 = vmatprep.subr.mxu0 0.0
    %827 = vmatpush2.msra.mxu0 0.0
    %828 = vmatprep.subr.mxu0 0.0
    %829 = vmatpush2.msra.mxu0 0.0
    %830 = vmatprep.subr.mxu0 0.0
    %831 = vmatpush2.msra.mxu0 0.0
    %832 = vmatprep.subr.mxu0 0.0
    %833 = vmatpush2.msra.mxu0 0.0
    %834 = vmatprep.subr.mxu0 0.0
    %835 = vmatpush2.msra.mxu0 0.0
    %836 = vmatprep.subr.mxu0 0.0
    %837 = vmatpush2.msra.mxu0 0.0
    %838 = vmatprep.subr.mxu0 0.0
    %839 = vmatpush2.msra.mxu0 0.0
    %840 = vmatprep.subr.mxu0 0.0
    %841 = vmatpush2.msra.mxu0 0.0
    %842 = vmatprep.subr.mxu0 0.0
    %843 = vmatpush2.msra.mxu0 0.0
    %844 = vmatprep.subr.mxu0 0.0
    %845 = vmatpush2.msra.mxu0 0.0
    %846 = vmatprep.subr.mxu0 0.0
    %847 = vmatpush2.msra.mxu0 0.0
    %848 = vmatprep.subr.mxu0 0.0
    %849 = vmatpush2.msra.mxu0 0.0
    %850 = vmatprep.subr.mxu0 0.0
    %851 = vmatpush2.msra.mxu0 0.0
    %852 = vmatprep.mubr.f32.mxu0 0.0
    %853 = vmatmul.mubr.f32.gmra.mxu0 %v616
    %v854 = vpop.f32.mrf.mxu0
    %v855 = vadd.f32 0.0, %v854
    %v856 = vpop.f32.mrf.mxu0
    %v857 = vadd.f32 0.0, %v856
    %858 = vdwg.mxu0
    %859 = vmatprep.subr.mxu0 0.0
    %860 = vmatpush1.msra.mxu0 %v258
    %861 = vmatprep.subr.mxu0 0.0
    %862 = vmatpush1.msra.mxu0 %v255
    %863 = vmatprep.subr.mxu0 0.0
    %864 = vmatpush1.msra.mxu0 %v252
    %865 = vmatprep.subr.mxu0 0.0
    %866 = vmatpush1.msra.mxu0 %v249
    %867 = vmatprep.subr.mxu0 0.0
    %868 = vmatpush1.msra.mxu0 %v246
    %869 = vmatprep.subr.mxu0 0.0
    %870 = vmatpush1.msra.mxu0 %v243
    %871 = vmatprep.subr.mxu0 0.0
    %872 = vmatpush1.msra.mxu0 %v240
    %873 = vmatprep.subr.mxu0 0.0
    %874 = vmatpush1.msra.mxu0 %v237
    %875 = vmatprep.subr.mxu0 0.0
    %876 = vmatpush1.msra.mxu0 %v234
    %877 = vmatprep.subr.mxu0 0.0
    %878 = vmatpush1.msra.mxu0 %v231
    %879 = vmatprep.subr.mxu0 0.0
    %880 = vmatpush1.msra.mxu0 %v228
    %881 = vmatprep.subr.mxu0 0.0
    %882 = vmatpush1.msra.mxu0 %v225
    %883 = vmatprep.subr.mxu0 0.0
    %884 = vmatpush1.msra.mxu0 %v222
    %885 = vmatprep.subr.mxu0 0.0
    %886 = vmatpush1.msra.mxu0 %v219
    %887 = vmatprep.subr.mxu0 0.0
    %888 = vmatpush1.msra.mxu0 %v216
    %889 = vmatprep.subr.mxu0 0.0
    %890 = vmatpush1.msra.mxu0 %v213
    %891 = vmatprep.subr.mxu0 0.0
    %892 = vmatpush2.msra.mxu0 0.0
    %893 = vmatprep.subr.mxu0 0.0
    %894 = vmatpush2.msra.mxu0 0.0
    %895 = vmatprep.subr.mxu0 0.0
    %896 = vmatpush2.msra.mxu0 0.0
    %897 = vmatprep.subr.mxu0 0.0
    %898 = vmatpush2.msra.mxu0 0.0
    %899 = vmatprep.subr.mxu0 0.0
    %900 = vmatpush2.msra.mxu0 0.0
    %901 = vmatprep.subr.mxu0 0.0
    %902 = vmatpush2.msra.mxu0 0.0
    %903 = vmatprep.subr.mxu0 0.0
    %904 = vmatpush2.msra.mxu0 0.0
    %905 = vmatprep.subr.mxu0 0.0
    %906 = vmatpush2.msra.mxu0 0.0
    %907 = vmatprep.subr.mxu0 0.0
    %908 = vmatpush2.msra.mxu0 0.0
    %909 = vmatprep.subr.mxu0 0.0
    %910 = vmatpush2.msra.mxu0 0.0
    %911 = vmatprep.subr.mxu0 0.0
    %912 = vmatpush2.msra.mxu0 0.0
    %913 = vmatprep.subr.mxu0 0.0
    %914 = vmatpush2.msra.mxu0 0.0
    %915 = vmatprep.subr.mxu0 0.0
    %916 = vmatpush2.msra.mxu0 0.0
    %917 = vmatprep.subr.mxu0 0.0
    %918 = vmatpush2.msra.mxu0 0.0
    %919 = vmatprep.subr.mxu0 0.0
    %920 = vmatpush2.msra.mxu0 0.0
    %921 = vmatprep.subr.mxu0 0.0
    %922 = vmatpush2.msra.mxu0 0.0
    %923 = vmatprep.mubr.f32.mxu0 0.0
    %924 = vmatmul.mubr.f32.gmra.mxu0 %v616
    %v925 = vpop.f32.mrf.mxu0
    %v926 = vadd.f32 0.0, %v925
    %v927 = vpop.f32.mrf.mxu0
    %928 = vdwg.mxu0
    %v929 = vadd.f32 %v785, %v855
    %v930 = vadd.f32 %v786, %v857
    %v931 = vxor.u32 %v929, 2147483648
    %v932 = vxor.u32 %v930, 2147483648
    %v933 = vmul.f32 %v931, 1.442695
    %v934 = vpow.pop %v933
    %v935 = vmul.f32 %v932, 1.442695
    %v936 = vpow.pop %v935
    %v937 = vadd.f32 %v934, 1.0
    %v938 = vadd.f32 %v936, 1.0
    %v939 = vrcp.pop %v937
    %v940 = vmul.f32 1.0, %v939
    %v941 = vrcp.pop %v938
    %v942 = vmul.f32 1.0, %v941
    %v943 = vadd.f32 %v926, %v599
    %v944 = vmul.f32 %v940, %v943
    %v945 = vadd.f32 %v787, %v944
    %v946 = vtanh.pop %v945
    %v947 = vsub.f32 1.0, %v942
    %v948 = vmul.f32 %v947, %v946
    %v949 = vmul.f32 %v942, %v616
    %v950 = vadd.f32 %v948, %v949
    %v951 = vld [vmem:[#allocation4] sm:$0xff]
    %v952 = vadd.f32 %v951, %v783
    %v953 = vadd.f32 %v952, %v950
    %954 = vst [vmem:[#allocation4] sm:$0xff] %v953
    %955 = vst [vmem:[#allocation2] sm:$0xff] %v783
    %956 = vst [vmem:[#allocation3] sm:$0xff] %v950
    %v957 = vld [vmem:[#allocation2] sm:$0xff]
    %v958 = vld [vmem:[#allocation3] sm:$0xff]
    %s959 = scalar_lea.vmem [#allocation5], 48
    %v960 = vld [vmem:[%s959] sm:$0xff]
    %v961 = vld [vmem:[%s959 + $0x8] sm:$0xff]
    %v962 = vld [vmem:[%s959 + $0x10] sm:$0xff]
    %963 = vmatprep.subr.mxu0 %v208
    %964 = vmatpush1.msra.mxu0 %v207
    %965 = vmatprep.subr.mxu0 %v205
    %966 = vmatpush1.msra.mxu0 %v204
    %967 = vmatprep.subr.mxu0 %v202
    %968 = vmatpush1.msra.mxu0 %v201
    %969 = vmatprep.subr.mxu0 %v199
    %970 = vmatpush1.msra.mxu0 %v198
    %971 = vmatprep.subr.mxu0 %v196
    %972 = vmatpush1.msra.mxu0 %v195
    %973 = vmatprep.subr.mxu0 %v193
    %974 = vmatpush1.msra.mxu0 %v192
    %975 = vmatprep.subr.mxu0 %v190
    %976 = vmatpush1.msra.mxu0 %v189
    %977 = vmatprep.subr.mxu0 %v187
    %978 = vmatpush1.msra.mxu0 %v186
    %979 = vmatprep.subr.mxu0 %v184
    %980 = vmatpush1.msra.mxu0 %v183
    %981 = vmatprep.subr.mxu0 %v181
    %982 = vmatpush1.msra.mxu0 %v180
    %983 = vmatprep.subr.mxu0 %v178
    %984 = vmatpush1.msra.mxu0 %v177
    %985 = vmatprep.subr.mxu0 %v175
    %986 = vmatpush1.msra.mxu0 %v174
    %987 = vmatprep.subr.mxu0 %v172
    %988 = vmatpush1.msra.mxu0 %v171
    %989 = vmatprep.subr.mxu0 %v169
    %990 = vmatpush1.msra.mxu0 %v168
    %991 = vmatprep.subr.mxu0 %v166
    %992 = vmatpush1.msra.mxu0 %v165
    %993 = vmatprep.subr.mxu0 %v163
    %994 = vmatpush1.msra.mxu0 %v162
    %995 = vmatprep.subr.mxu0 0.0
    %996 = vmatpush2.msra.mxu0 0.0
    %997 = vmatprep.subr.mxu0 0.0
    %998 = vmatpush2.msra.mxu0 0.0
    %999 = vmatprep.subr.mxu0 0.0
    %1000 = vmatpush2.msra.mxu0 0.0
    %1001 = vmatprep.subr.mxu0 0.0
    %1002 = vmatpush2.msra.mxu0 0.0
    %1003 = vmatprep.subr.mxu0 0.0
    %1004 = vmatpush2.msra.mxu0 0.0
    %1005 = vmatprep.subr.mxu0 0.0
    %1006 = vmatpush2.msra.mxu0 0.0
    %1007 = vmatprep.subr.mxu0 0.0
    %1008 = vmatpush2.msra.mxu0 0.0
    %1009 = vmatprep.subr.mxu0 0.0
    %1010 = vmatpush2.msra.mxu0 0.0
    %1011 = vmatprep.subr.mxu0 0.0
    %1012 = vmatpush2.msra.mxu0 0.0
    %1013 = vmatprep.subr.mxu0 0.0
    %1014 = vmatpush2.msra.mxu0 0.0
    %1015 = vmatprep.subr.mxu0 0.0
    %1016 = vmatpush2.msra.mxu0 0.0
    %1017 = vmatprep.subr.mxu0 0.0
    %1018 = vmatpush2.msra.mxu0 0.0
    %1019 = vmatprep.subr.mxu0 0.0
    %1020 = vmatpush2.msra.mxu0 0.0
    %1021 = vmatprep.subr.mxu0 0.0
    %1022 = vmatpush2.msra.mxu0 0.0
    %1023 = vmatprep.subr.mxu0 0.0
    %1024 = vmatpush2.msra.mxu0 0.0
    %1025 = vmatprep.subr.mxu0 0.0
    %1026 = vmatpush2.msra.mxu0 0.0
    %1027 = vmatprep.mubr.f32.mxu0 0.0
    %1028 = vmatmul.mubr.f32.gmra.mxu0 %v957
    %v1029 = vpop.f32.mrf.mxu0
    %v1030 = vadd.f32 0.0, %v1029
    %v1031 = vpop.f32.mrf.mxu0
    %v1032 = vadd.f32 0.0, %v1031
    %1033 = vdwg.mxu0
    %1034 = vmatprep.subr.mxu0 0.0
    %1035 = vmatpush1.msra.mxu0 %v209
    %1036 = vmatprep.subr.mxu0 0.0
    %1037 = vmatpush1.msra.mxu0 %v206
    %1038 = vmatprep.subr.mxu0 0.0
    %1039 = vmatpush1.msra.mxu0 %v203
    %1040 = vmatprep.subr.mxu0 0.0
    %1041 = vmatpush1.msra.mxu0 %v200
    %1042 = vmatprep.subr.mxu0 0.0
    %1043 = vmatpush1.msra.mxu0 %v197
    %1044 = vmatprep.subr.mxu0 0.0
    %1045 = vmatpush1.msra.mxu0 %v194
    %1046 = vmatprep.subr.mxu0 0.0
    %1047 = vmatpush1.msra.mxu0 %v191
    %1048 = vmatprep.subr.mxu0 0.0
    %1049 = vmatpush1.msra.mxu0 %v188
    %1050 = vmatprep.subr.mxu0 0.0
    %1051 = vmatpush1.msra.mxu0 %v185
    %1052 = vmatprep.subr.mxu0 0.0
    %1053 = vmatpush1.msra.mxu0 %v182
    %1054 = vmatprep.subr.mxu0 0.0
    %1055 = vmatpush1.msra.mxu0 %v179
    %1056 = vmatprep.subr.mxu0 0.0
    %1057 = vmatpush1.msra.mxu0 %v176
    %1058 = vmatprep.subr.mxu0 0.0
    %1059 = vmatpush1.msra.mxu0 %v173
    %1060 = vmatprep.subr.mxu0 0.0
    %1061 = vmatpush1.msra.mxu0 %v170
    %1062 = vmatprep.subr.mxu0 0.0
    %1063 = vmatpush1.msra.mxu0 %v167
    %1064 = vmatprep.subr.mxu0 0.0
    %1065 = vmatpush1.msra.mxu0 %v164
    %1066 = vmatprep.subr.mxu0 0.0
    %1067 = vmatpush2.msra.mxu0 0.0
    %1068 = vmatprep.subr.mxu0 0.0
    %1069 = vmatpush2.msra.mxu0 0.0
    %1070 = vmatprep.subr.mxu0 0.0
    %1071 = vmatpush2.msra.mxu0 0.0
    %1072 = vmatprep.subr.mxu0 0.0
    %1073 = vmatpush2.msra.mxu0 0.0
    %1074 = vmatprep.subr.mxu0 0.0
    %1075 = vmatpush2.msra.mxu0 0.0
    %1076 = vmatprep.subr.mxu0 0.0
    %1077 = vmatpush2.msra.mxu0 0.0
    %1078 = vmatprep.subr.mxu0 0.0
    %1079 = vmatpush2.msra.mxu0 0.0
    %1080 = vmatprep.subr.mxu0 0.0
    %1081 = vmatpush2.msra.mxu0 0.0
    %1082 = vmatprep.subr.mxu0 0.0
    %1083 = vmatpush2.msra.mxu0 0.0
    %1084 = vmatprep.subr.mxu0 0.0
    %1085 = vmatpush2.msra.mxu0 0.0
    %1086 = vmatprep.subr.mxu0 0.0
    %1087 = vmatpush2.msra.mxu0 0.0
    %1088 = vmatprep.subr.mxu0 0.0
    %1089 = vmatpush2.msra.mxu0 0.0
    %1090 = vmatprep.subr.mxu0 0.0
    %1091 = vmatpush2.msra.mxu0 0.0
    %1092 = vmatprep.subr.mxu0 0.0
    %1093 = vmatpush2.msra.mxu0 0.0
    %1094 = vmatprep.subr.mxu0 0.0
    %1095 = vmatpush2.msra.mxu0 0.0
    %1096 = vmatprep.subr.mxu0 0.0
    %1097 = vmatpush2.msra.mxu0 0.0
    %1098 = vmatprep.mubr.f32.mxu0 0.0
    %1099 = vmatmul.mubr.f32.gmra.mxu0 %v957
    %v1100 = vpop.f32.mrf.mxu0
    %v1101 = vadd.f32 0.0, %v1100
    %v1102 = vpop.f32.mrf.mxu0
    %1103 = vdwg.mxu0
    %v1104 = vadd.f32 %v960, %v1030
    %v1105 = vadd.f32 %v961, %v1032
    %v1106 = vxor.u32 %v1104, 2147483648
    %v1107 = vxor.u32 %v1105, 2147483648
    %v1108 = vmul.f32 %v1106, 1.442695
    %v1109 = vpow.pop %v1108
    %v1110 = vmul.f32 %v1107, 1.442695
    %v1111 = vpow.pop %v1110
    %v1112 = vadd.f32 %v1109, 1.0
    %v1113 = vadd.f32 %v1111, 1.0
    %v1114 = vrcp.pop %v1112
    %v1115 = vmul.f32 1.0, %v1114
    %v1116 = vrcp.pop %v1113
    %v1117 = vmul.f32 1.0, %v1116
    %v1118 = vadd.f32 %v1101, %v426
    %v1119 = vmul.f32 %v1115, %v1118
    %v1120 = vadd.f32 %v962, %v1119
    %v1121 = vtanh.pop %v1120
    %v1122 = vsub.f32 1.0, %v1117
    %v1123 = vmul.f32 %v1122, %v1121
    %v1124 = vmul.f32 %v1117, %v957
    %v1125 = vadd.f32 %v1123, %v1124
    %s1126 = scalar_lea.vmem [#allocation6], 120
    %v1127 = vld [vmem:[%s1126] sm:$0xff]
    %v1128 = vld [vmem:[%s1126 + $0x8] sm:$0xff]
    %v1129 = vld [vmem:[%s1126 + $0x10] sm:$0xff]
    %1130 = vmatprep.subr.mxu0 %v257
    %1131 = vmatpush1.msra.mxu0 %v256
    %1132 = vmatprep.subr.mxu0 %v254
    %1133 = vmatpush1.msra.mxu0 %v253
    %1134 = vmatprep.subr.mxu0 %v251
    %1135 = vmatpush1.msra.mxu0 %v250
    %1136 = vmatprep.subr.mxu0 %v248
    %1137 = vmatpush1.msra.mxu0 %v247
    %1138 = vmatprep.subr.mxu0 %v245
    %1139 = vmatpush1.msra.mxu0 %v244
    %1140 = vmatprep.subr.mxu0 %v242
    %1141 = vmatpush1.msra.mxu0 %v241
    %1142 = vmatprep.subr.mxu0 %v239
    %1143 = vmatpush1.msra.mxu0 %v238
    %1144 = vmatprep.subr.mxu0 %v236
    %1145 = vmatpush1.msra.mxu0 %v235
    %1146 = vmatprep.subr.mxu0 %v233
    %1147 = vmatpush1.msra.mxu0 %v232
    %1148 = vmatprep.subr.mxu0 %v230
    %1149 = vmatpush1.msra.mxu0 %v229
    %1150 = vmatprep.subr.mxu0 %v227
    %1151 = vmatpush1.msra.mxu0 %v226
    %1152 = vmatprep.subr.mxu0 %v224
    %1153 = vmatpush1.msra.mxu0 %v223
    %1154 = vmatprep.subr.mxu0 %v221
    %1155 = vmatpush1.msra.mxu0 %v220
    %1156 = vmatprep.subr.mxu0 %v218
    %1157 = vmatpush1.msra.mxu0 %v217
    %1158 = vmatprep.subr.mxu0 %v215
    %1159 = vmatpush1.msra.mxu0 %v214
    %1160 = vmatprep.subr.mxu0 %v212
    %1161 = vmatpush1.msra.mxu0 %v211
    %1162 = vmatprep.subr.mxu0 0.0
    %1163 = vmatpush2.msra.mxu0 0.0
    %1164 = vmatprep.subr.mxu0 0.0
    %1165 = vmatpush2.msra.mxu0 0.0
    %1166 = vmatprep.subr.mxu0 0.0
    %1167 = vmatpush2.msra.mxu0 0.0
    %1168 = vmatprep.subr.mxu0 0.0
    %1169 = vmatpush2.msra.mxu0 0.0
    %1170 = vmatprep.subr.mxu0 0.0
    %1171 = vmatpush2.msra.mxu0 0.0
    %1172 = vmatprep.subr.mxu0 0.0
    %1173 = vmatpush2.msra.mxu0 0.0
    %1174 = vmatprep.subr.mxu0 0.0
    %1175 = vmatpush2.msra.mxu0 0.0
    %1176 = vmatprep.subr.mxu0 0.0
    %1177 = vmatpush2.msra.mxu0 0.0
    %1178 = vmatprep.subr.mxu0 0.0
    %1179 = vmatpush2.msra.mxu0 0.0
    %1180 = vmatprep.subr.mxu0 0.0
    %1181 = vmatpush2.msra.mxu0 0.0
    %1182 = vmatprep.subr.mxu0 0.0
    %1183 = vmatpush2.msra.mxu0 0.0
    %1184 = vmatprep.subr.mxu0 0.0
    %1185 = vmatpush2.msra.mxu0 0.0
    %1186 = vmatprep.subr.mxu0 0.0
    %1187 = vmatpush2.msra.mxu0 0.0
    %1188 = vmatprep.subr.mxu0 0.0
    %1189 = vmatpush2.msra.mxu0 0.0
    %1190 = vmatprep.subr.mxu0 0.0
    %1191 = vmatpush2.msra.mxu0 0.0
    %1192 = vmatprep.subr.mxu0 0.0
    %1193 = vmatpush2.msra.mxu0 0.0
    %1194 = vmatprep.mubr.f32.mxu0 0.0
    %1195 = vmatmul.mubr.f32.gmra.mxu0 %v958
    %v1196 = vpop.f32.mrf.mxu0
    %v1197 = vadd.f32 0.0, %v1196
    %v1198 = vpop.f32.mrf.mxu0
    %v1199 = vadd.f32 0.0, %v1198
    %1200 = vdwg.mxu0
    %1201 = vmatprep.subr.mxu0 0.0
    %1202 = vmatpush1.msra.mxu0 %v258
    %1203 = vmatprep.subr.mxu0 0.0
    %1204 = vmatpush1.msra.mxu0 %v255
    %1205 = vmatprep.subr.mxu0 0.0
    %1206 = vmatpush1.msra.mxu0 %v252
    %1207 = vmatprep.subr.mxu0 0.0
    %1208 = vmatpush1.msra.mxu0 %v249
    %1209 = vmatprep.subr.mxu0 0.0
    %1210 = vmatpush1.msra.mxu0 %v246
    %1211 = vmatprep.subr.mxu0 0.0
    %1212 = vmatpush1.msra.mxu0 %v243
    %1213 = vmatprep.subr.mxu0 0.0
    %1214 = vmatpush1.msra.mxu0 %v240
    %1215 = vmatprep.subr.mxu0 0.0
    %1216 = vmatpush1.msra.mxu0 %v237
    %1217 = vmatprep.subr.mxu0 0.0
    %1218 = vmatpush1.msra.mxu0 %v234
    %1219 = vmatprep.subr.mxu0 0.0
    %1220 = vmatpush1.msra.mxu0 %v231
    %1221 = vmatprep.subr.mxu0 0.0
    %1222 = vmatpush1.msra.mxu0 %v228
    %1223 = vmatprep.subr.mxu0 0.0
    %1224 = vmatpush1.msra.mxu0 %v225
    %1225 = vmatprep.subr.mxu0 0.0
    %1226 = vmatpush1.msra.mxu0 %v222
    %1227 = vmatprep.subr.mxu0 0.0
    %1228 = vmatpush1.msra.mxu0 %v219
    %1229 = vmatprep.subr.mxu0 0.0
    %1230 = vmatpush1.msra.mxu0 %v216
    %1231 = vmatprep.subr.mxu0 0.0
    %1232 = vmatpush1.msra.mxu0 %v213
    %1233 = vmatprep.subr.mxu0 0.0
    %1234 = vmatpush2.msra.mxu0 0.0
    %1235 = vmatprep.subr.mxu0 0.0
    %1236 = vmatpush2.msra.mxu0 0.0
    %1237 = vmatprep.subr.mxu0 0.0
    %1238 = vmatpush2.msra.mxu0 0.0
    %1239 = vmatprep.subr.mxu0 0.0
    %1240 = vmatpush2.msra.mxu0 0.0
    %1241 = vmatprep.subr.mxu0 0.0
    %1242 = vmatpush2.msra.mxu0 0.0
    %1243 = vmatprep.subr.mxu0 0.0
    %1244 = vmatpush2.msra.mxu0 0.0
    %1245 = vmatprep.subr.mxu0 0.0
    %1246 = vmatpush2.msra.mxu0 0.0
    %1247 = vmatprep.subr.mxu0 0.0
    %1248 = vmatpush2.msra.mxu0 0.0
    %1249 = vmatprep.subr.mxu0 0.0
    %1250 = vmatpush2.msra.mxu0 0.0
    %1251 = vmatprep.subr.mxu0 0.0
    %1252 = vmatpush2.msra.mxu0 0.0
    %1253 = vmatprep.subr.mxu0 0.0
    %1254 = vmatpush2.msra.mxu0 0.0
    %1255 = vmatprep.subr.mxu0 0.0
    %1256 = vmatpush2.msra.mxu0 0.0
    %1257 = vmatprep.subr.mxu0 0.0
    %1258 = vmatpush2.msra.mxu0 0.0
    %1259 = vmatprep.subr.mxu0 0.0
    %1260 = vmatpush2.msra.mxu0 0.0
    %1261 = vmatprep.subr.mxu0 0.0
    %1262 = vmatpush2.msra.mxu0 0.0
    %1263 = vmatprep.subr.mxu0 0.0
    %1264 = vmatpush2.msra.mxu0 0.0
    %1265 = vmatprep.mubr.f32.mxu0 0.0
    %1266 = vmatmul.mubr.f32.gmra.mxu0 %v958
    %v1267 = vpop.f32.mrf.mxu0
    %v1268 = vadd.f32 0.0, %v1267
    %v1269 = vpop.f32.mrf.mxu0
    %1270 = vdwg.mxu0
    %v1271 = vadd.f32 %v1127, %v1197
    %v1272 = vadd.f32 %v1128, %v1199
    %v1273 = vxor.u32 %v1271, 2147483648
    %v1274 = vxor.u32 %v1272, 2147483648
    %v1275 = vmul.f32 %v1273, 1.442695
    %v1276 = vpow.pop %v1275
    %v1277 = vmul.f32 %v1274, 1.442695
    %v1278 = vpow.pop %v1277
    %v1279 = vadd.f32 %v1276, 1.0
    %v1280 = vadd.f32 %v1278, 1.0
    %v1281 = vrcp.pop %v1279
    %v1282 = vmul.f32 1.0, %v1281
    %v1283 = vrcp.pop %v1280
    %v1284 = vmul.f32 1.0, %v1283
    %v1285 = vadd.f32 %v1268, %v599
    %v1286 = vmul.f32 %v1282, %v1285
    %v1287 = vadd.f32 %v1129, %v1286
    %v1288 = vtanh.pop %v1287
    %v1289 = vsub.f32 1.0, %v1284
    %v1290 = vmul.f32 %v1289, %v1288
    %v1291 = vmul.f32 %v1284, %v958
    %v1292 = vadd.f32 %v1290, %v1291
    %v1293 = vld [vmem:[#allocation4] sm:$0xff]
    %v1294 = vadd.f32 %v1293, %v1125
    %v1295 = vadd.f32 %v1294, %v1292
    %1296 = vst [vmem:[#allocation4] sm:$0xff] %v1295
    %1297 = vst [vmem:[#allocation2] sm:$0xff] %v1125
    %1298 = vst [vmem:[#allocation3] sm:$0xff] %v1292
    %v1299 = vld [vmem:[#allocation2] sm:$0xff]
    %v1300 = vld [vmem:[#allocation3] sm:$0xff]
    %s1301 = scalar_lea.vmem [#allocation5], 72
    %v1302 = vld [vmem:[%s1301] sm:$0xff]
    %v1303 = vld [vmem:[%s1301 + $0x8] sm:$0xff]
    %v1304 = vld [vmem:[%s1301 + $0x10] sm:$0xff]
    %1305 = vmatprep.subr.mxu0 %v208
    %1306 = vmatpush1.msra.mxu0 %v207
    %1307 = vmatprep.subr.mxu0 %v205
    %1308 = vmatpush1.msra.mxu0 %v204
    %1309 = vmatprep.subr.mxu0 %v202
    %1310 = vmatpush1.msra.mxu0 %v201
    %1311 = vmatprep.subr.mxu0 %v199
    %1312 = vmatpush1.msra.mxu0 %v198
    %1313 = vmatprep.subr.mxu0 %v196
    %1314 = vmatpush1.msra.mxu0 %v195
    %1315 = vmatprep.subr.mxu0 %v193
    %1316 = vmatpush1.msra.mxu0 %v192
    %1317 = vmatprep.subr.mxu0 %v190
    %1318 = vmatpush1.msra.mxu0 %v189
    %1319 = vmatprep.subr.mxu0 %v187
    %1320 = vmatpush1.msra.mxu0 %v186
    %1321 = vmatprep.subr.mxu0 %v184
    %1322 = vmatpush1.msra.mxu0 %v183
    %1323 = vmatprep.subr.mxu0 %v181
    %1324 = vmatpush1.msra.mxu0 %v180
    %1325 = vmatprep.subr.mxu0 %v178
    %1326 = vmatpush1.msra.mxu0 %v177
    %1327 = vmatprep.subr.mxu0 %v175
    %1328 = vmatpush1.msra.mxu0 %v174
    %1329 = vmatprep.subr.mxu0 %v172
    %1330 = vmatpush1.msra.mxu0 %v171
    %1331 = vmatprep.subr.mxu0 %v169
    %1332 = vmatpush1.msra.mxu0 %v168
    %1333 = vmatprep.subr.mxu0 %v166
    %1334 = vmatpush1.msra.mxu0 %v165
    %1335 = vmatprep.subr.mxu0 %v163
    %1336 = vmatpush1.msra.mxu0 %v162
    %1337 = vmatprep.subr.mxu0 0.0
    %1338 = vmatpush2.msra.mxu0 0.0
    %1339 = vmatprep.subr.mxu0 0.0
    %1340 = vmatpush2.msra.mxu0 0.0
    %1341 = vmatprep.subr.mxu0 0.0
    %1342 = vmatpush2.msra.mxu0 0.0
    %1343 = vmatprep.subr.mxu0 0.0
    %1344 = vmatpush2.msra.mxu0 0.0
    %1345 = vmatprep.subr.mxu0 0.0
    %1346 = vmatpush2.msra.mxu0 0.0
    %1347 = vmatprep.subr.mxu0 0.0
    %1348 = vmatpush2.msra.mxu0 0.0
    %1349 = vmatprep.subr.mxu0 0.0
    %1350 = vmatpush2.msra.mxu0 0.0
    %1351 = vmatprep.subr.mxu0 0.0
    %1352 = vmatpush2.msra.mxu0 0.0
    %1353 = vmatprep.subr.mxu0 0.0
    %1354 = vmatpush2.msra.mxu0 0.0
    %1355 = vmatprep.subr.mxu0 0.0
    %1356 = vmatpush2.msra.mxu0 0.0
    %1357 = vmatprep.subr.mxu0 0.0
    %1358 = vmatpush2.msra.mxu0 0.0
    %1359 = vmatprep.subr.mxu0 0.0
    %1360 = vmatpush2.msra.mxu0 0.0
    %1361 = vmatprep.subr.mxu0 0.0
    %1362 = vmatpush2.msra.mxu0 0.0
    %1363 = vmatprep.subr.mxu0 0.0
    %1364 = vmatpush2.msra.mxu0 0.0
    %1365 = vmatprep.subr.mxu0 0.0
    %1366 = vmatpush2.msra.mxu0 0.0
    %1367 = vmatprep.subr.mxu0 0.0
    %1368 = vmatpush2.msra.mxu0 0.0
    %1369 = vmatprep.mubr.f32.mxu0 0.0
    %1370 = vmatmul.mubr.f32.gmra.mxu0 %v1299
    %v1371 = vpop.f32.mrf.mxu0
    %v1372 = vadd.f32 0.0, %v1371
    %v1373 = vpop.f32.mrf.mxu0
    %v1374 = vadd.f32 0.0, %v1373
    %1375 = vdwg.mxu0
    %1376 = vmatprep.subr.mxu0 0.0
    %1377 = vmatpush1.msra.mxu0 %v209
    %1378 = vmatprep.subr.mxu0 0.0
    %1379 = vmatpush1.msra.mxu0 %v206
    %1380 = vmatprep.subr.mxu0 0.0
    %1381 = vmatpush1.msra.mxu0 %v203
    %1382 = vmatprep.subr.mxu0 0.0
    %1383 = vmatpush1.msra.mxu0 %v200
    %1384 = vmatprep.subr.mxu0 0.0
    %1385 = vmatpush1.msra.mxu0 %v197
    %1386 = vmatprep.subr.mxu0 0.0
    %1387 = vmatpush1.msra.mxu0 %v194
    %1388 = vmatprep.subr.mxu0 0.0
    %1389 = vmatpush1.msra.mxu0 %v191
    %1390 = vmatprep.subr.mxu0 0.0
    %1391 = vmatpush1.msra.mxu0 %v188
    %1392 = vmatprep.subr.mxu0 0.0
    %1393 = vmatpush1.msra.mxu0 %v185
    %1394 = vmatprep.subr.mxu0 0.0
    %1395 = vmatpush1.msra.mxu0 %v182
    %1396 = vmatprep.subr.mxu0 0.0
    %1397 = vmatpush1.msra.mxu0 %v179
    %1398 = vmatprep.subr.mxu0 0.0
    %1399 = vmatpush1.msra.mxu0 %v176
    %1400 = vmatprep.subr.mxu0 0.0
    %1401 = vmatpush1.msra.mxu0 %v173
    %1402 = vmatprep.subr.mxu0 0.0
    %1403 = vmatpush1.msra.mxu0 %v170
    %1404 = vmatprep.subr.mxu0 0.0
    %1405 = vmatpush1.msra.mxu0 %v167
    %1406 = vmatprep.subr.mxu0 0.0
    %1407 = vmatpush1.msra.mxu0 %v164
    %1408 = vmatprep.subr.mxu0 0.0
    %1409 = vmatpush2.msra.mxu0 0.0
    %1410 = vmatprep.subr.mxu0 0.0
    %1411 = vmatpush2.msra.mxu0 0.0
    %1412 = vmatprep.subr.mxu0 0.0
    %1413 = vmatpush2.msra.mxu0 0.0
    %1414 = vmatprep.subr.mxu0 0.0
    %1415 = vmatpush2.msra.mxu0 0.0
    %1416 = vmatprep.subr.mxu0 0.0
    %1417 = vmatpush2.msra.mxu0 0.0
    %1418 = vmatprep.subr.mxu0 0.0
    %1419 = vmatpush2.msra.mxu0 0.0
    %1420 = vmatprep.subr.mxu0 0.0
    %1421 = vmatpush2.msra.mxu0 0.0
    %1422 = vmatprep.subr.mxu0 0.0
    %1423 = vmatpush2.msra.mxu0 0.0
    %1424 = vmatprep.subr.mxu0 0.0
    %1425 = vmatpush2.msra.mxu0 0.0
    %1426 = vmatprep.subr.mxu0 0.0
    %1427 = vmatpush2.msra.mxu0 0.0
    %1428 = vmatprep.subr.mxu0 0.0
    %1429 = vmatpush2.msra.mxu0 0.0
    %1430 = vmatprep.subr.mxu0 0.0
    %1431 = vmatpush2.msra.mxu0 0.0
    %1432 = vmatprep.subr.mxu0 0.0
    %1433 = vmatpush2.msra.mxu0 0.0
    %1434 = vmatprep.subr.mxu0 0.0
    %1435 = vmatpush2.msra.mxu0 0.0
    %1436 = vmatprep.subr.mxu0 0.0
    %1437 = vmatpush2.msra.mxu0 0.0
    %1438 = vmatprep.subr.mxu0 0.0
    %1439 = vmatpush2.msra.mxu0 0.0
    %1440 = vmatprep.mubr.f32.mxu0 0.0
    %1441 = vmatmul.mubr.f32.gmra.mxu0 %v1299
    %v1442 = vpop.f32.mrf.mxu0
    %v1443 = vadd.f32 0.0, %v1442
    %v1444 = vpop.f32.mrf.mxu0
    %1445 = vdwg.mxu0
    %v1446 = vadd.f32 %v1302, %v1372
    %v1447 = vadd.f32 %v1303, %v1374
    %v1448 = vxor.u32 %v1446, 2147483648
    %v1449 = vxor.u32 %v1447, 2147483648
    %v1450 = vmul.f32 %v1448, 1.442695
    %v1451 = vpow.pop %v1450
    %v1452 = vmul.f32 %v1449, 1.442695
    %v1453 = vpow.pop %v1452
    %v1454 = vadd.f32 %v1451, 1.0
    %v1455 = vadd.f32 %v1453, 1.0
    %v1456 = vrcp.pop %v1454
    %v1457 = vmul.f32 1.0, %v1456
    %v1458 = vrcp.pop %v1455
    %v1459 = vmul.f32 1.0, %v1458
    %v1460 = vadd.f32 %v1443, %v426
    %v1461 = vmul.f32 %v1457, %v1460
    %v1462 = vadd.f32 %v1304, %v1461
    %v1463 = vtanh.pop %v1462
    %v1464 = vsub.f32 1.0, %v1459
    %v1465 = vmul.f32 %v1464, %v1463
    %v1466 = vmul.f32 %v1459, %v1299
    %v1467 = vadd.f32 %v1465, %v1466
    %s1468 = scalar_lea.vmem [#allocation6], 96
    %v1469 = vld [vmem:[%s1468] sm:$0xff]
    %v1470 = vld [vmem:[%s1468 + $0x8] sm:$0xff]
    %v1471 = vld [vmem:[%s1468 + $0x10] sm:$0xff]
    %1472 = vmatprep.subr.mxu0 %v257
    %1473 = vmatpush1.msra.mxu0 %v256
    %1474 = vmatprep.subr.mxu0 %v254
    %1475 = vmatpush1.msra.mxu0 %v253
    %1476 = vmatprep.subr.mxu0 %v251
    %1477 = vmatpush1.msra.mxu0 %v250
    %1478 = vmatprep.subr.mxu0 %v248
    %1479 = vmatpush1.msra.mxu0 %v247
    %1480 = vmatprep.subr.mxu0 %v245
    %1481 = vmatpush1.msra.mxu0 %v244
    %1482 = vmatprep.subr.mxu0 %v242
    %1483 = vmatpush1.msra.mxu0 %v241
    %1484 = vmatprep.subr.mxu0 %v239
    %1485 = vmatpush1.msra.mxu0 %v238
    %1486 = vmatprep.subr.mxu0 %v236
    %1487 = vmatpush1.msra.mxu0 %v235
    %1488 = vmatprep.subr.mxu0 %v233
    %1489 = vmatpush1.msra.mxu0 %v232
    %1490 = vmatprep.subr.mxu0 %v230
    %1491 = vmatpush1.msra.mxu0 %v229
    %1492 = vmatprep.subr.mxu0 %v227
    %1493 = vmatpush1.msra.mxu0 %v226
    %1494 = vmatprep.subr.mxu0 %v224
    %1495 = vmatpush1.msra.mxu0 %v223
    %1496 = vmatprep.subr.mxu0 %v221
    %1497 = vmatpush1.msra.mxu0 %v220
    %1498 = vmatprep.subr.mxu0 %v218
    %1499 = vmatpush1.msra.mxu0 %v217
    %1500 = vmatprep.subr.mxu0 %v215
    %1501 = vmatpush1.msra.mxu0 %v214
    %1502 = vmatprep.subr.mxu0 %v212
    %1503 = vmatpush1.msra.mxu0 %v211
    %1504 = vmatprep.subr.mxu0 0.0
    %1505 = vmatpush2.msra.mxu0 0.0
    %1506 = vmatprep.subr.mxu0 0.0
    %1507 = vmatpush2.msra.mxu0 0.0
    %1508 = vmatprep.subr.mxu0 0.0
    %1509 = vmatpush2.msra.mxu0 0.0
    %1510 = vmatprep.subr.mxu0 0.0
    %1511 = vmatpush2.msra.mxu0 0.0
    %1512 = vmatprep.subr.mxu0 0.0
    %1513 = vmatpush2.msra.mxu0 0.0
    %1514 = vmatprep.subr.mxu0 0.0
    %1515 = vmatpush2.msra.mxu0 0.0
    %1516 = vmatprep.subr.mxu0 0.0
    %1517 = vmatpush2.msra.mxu0 0.0
    %1518 = vmatprep.subr.mxu0 0.0
    %1519 = vmatpush2.msra.mxu0 0.0
    %1520 = vmatprep.subr.mxu0 0.0
    %1521 = vmatpush2.msra.mxu0 0.0
    %1522 = vmatprep.subr.mxu0 0.0
    %1523 = vmatpush2.msra.mxu0 0.0
    %1524 = vmatprep.subr.mxu0 0.0
    %1525 = vmatpush2.msra.mxu0 0.0
    %1526 = vmatprep.subr.mxu0 0.0
    %1527 = vmatpush2.msra.mxu0 0.0
    %1528 = vmatprep.subr.mxu0 0.0
    %1529 = vmatpush2.msra.mxu0 0.0
    %1530 = vmatprep.subr.mxu0 0.0
    %1531 = vmatpush2.msra.mxu0 0.0
    %1532 = vmatprep.subr.mxu0 0.0
    %1533 = vmatpush2.msra.mxu0 0.0
    %1534 = vmatprep.subr.mxu0 0.0
    %1535 = vmatpush2.msra.mxu0 0.0
    %1536 = vmatprep.mubr.f32.mxu0 0.0
    %1537 = vmatmul.mubr.f32.gmra.mxu0 %v1300
    %v1538 = vpop.f32.mrf.mxu0
    %v1539 = vadd.f32 0.0, %v1538
    %v1540 = vpop.f32.mrf.mxu0
    %v1541 = vadd.f32 0.0, %v1540
    %1542 = vdwg.mxu0
    %1543 = vmatprep.subr.mxu0 0.0
    %1544 = vmatpush1.msra.mxu0 %v258
    %1545 = vmatprep.subr.mxu0 0.0
    %1546 = vmatpush1.msra.mxu0 %v255
    %1547 = vmatprep.subr.mxu0 0.0
    %1548 = vmatpush1.msra.mxu0 %v252
    %1549 = vmatprep.subr.mxu0 0.0
    %1550 = vmatpush1.msra.mxu0 %v249
    %1551 = vmatprep.subr.mxu0 0.0
    %1552 = vmatpush1.msra.mxu0 %v246
    %1553 = vmatprep.subr.mxu0 0.0
    %1554 = vmatpush1.msra.mxu0 %v243
    %1555 = vmatprep.subr.mxu0 0.0
    %1556 = vmatpush1.msra.mxu0 %v240
    %1557 = vmatprep.subr.mxu0 0.0
    %1558 = vmatpush1.msra.mxu0 %v237
    %1559 = vmatprep.subr.mxu0 0.0
    %1560 = vmatpush1.msra.mxu0 %v234
    %1561 = vmatprep.subr.mxu0 0.0
    %1562 = vmatpush1.msra.mxu0 %v231
    %1563 = vmatprep.subr.mxu0 0.0
    %1564 = vmatpush1.msra.mxu0 %v228
    %1565 = vmatprep.subr.mxu0 0.0
    %1566 = vmatpush1.msra.mxu0 %v225
    %1567 = vmatprep.subr.mxu0 0.0
    %1568 = vmatpush1.msra.mxu0 %v222
    %1569 = vmatprep.subr.mxu0 0.0
    %1570 = vmatpush1.msra.mxu0 %v219
    %1571 = vmatprep.subr.mxu0 0.0
    %1572 = vmatpush1.msra.mxu0 %v216
    %1573 = vmatprep.subr.mxu0 0.0
    %1574 = vmatpush1.msra.mxu0 %v213
    %1575 = vmatprep.subr.mxu0 0.0
    %1576 = vmatpush2.msra.mxu0 0.0
    %1577 = vmatprep.subr.mxu0 0.0
    %1578 = vmatpush2.msra.mxu0 0.0
    %1579 = vmatprep.subr.mxu0 0.0
    %1580 = vmatpush2.msra.mxu0 0.0
    %1581 = vmatprep.subr.mxu0 0.0
    %1582 = vmatpush2.msra.mxu0 0.0
    %1583 = vmatprep.subr.mxu0 0.0
    %1584 = vmatpush2.msra.mxu0 0.0
    %1585 = vmatprep.subr.mxu0 0.0
    %1586 = vmatpush2.msra.mxu0 0.0
    %1587 = vmatprep.subr.mxu0 0.0
    %1588 = vmatpush2.msra.mxu0 0.0
    %1589 = vmatprep.subr.mxu0 0.0
    %1590 = vmatpush2.msra.mxu0 0.0
    %1591 = vmatprep.subr.mxu0 0.0
    %1592 = vmatpush2.msra.mxu0 0.0
    %1593 = vmatprep.subr.mxu0 0.0
    %1594 = vmatpush2.msra.mxu0 0.0
    %1595 = vmatprep.subr.mxu0 0.0
    %1596 = vmatpush2.msra.mxu0 0.0
    %1597 = vmatprep.subr.mxu0 0.0
    %1598 = vmatpush2.msra.mxu0 0.0
    %1599 = vmatprep.subr.mxu0 0.0
    %1600 = vmatpush2.msra.mxu0 0.0
    %1601 = vmatprep.subr.mxu0 0.0
    %1602 = vmatpush2.msra.mxu0 0.0
    %1603 = vmatprep.subr.mxu0 0.0
    %1604 = vmatpush2.msra.mxu0 0.0
    %1605 = vmatprep.subr.mxu0 0.0
    %1606 = vmatpush2.msra.mxu0 0.0
    %1607 = vmatprep.mubr.f32.mxu0 0.0
    %1608 = vmatmul.mubr.f32.gmra.mxu0 %v1300
    %v1609 = vpop.f32.mrf.mxu0
    %v1610 = vadd.f32 0.0, %v1609
    %v1611 = vpop.f32.mrf.mxu0
    %1612 = vdwg.mxu0
    %v1613 = vadd.f32 %v1469, %v1539
    %v1614 = vadd.f32 %v1470, %v1541
    %v1615 = vxor.u32 %v1613, 2147483648
    %v1616 = vxor.u32 %v1614, 2147483648
    %v1617 = vmul.f32 %v1615, 1.442695
    %v1618 = vpow.pop %v1617
    %v1619 = vmul.f32 %v1616, 1.442695
    %v1620 = vpow.pop %v1619
    %v1621 = vadd.f32 %v1618, 1.0
    %v1622 = vadd.f32 %v1620, 1.0
    %v1623 = vrcp.pop %v1621
    %v1624 = vmul.f32 1.0, %v1623
    %v1625 = vrcp.pop %v1622
    %v1626 = vmul.f32 1.0, %v1625
    %v1627 = vadd.f32 %v1610, %v599
    %v1628 = vmul.f32 %v1624, %v1627
    %v1629 = vadd.f32 %v1471, %v1628
    %v1630 = vtanh.pop %v1629
    %v1631 = vsub.f32 1.0, %v1626
    %v1632 = vmul.f32 %v1631, %v1630
    %v1633 = vmul.f32 %v1626, %v1300
    %v1634 = vadd.f32 %v1632, %v1633
    %v1635 = vld [vmem:[#allocation4] sm:$0xff]
    %v1636 = vadd.f32 %v1635, %v1467
    %v1637 = vadd.f32 %v1636, %v1634
    %1638 = vst [vmem:[#allocation4] sm:$0xff] %v1637
    %1639 = vst [vmem:[#allocation2] sm:$0xff] %v1467
    %1640 = vst [vmem:[#allocation3] sm:$0xff] %v1634
    %v1641 = vld [vmem:[#allocation2] sm:$0xff]
    %v1642 = vld [vmem:[#allocation3] sm:$0xff]
    %s1643 = scalar_lea.vmem [#allocation5], 96
    %v1644 = vld [vmem:[%s1643] sm:$0xff]
    %v1645 = vld [vmem:[%s1643 + $0x8] sm:$0xff]
    %v1646 = vld [vmem:[%s1643 + $0x10] sm:$0xff]
    %1647 = vmatprep.subr.mxu0 %v208
    %1648 = vmatpush1.msra.mxu0 %v207
    %1649 = vmatprep.subr.mxu0 %v205
    %1650 = vmatpush1.msra.mxu0 %v204
    %1651 = vmatprep.subr.mxu0 %v202
    %1652 = vmatpush1.msra.mxu0 %v201
    %1653 = vmatprep.subr.mxu0 %v199
    %1654 = vmatpush1.msra.mxu0 %v198
    %1655 = vmatprep.subr.mxu0 %v196
    %1656 = vmatpush1.msra.mxu0 %v195
    %1657 = vmatprep.subr.mxu0 %v193
    %1658 = vmatpush1.msra.mxu0 %v192
    %1659 = vmatprep.subr.mxu0 %v190
    %1660 = vmatpush1.msra.mxu0 %v189
    %1661 = vmatprep.subr.mxu0 %v187
    %1662 = vmatpush1.msra.mxu0 %v186
    %1663 = vmatprep.subr.mxu0 %v184
    %1664 = vmatpush1.msra.mxu0 %v183
    %1665 = vmatprep.subr.mxu0 %v181
    %1666 = vmatpush1.msra.mxu0 %v180
    %1667 = vmatprep.subr.mxu0 %v178
    %1668 = vmatpush1.msra.mxu0 %v177
    %1669 = vmatprep.subr.mxu0 %v175
    %1670 = vmatpush1.msra.mxu0 %v174
    %1671 = vmatprep.subr.mxu0 %v172
    %1672 = vmatpush1.msra.mxu0 %v171
    %1673 = vmatprep.subr.mxu0 %v169
    %1674 = vmatpush1.msra.mxu0 %v168
    %1675 = vmatprep.subr.mxu0 %v166
    %1676 = vmatpush1.msra.mxu0 %v165
    %1677 = vmatprep.subr.mxu0 %v163
    %1678 = vmatpush1.msra.mxu0 %v162
    %1679 = vmatprep.subr.mxu0 0.0
    %1680 = vmatpush2.msra.mxu0 0.0
    %1681 = vmatprep.subr.mxu0 0.0
    %1682 = vmatpush2.msra.mxu0 0.0
    %1683 = vmatprep.subr.mxu0 0.0
    %1684 = vmatpush2.msra.mxu0 0.0
    %1685 = vmatprep.subr.mxu0 0.0
    %1686 = vmatpush2.msra.mxu0 0.0
    %1687 = vmatprep.subr.mxu0 0.0
    %1688 = vmatpush2.msra.mxu0 0.0
    %1689 = vmatprep.subr.mxu0 0.0
    %1690 = vmatpush2.msra.mxu0 0.0
    %1691 = vmatprep.subr.mxu0 0.0
    %1692 = vmatpush2.msra.mxu0 0.0
    %1693 = vmatprep.subr.mxu0 0.0
    %1694 = vmatpush2.msra.mxu0 0.0
    %1695 = vmatprep.subr.mxu0 0.0
    %1696 = vmatpush2.msra.mxu0 0.0
    %1697 = vmatprep.subr.mxu0 0.0
    %1698 = vmatpush2.msra.mxu0 0.0
    %1699 = vmatprep.subr.mxu0 0.0
    %1700 = vmatpush2.msra.mxu0 0.0
    %1701 = vmatprep.subr.mxu0 0.0
    %1702 = vmatpush2.msra.mxu0 0.0
    %1703 = vmatprep.subr.mxu0 0.0
    %1704 = vmatpush2.msra.mxu0 0.0
    %1705 = vmatprep.subr.mxu0 0.0
    %1706 = vmatpush2.msra.mxu0 0.0
    %1707 = vmatprep.subr.mxu0 0.0
    %1708 = vmatpush2.msra.mxu0 0.0
    %1709 = vmatprep.subr.mxu0 0.0
    %1710 = vmatpush2.msra.mxu0 0.0
    %1711 = vmatprep.mubr.f32.mxu0 0.0
    %1712 = vmatmul.mubr.f32.gmra.mxu0 %v1641
    %v1713 = vpop.f32.mrf.mxu0
    %v1714 = vadd.f32 0.0, %v1713
    %v1715 = vpop.f32.mrf.mxu0
    %v1716 = vadd.f32 0.0, %v1715
    %1717 = vdwg.mxu0
    %1718 = vmatprep.subr.mxu0 0.0
    %1719 = vmatpush1.msra.mxu0 %v209
    %1720 = vmatprep.subr.mxu0 0.0
    %1721 = vmatpush1.msra.mxu0 %v206
    %1722 = vmatprep.subr.mxu0 0.0
    %1723 = vmatpush1.msra.mxu0 %v203
    %1724 = vmatprep.subr.mxu0 0.0
    %1725 = vmatpush1.msra.mxu0 %v200
    %1726 = vmatprep.subr.mxu0 0.0
    %1727 = vmatpush1.msra.mxu0 %v197
    %1728 = vmatprep.subr.mxu0 0.0
    %1729 = vmatpush1.msra.mxu0 %v194
    %1730 = vmatprep.subr.mxu0 0.0
    %1731 = vmatpush1.msra.mxu0 %v191
    %1732 = vmatprep.subr.mxu0 0.0
    %1733 = vmatpush1.msra.mxu0 %v188
    %1734 = vmatprep.subr.mxu0 0.0
    %1735 = vmatpush1.msra.mxu0 %v185
    %1736 = vmatprep.subr.mxu0 0.0
    %1737 = vmatpush1.msra.mxu0 %v182
    %1738 = vmatprep.subr.mxu0 0.0
    %1739 = vmatpush1.msra.mxu0 %v179
    %1740 = vmatprep.subr.mxu0 0.0
    %1741 = vmatpush1.msra.mxu0 %v176
    %1742 = vmatprep.subr.mxu0 0.0
    %1743 = vmatpush1.msra.mxu0 %v173
    %1744 = vmatprep.subr.mxu0 0.0
    %1745 = vmatpush1.msra.mxu0 %v170
    %1746 = vmatprep.subr.mxu0 0.0
    %1747 = vmatpush1.msra.mxu0 %v167
    %1748 = vmatprep.subr.mxu0 0.0
    %1749 = vmatpush1.msra.mxu0 %v164
    %1750 = vmatprep.subr.mxu0 0.0
    %1751 = vmatpush2.msra.mxu0 0.0
    %1752 = vmatprep.subr.mxu0 0.0
    %1753 = vmatpush2.msra.mxu0 0.0
    %1754 = vmatprep.subr.mxu0 0.0
    %1755 = vmatpush2.msra.mxu0 0.0
    %1756 = vmatprep.subr.mxu0 0.0
    %1757 = vmatpush2.msra.mxu0 0.0
    %1758 = vmatprep.subr.mxu0 0.0
    %1759 = vmatpush2.msra.mxu0 0.0
    %1760 = vmatprep.subr.mxu0 0.0
    %1761 = vmatpush2.msra.mxu0 0.0
    %1762 = vmatprep.subr.mxu0 0.0
    %1763 = vmatpush2.msra.mxu0 0.0
    %1764 = vmatprep.subr.mxu0 0.0
    %1765 = vmatpush2.msra.mxu0 0.0
    %1766 = vmatprep.subr.mxu0 0.0
    %1767 = vmatpush2.msra.mxu0 0.0
    %1768 = vmatprep.subr.mxu0 0.0
    %1769 = vmatpush2.msra.mxu0 0.0
    %1770 = vmatprep.subr.mxu0 0.0
    %1771 = vmatpush2.msra.mxu0 0.0
    %1772 = vmatprep.subr.mxu0 0.0
    %1773 = vmatpush2.msra.mxu0 0.0
    %1774 = vmatprep.subr.mxu0 0.0
    %1775 = vmatpush2.msra.mxu0 0.0
    %1776 = vmatprep.subr.mxu0 0.0
    %1777 = vmatpush2.msra.mxu0 0.0
    %1778 = vmatprep.subr.mxu0 0.0
    %1779 = vmatpush2.msra.mxu0 0.0
    %1780 = vmatprep.subr.mxu0 0.0
    %1781 = vmatpush2.msra.mxu0 0.0
    %1782 = vmatprep.mubr.f32.mxu0 0.0
    %1783 = vmatmul.mubr.f32.gmra.mxu0 %v1641
    %v1784 = vpop.f32.mrf.mxu0
    %v1785 = vadd.f32 0.0, %v1784
    %v1786 = vpop.f32.mrf.mxu0
    %1787 = vdwg.mxu0
    %v1788 = vadd.f32 %v1644, %v1714
    %v1789 = vadd.f32 %v1645, %v1716
    %v1790 = vxor.u32 %v1788, 2147483648
    %v1791 = vxor.u32 %v1789, 2147483648
    %v1792 = vmul.f32 %v1790, 1.442695
    %v1793 = vpow.pop %v1792
    %v1794 = vmul.f32 %v1791, 1.442695
    %v1795 = vpow.pop %v1794
    %v1796 = vadd.f32 %v1793, 1.0
    %v1797 = vadd.f32 %v1795, 1.0
    %v1798 = vrcp.pop %v1796
    %v1799 = vmul.f32 1.0, %v1798
    %v1800 = vrcp.pop %v1797
    %v1801 = vmul.f32 1.0, %v1800
    %v1802 = vadd.f32 %v1785, %v426
    %v1803 = vmul.f32 %v1799, %v1802
    %v1804 = vadd.f32 %v1646, %v1803
    %v1805 = vtanh.pop %v1804
    %v1806 = vsub.f32 1.0, %v1801
    %v1807 = vmul.f32 %v1806, %v1805
    %v1808 = vmul.f32 %v1801, %v1641
    %v1809 = vadd.f32 %v1807, %v1808
    %s1810 = scalar_lea.vmem [#allocation6], 72
    %v1811 = vld [vmem:[%s1810] sm:$0xff]
    %v1812 = vld [vmem:[%s1810 + $0x8] sm:$0xff]
    %v1813 = vld [vmem:[%s1810 + $0x10] sm:$0xff]
    %1814 = vmatprep.subr.mxu0 %v257
    %1815 = vmatpush1.msra.mxu0 %v256
    %1816 = vmatprep.subr.mxu0 %v254
    %1817 = vmatpush1.msra.mxu0 %v253
    %1818 = vmatprep.subr.mxu0 %v251
    %1819 = vmatpush1.msra.mxu0 %v250
    %1820 = vmatprep.subr.mxu0 %v248
    %1821 = vmatpush1.msra.mxu0 %v247
    %1822 = vmatprep.subr.mxu0 %v245
    %1823 = vmatpush1.msra.mxu0 %v244
    %1824 = vmatprep.subr.mxu0 %v242
    %1825 = vmatpush1.msra.mxu0 %v241
    %1826 = vmatprep.subr.mxu0 %v239
    %1827 = vmatpush1.msra.mxu0 %v238
    %1828 = vmatprep.subr.mxu0 %v236
    %1829 = vmatpush1.msra.mxu0 %v235
    %1830 = vmatprep.subr.mxu0 %v233
    %1831 = vmatpush1.msra.mxu0 %v232
    %1832 = vmatprep.subr.mxu0 %v230
    %1833 = vmatpush1.msra.mxu0 %v229
    %1834 = vmatprep.subr.mxu0 %v227
    %1835 = vmatpush1.msra.mxu0 %v226
    %1836 = vmatprep.subr.mxu0 %v224
    %1837 = vmatpush1.msra.mxu0 %v223
    %1838 = vmatprep.subr.mxu0 %v221
    %1839 = vmatpush1.msra.mxu0 %v220
    %1840 = vmatprep.subr.mxu0 %v218
    %1841 = vmatpush1.msra.mxu0 %v217
    %1842 = vmatprep.subr.mxu0 %v215
    %1843 = vmatpush1.msra.mxu0 %v214
    %1844 = vmatprep.subr.mxu0 %v212
    %1845 = vmatpush1.msra.mxu0 %v211
    %1846 = vmatprep.subr.mxu0 0.0
    %1847 = vmatpush2.msra.mxu0 0.0
    %1848 = vmatprep.subr.mxu0 0.0
    %1849 = vmatpush2.msra.mxu0 0.0
    %1850 = vmatprep.subr.mxu0 0.0
    %1851 = vmatpush2.msra.mxu0 0.0
    %1852 = vmatprep.subr.mxu0 0.0
    %1853 = vmatpush2.msra.mxu0 0.0
    %1854 = vmatprep.subr.mxu0 0.0
    %1855 = vmatpush2.msra.mxu0 0.0
    %1856 = vmatprep.subr.mxu0 0.0
    %1857 = vmatpush2.msra.mxu0 0.0
    %1858 = vmatprep.subr.mxu0 0.0
    %1859 = vmatpush2.msra.mxu0 0.0
    %1860 = vmatprep.subr.mxu0 0.0
    %1861 = vmatpush2.msra.mxu0 0.0
    %1862 = vmatprep.subr.mxu0 0.0
    %1863 = vmatpush2.msra.mxu0 0.0
    %1864 = vmatprep.subr.mxu0 0.0
    %1865 = vmatpush2.msra.mxu0 0.0
    %1866 = vmatprep.subr.mxu0 0.0
    %1867 = vmatpush2.msra.mxu0 0.0
    %1868 = vmatprep.subr.mxu0 0.0
    %1869 = vmatpush2.msra.mxu0 0.0
    %1870 = vmatprep.subr.mxu0 0.0
    %1871 = vmatpush2.msra.mxu0 0.0
    %1872 = vmatprep.subr.mxu0 0.0
    %1873 = vmatpush2.msra.mxu0 0.0
    %1874 = vmatprep.subr.mxu0 0.0
    %1875 = vmatpush2.msra.mxu0 0.0
    %1876 = vmatprep.subr.mxu0 0.0
    %1877 = vmatpush2.msra.mxu0 0.0
    %1878 = vmatprep.mubr.f32.mxu0 0.0
    %1879 = vmatmul.mubr.f32.gmra.mxu0 %v1642
    %v1880 = vpop.f32.mrf.mxu0
    %v1881 = vadd.f32 0.0, %v1880
    %v1882 = vpop.f32.mrf.mxu0
    %v1883 = vadd.f32 0.0, %v1882
    %1884 = vdwg.mxu0
    %1885 = vmatprep.subr.mxu0 0.0
    %1886 = vmatpush1.msra.mxu0 %v258
    %1887 = vmatprep.subr.mxu0 0.0
    %1888 = vmatpush1.msra.mxu0 %v255
    %1889 = vmatprep.subr.mxu0 0.0
    %1890 = vmatpush1.msra.mxu0 %v252
    %1891 = vmatprep.subr.mxu0 0.0
    %1892 = vmatpush1.msra.mxu0 %v249
    %1893 = vmatprep.subr.mxu0 0.0
    %1894 = vmatpush1.msra.mxu0 %v246
    %1895 = vmatprep.subr.mxu0 0.0
    %1896 = vmatpush1.msra.mxu0 %v243
    %1897 = vmatprep.subr.mxu0 0.0
    %1898 = vmatpush1.msra.mxu0 %v240
    %1899 = vmatprep.subr.mxu0 0.0
    %1900 = vmatpush1.msra.mxu0 %v237
    %1901 = vmatprep.subr.mxu0 0.0
    %1902 = vmatpush1.msra.mxu0 %v234
    %1903 = vmatprep.subr.mxu0 0.0
    %1904 = vmatpush1.msra.mxu0 %v231
    %1905 = vmatprep.subr.mxu0 0.0
    %1906 = vmatpush1.msra.mxu0 %v228
    %1907 = vmatprep.subr.mxu0 0.0
    %1908 = vmatpush1.msra.mxu0 %v225
    %1909 = vmatprep.subr.mxu0 0.0
    %1910 = vmatpush1.msra.mxu0 %v222
    %1911 = vmatprep.subr.mxu0 0.0
    %1912 = vmatpush1.msra.mxu0 %v219
    %1913 = vmatprep.subr.mxu0 0.0
    %1914 = vmatpush1.msra.mxu0 %v216
    %1915 = vmatprep.subr.mxu0 0.0
    %1916 = vmatpush1.msra.mxu0 %v213
    %1917 = vmatprep.subr.mxu0 0.0
    %1918 = vmatpush2.msra.mxu0 0.0
    %1919 = vmatprep.subr.mxu0 0.0
    %1920 = vmatpush2.msra.mxu0 0.0
    %1921 = vmatprep.subr.mxu0 0.0
    %1922 = vmatpush2.msra.mxu0 0.0
    %1923 = vmatprep.subr.mxu0 0.0
    %1924 = vmatpush2.msra.mxu0 0.0
    %1925 = vmatprep.subr.mxu0 0.0
    %1926 = vmatpush2.msra.mxu0 0.0
    %1927 = vmatprep.subr.mxu0 0.0
    %1928 = vmatpush2.msra.mxu0 0.0
    %1929 = vmatprep.subr.mxu0 0.0
    %1930 = vmatpush2.msra.mxu0 0.0
    %1931 = vmatprep.subr.mxu0 0.0
    %1932 = vmatpush2.msra.mxu0 0.0
    %1933 = vmatprep.subr.mxu0 0.0
    %1934 = vmatpush2.msra.mxu0 0.0
    %1935 = vmatprep.subr.mxu0 0.0
    %1936 = vmatpush2.msra.mxu0 0.0
    %1937 = vmatprep.subr.mxu0 0.0
    %1938 = vmatpush2.msra.mxu0 0.0
    %1939 = vmatprep.subr.mxu0 0.0
    %1940 = vmatpush2.msra.mxu0 0.0
    %1941 = vmatprep.subr.mxu0 0.0
    %1942 = vmatpush2.msra.mxu0 0.0
    %1943 = vmatprep.subr.mxu0 0.0
    %1944 = vmatpush2.msra.mxu0 0.0
    %1945 = vmatprep.subr.mxu0 0.0
    %1946 = vmatpush2.msra.mxu0 0.0
    %1947 = vmatprep.subr.mxu0 0.0
    %1948 = vmatpush2.msra.mxu0 0.0
    %1949 = vmatprep.mubr.f32.mxu0 0.0
    %1950 = vmatmul.mubr.f32.gmra.mxu0 %v1642
    %v1951 = vpop.f32.mrf.mxu0
    %v1952 = vadd.f32 0.0, %v1951
    %v1953 = vpop.f32.mrf.mxu0
    %1954 = vdwg.mxu0
    %v1955 = vadd.f32 %v1811, %v1881
    %v1956 = vadd.f32 %v1812, %v1883
    %v1957 = vxor.u32 %v1955, 2147483648
    %v1958 = vxor.u32 %v1956, 2147483648
    %v1959 = vmul.f32 %v1957, 1.442695
    %v1960 = vpow.pop %v1959
    %v1961 = vmul.f32 %v1958, 1.442695
    %v1962 = vpow.pop %v1961
    %v1963 = vadd.f32 %v1960, 1.0
    %v1964 = vadd.f32 %v1962, 1.0
    %v1965 = vrcp.pop %v1963
    %v1966 = vmul.f32 1.0, %v1965
    %v1967 = vrcp.pop %v1964
    %v1968 = vmul.f32 1.0, %v1967
    %v1969 = vadd.f32 %v1952, %v599
    %v1970 = vmul.f32 %v1966, %v1969
    %v1971 = vadd.f32 %v1813, %v1970
    %v1972 = vtanh.pop %v1971
    %v1973 = vsub.f32 1.0, %v1968
    %v1974 = vmul.f32 %v1973, %v1972
    %v1975 = vmul.f32 %v1968, %v1642
    %v1976 = vadd.f32 %v1974, %v1975
    %v1977 = vld [vmem:[#allocation4] sm:$0xff]
    %v1978 = vadd.f32 %v1977, %v1809
    %v1979 = vadd.f32 %v1978, %v1976
    %1980 = vst [vmem:[#allocation4] sm:$0xff] %v1979
    %1981 = vst [vmem:[#allocation2] sm:$0xff] %v1809
    %1982 = vst [vmem:[#allocation3] sm:$0xff] %v1976
    %v1983 = vld [vmem:[#allocation2] sm:$0xff]
    %v1984 = vld [vmem:[#allocation3] sm:$0xff]
    %s1985 = scalar_lea.vmem [#allocation5], 120
    %v1986 = vld [vmem:[%s1985] sm:$0xff]
    %v1987 = vld [vmem:[%s1985 + $0x8] sm:$0xff]
    %v1988 = vld [vmem:[%s1985 + $0x10] sm:$0xff]
    %1989 = vmatprep.subr.mxu0 %v208
    %1990 = vmatpush1.msra.mxu0 %v207
    %1991 = vmatprep.subr.mxu0 %v205
    %1992 = vmatpush1.msra.mxu0 %v204
    %1993 = vmatprep.subr.mxu0 %v202
    %1994 = vmatpush1.msra.mxu0 %v201
    %1995 = vmatprep.subr.mxu0 %v199
    %1996 = vmatpush1.msra.mxu0 %v198
    %1997 = vmatprep.subr.mxu0 %v196
    %1998 = vmatpush1.msra.mxu0 %v195
    %1999 = vmatprep.subr.mxu0 %v193
    %2000 = vmatpush1.msra.mxu0 %v192
    %2001 = vmatprep.subr.mxu0 %v190
    %2002 = vmatpush1.msra.mxu0 %v189
    %2003 = vmatprep.subr.mxu0 %v187
    %2004 = vmatpush1.msra.mxu0 %v186
    %2005 = vmatprep.subr.mxu0 %v184
    %2006 = vmatpush1.msra.mxu0 %v183
    %2007 = vmatprep.subr.mxu0 %v181
    %2008 = vmatpush1.msra.mxu0 %v180
    %2009 = vmatprep.subr.mxu0 %v178
    %2010 = vmatpush1.msra.mxu0 %v177
    %2011 = vmatprep.subr.mxu0 %v175
    %2012 = vmatpush1.msra.mxu0 %v174
    %2013 = vmatprep.subr.mxu0 %v172
    %2014 = vmatpush1.msra.mxu0 %v171
    %2015 = vmatprep.subr.mxu0 %v169
    %2016 = vmatpush1.msra.mxu0 %v168
    %2017 = vmatprep.subr.mxu0 %v166
    %2018 = vmatpush1.msra.mxu0 %v165
    %2019 = vmatprep.subr.mxu0 %v163
    %2020 = vmatpush1.msra.mxu0 %v162
    %2021 = vmatprep.subr.mxu0 0.0
    %2022 = vmatpush2.msra.mxu0 0.0
    %2023 = vmatprep.subr.mxu0 0.0
    %2024 = vmatpush2.msra.mxu0 0.0
    %2025 = vmatprep.subr.mxu0 0.0
    %2026 = vmatpush2.msra.mxu0 0.0
    %2027 = vmatprep.subr.mxu0 0.0
    %2028 = vmatpush2.msra.mxu0 0.0
    %2029 = vmatprep.subr.mxu0 0.0
    %2030 = vmatpush2.msra.mxu0 0.0
    %2031 = vmatprep.subr.mxu0 0.0
    %2032 = vmatpush2.msra.mxu0 0.0
    %2033 = vmatprep.subr.mxu0 0.0
    %2034 = vmatpush2.msra.mxu0 0.0
    %2035 = vmatprep.subr.mxu0 0.0
    %2036 = vmatpush2.msra.mxu0 0.0
    %2037 = vmatprep.subr.mxu0 0.0
    %2038 = vmatpush2.msra.mxu0 0.0
    %2039 = vmatprep.subr.mxu0 0.0
    %2040 = vmatpush2.msra.mxu0 0.0
    %2041 = vmatprep.subr.mxu0 0.0
    %2042 = vmatpush2.msra.mxu0 0.0
    %2043 = vmatprep.subr.mxu0 0.0
    %2044 = vmatpush2.msra.mxu0 0.0
    %2045 = vmatprep.subr.mxu0 0.0
    %2046 = vmatpush2.msra.mxu0 0.0
    %2047 = vmatprep.subr.mxu0 0.0
    %2048 = vmatpush2.msra.mxu0 0.0
    %2049 = vmatprep.subr.mxu0 0.0
    %2050 = vmatpush2.msra.mxu0 0.0
    %2051 = vmatprep.subr.mxu0 0.0
    %2052 = vmatpush2.msra.mxu0 0.0
    %2053 = vmatprep.mubr.f32.mxu0 0.0
    %2054 = vmatmul.mubr.f32.gmra.mxu0 %v1983
    %v2055 = vpop.f32.mrf.mxu0
    %v2056 = vadd.f32 0.0, %v2055
    %v2057 = vpop.f32.mrf.mxu0
    %v2058 = vadd.f32 0.0, %v2057
    %2059 = vdwg.mxu0
    %2060 = vmatprep.subr.mxu0 0.0
    %2061 = vmatpush1.msra.mxu0 %v209
    %2062 = vmatprep.subr.mxu0 0.0
    %2063 = vmatpush1.msra.mxu0 %v206
    %2064 = vmatprep.subr.mxu0 0.0
    %2065 = vmatpush1.msra.mxu0 %v203
    %2066 = vmatprep.subr.mxu0 0.0
    %2067 = vmatpush1.msra.mxu0 %v200
    %2068 = vmatprep.subr.mxu0 0.0
    %2069 = vmatpush1.msra.mxu0 %v197
    %2070 = vmatprep.subr.mxu0 0.0
    %2071 = vmatpush1.msra.mxu0 %v194
    %2072 = vmatprep.subr.mxu0 0.0
    %2073 = vmatpush1.msra.mxu0 %v191
    %2074 = vmatprep.subr.mxu0 0.0
    %2075 = vmatpush1.msra.mxu0 %v188
    %2076 = vmatprep.subr.mxu0 0.0
    %2077 = vmatpush1.msra.mxu0 %v185
    %2078 = vmatprep.subr.mxu0 0.0
    %2079 = vmatpush1.msra.mxu0 %v182
    %2080 = vmatprep.subr.mxu0 0.0
    %2081 = vmatpush1.msra.mxu0 %v179
    %2082 = vmatprep.subr.mxu0 0.0
    %2083 = vmatpush1.msra.mxu0 %v176
    %2084 = vmatprep.subr.mxu0 0.0
    %2085 = vmatpush1.msra.mxu0 %v173
    %2086 = vmatprep.subr.mxu0 0.0
    %2087 = vmatpush1.msra.mxu0 %v170
    %2088 = vmatprep.subr.mxu0 0.0
    %2089 = vmatpush1.msra.mxu0 %v167
    %2090 = vmatprep.subr.mxu0 0.0
    %2091 = vmatpush1.msra.mxu0 %v164
    %2092 = vmatprep.subr.mxu0 0.0
    %2093 = vmatpush2.msra.mxu0 0.0
    %2094 = vmatprep.subr.mxu0 0.0
    %2095 = vmatpush2.msra.mxu0 0.0
    %2096 = vmatprep.subr.mxu0 0.0
    %2097 = vmatpush2.msra.mxu0 0.0
    %2098 = vmatprep.subr.mxu0 0.0
    %2099 = vmatpush2.msra.mxu0 0.0
    %2100 = vmatprep.subr.mxu0 0.0
    %2101 = vmatpush2.msra.mxu0 0.0
    %2102 = vmatprep.subr.mxu0 0.0
    %2103 = vmatpush2.msra.mxu0 0.0
    %2104 = vmatprep.subr.mxu0 0.0
    %2105 = vmatpush2.msra.mxu0 0.0
    %2106 = vmatprep.subr.mxu0 0.0
    %2107 = vmatpush2.msra.mxu0 0.0
    %2108 = vmatprep.subr.mxu0 0.0
    %2109 = vmatpush2.msra.mxu0 0.0
    %2110 = vmatprep.subr.mxu0 0.0
    %2111 = vmatpush2.msra.mxu0 0.0
    %2112 = vmatprep.subr.mxu0 0.0
    %2113 = vmatpush2.msra.mxu0 0.0
    %2114 = vmatprep.subr.mxu0 0.0
    %2115 = vmatpush2.msra.mxu0 0.0
    %2116 = vmatprep.subr.mxu0 0.0
    %2117 = vmatpush2.msra.mxu0 0.0
    %2118 = vmatprep.subr.mxu0 0.0
    %2119 = vmatpush2.msra.mxu0 0.0
    %2120 = vmatprep.subr.mxu0 0.0
    %2121 = vmatpush2.msra.mxu0 0.0
    %2122 = vmatprep.subr.mxu0 0.0
    %2123 = vmatpush2.msra.mxu0 0.0
    %2124 = vmatprep.mubr.f32.mxu0 0.0
    %2125 = vmatmul.mubr.f32.gmra.mxu0 %v1983
    %v2126 = vpop.f32.mrf.mxu0
    %v2127 = vadd.f32 0.0, %v2126
    %v2128 = vpop.f32.mrf.mxu0
    %2129 = vdwg.mxu0
    %v2130 = vadd.f32 %v1986, %v2056
    %v2131 = vadd.f32 %v1987, %v2058
    %v2132 = vxor.u32 %v2130, 2147483648
    %v2133 = vxor.u32 %v2131, 2147483648
    %v2134 = vmul.f32 %v2132, 1.442695
    %v2135 = vpow.pop %v2134
    %v2136 = vmul.f32 %v2133, 1.442695
    %v2137 = vpow.pop %v2136
    %v2138 = vadd.f32 %v2135, 1.0
    %v2139 = vadd.f32 %v2137, 1.0
    %v2140 = vrcp.pop %v2138
    %v2141 = vmul.f32 1.0, %v2140
    %v2142 = vrcp.pop %v2139
    %v2143 = vmul.f32 1.0, %v2142
    %v2144 = vadd.f32 %v2127, %v426
    %v2145 = vmul.f32 %v2141, %v2144
    %v2146 = vadd.f32 %v1988, %v2145
    %v2147 = vtanh.pop %v2146
    %v2148 = vsub.f32 1.0, %v2143
    %v2149 = vmul.f32 %v2148, %v2147
    %v2150 = vmul.f32 %v2143, %v1983
    %v2151 = vadd.f32 %v2149, %v2150
    %s2152 = scalar_lea.vmem [#allocation6], 48
    %v2153 = vld [vmem:[%s2152] sm:$0xff]
    %v2154 = vld [vmem:[%s2152 + $0x8] sm:$0xff]
    %v2155 = vld [vmem:[%s2152 + $0x10] sm:$0xff]
    %2156 = vmatprep.subr.mxu0 %v257
    %2157 = vmatpush1.msra.mxu0 %v256
    %2158 = vmatprep.subr.mxu0 %v254
    %2159 = vmatpush1.msra.mxu0 %v253
    %2160 = vmatprep.subr.mxu0 %v251
    %2161 = vmatpush1.msra.mxu0 %v250
    %2162 = vmatprep.subr.mxu0 %v248
    %2163 = vmatpush1.msra.mxu0 %v247
    %2164 = vmatprep.subr.mxu0 %v245
    %2165 = vmatpush1.msra.mxu0 %v244
    %2166 = vmatprep.subr.mxu0 %v242
    %2167 = vmatpush1.msra.mxu0 %v241
    %2168 = vmatprep.subr.mxu0 %v239
    %2169 = vmatpush1.msra.mxu0 %v238
    %2170 = vmatprep.subr.mxu0 %v236
    %2171 = vmatpush1.msra.mxu0 %v235
    %2172 = vmatprep.subr.mxu0 %v233
    %2173 = vmatpush1.msra.mxu0 %v232
    %2174 = vmatprep.subr.mxu0 %v230
    %2175 = vmatpush1.msra.mxu0 %v229
    %2176 = vmatprep.subr.mxu0 %v227
    %2177 = vmatpush1.msra.mxu0 %v226
    %2178 = vmatprep.subr.mxu0 %v224
    %2179 = vmatpush1.msra.mxu0 %v223
    %2180 = vmatprep.subr.mxu0 %v221
    %2181 = vmatpush1.msra.mxu0 %v220
    %2182 = vmatprep.subr.mxu0 %v218
    %2183 = vmatpush1.msra.mxu0 %v217
    %2184 = vmatprep.subr.mxu0 %v215
    %2185 = vmatpush1.msra.mxu0 %v214
    %2186 = vmatprep.subr.mxu0 %v212
    %2187 = vmatpush1.msra.mxu0 %v211
    %2188 = vmatprep.subr.mxu0 0.0
    %2189 = vmatpush2.msra.mxu0 0.0
    %2190 = vmatprep.subr.mxu0 0.0
    %2191 = vmatpush2.msra.mxu0 0.0
    %2192 = vmatprep.subr.mxu0 0.0
    %2193 = vmatpush2.msra.mxu0 0.0
    %2194 = vmatprep.subr.mxu0 0.0
    %2195 = vmatpush2.msra.mxu0 0.0
    %2196 = vmatprep.subr.mxu0 0.0
    %2197 = vmatpush2.msra.mxu0 0.0
    %2198 = vmatprep.subr.mxu0 0.0
    %2199 = vmatpush2.msra.mxu0 0.0
    %2200 = vmatprep.subr.mxu0 0.0
    %2201 = vmatpush2.msra.mxu0 0.0
    %2202 = vmatprep.subr.mxu0 0.0
    %2203 = vmatpush2.msra.mxu0 0.0
    %2204 = vmatprep.subr.mxu0 0.0
    %2205 = vmatpush2.msra.mxu0 0.0
    %2206 = vmatprep.subr.mxu0 0.0
    %2207 = vmatpush2.msra.mxu0 0.0
    %2208 = vmatprep.subr.mxu0 0.0
    %2209 = vmatpush2.msra.mxu0 0.0
    %2210 = vmatprep.subr.mxu0 0.0
    %2211 = vmatpush2.msra.mxu0 0.0
    %2212 = vmatprep.subr.mxu0 0.0
    %2213 = vmatpush2.msra.mxu0 0.0
    %2214 = vmatprep.subr.mxu0 0.0
    %2215 = vmatpush2.msra.mxu0 0.0
    %2216 = vmatprep.subr.mxu0 0.0
    %2217 = vmatpush2.msra.mxu0 0.0
    %2218 = vmatprep.subr.mxu0 0.0
    %2219 = vmatpush2.msra.mxu0 0.0
    %2220 = vmatprep.mubr.f32.mxu0 0.0
    %2221 = vmatmul.mubr.f32.gmra.mxu0 %v1984
    %v2222 = vpop.f32.mrf.mxu0
    %v2223 = vadd.f32 0.0, %v2222
    %v2224 = vpop.f32.mrf.mxu0
    %v2225 = vadd.f32 0.0, %v2224
    %2226 = vdwg.mxu0
    %2227 = vmatprep.subr.mxu0 0.0
    %2228 = vmatpush1.msra.mxu0 %v258
    %2229 = vmatprep.subr.mxu0 0.0
    %2230 = vmatpush1.msra.mxu0 %v255
    %2231 = vmatprep.subr.mxu0 0.0
    %2232 = vmatpush1.msra.mxu0 %v252
    %2233 = vmatprep.subr.mxu0 0.0
    %2234 = vmatpush1.msra.mxu0 %v249
    %2235 = vmatprep.subr.mxu0 0.0
    %2236 = vmatpush1.msra.mxu0 %v246
    %2237 = vmatprep.subr.mxu0 0.0
    %2238 = vmatpush1.msra.mxu0 %v243
    %2239 = vmatprep.subr.mxu0 0.0
    %2240 = vmatpush1.msra.mxu0 %v240
    %2241 = vmatprep.subr.mxu0 0.0
    %2242 = vmatpush1.msra.mxu0 %v237
    %2243 = vmatprep.subr.mxu0 0.0
    %2244 = vmatpush1.msra.mxu0 %v234
    %2245 = vmatprep.subr.mxu0 0.0
    %2246 = vmatpush1.msra.mxu0 %v231
    %2247 = vmatprep.subr.mxu0 0.0
    %2248 = vmatpush1.msra.mxu0 %v228
    %2249 = vmatprep.subr.mxu0 0.0
    %2250 = vmatpush1.msra.mxu0 %v225
    %2251 = vmatprep.subr.mxu0 0.0
    %2252 = vmatpush1.msra.mxu0 %v222
    %2253 = vmatprep.subr.mxu0 0.0
    %2254 = vmatpush1.msra.mxu0 %v219
    %2255 = vmatprep.subr.mxu0 0.0
    %2256 = vmatpush1.msra.mxu0 %v216
    %2257 = vmatprep.subr.mxu0 0.0
    %2258 = vmatpush1.msra.mxu0 %v213
    %2259 = vmatprep.subr.mxu0 0.0
    %2260 = vmatpush2.msra.mxu0 0.0
    %2261 = vmatprep.subr.mxu0 0.0
    %2262 = vmatpush2.msra.mxu0 0.0
    %2263 = vmatprep.subr.mxu0 0.0
    %2264 = vmatpush2.msra.mxu0 0.0
    %2265 = vmatprep.subr.mxu0 0.0
    %2266 = vmatpush2.msra.mxu0 0.0
    %2267 = vmatprep.subr.mxu0 0.0
    %2268 = vmatpush2.msra.mxu0 0.0
    %2269 = vmatprep.subr.mxu0 0.0
    %2270 = vmatpush2.msra.mxu0 0.0
    %2271 = vmatprep.subr.mxu0 0.0
    %2272 = vmatpush2.msra.mxu0 0.0
    %2273 = vmatprep.subr.mxu0 0.0
    %2274 = vmatpush2.msra.mxu0 0.0
    %2275 = vmatprep.subr.mxu0 0.0
    %2276 = vmatpush2.msra.mxu0 0.0
    %2277 = vmatprep.subr.mxu0 0.0
    %2278 = vmatpush2.msra.mxu0 0.0
    %2279 = vmatprep.subr.mxu0 0.0
    %2280 = vmatpush2.msra.mxu0 0.0
    %2281 = vmatprep.subr.mxu0 0.0
    %2282 = vmatpush2.msra.mxu0 0.0
    %2283 = vmatprep.subr.mxu0 0.0
    %2284 = vmatpush2.msra.mxu0 0.0
    %2285 = vmatprep.subr.mxu0 0.0
    %2286 = vmatpush2.msra.mxu0 0.0
    %2287 = vmatprep.subr.mxu0 0.0
    %2288 = vmatpush2.msra.mxu0 0.0
    %2289 = vmatprep.subr.mxu0 0.0
    %2290 = vmatpush2.msra.mxu0 0.0
    %2291 = vmatprep.mubr.f32.mxu0 0.0
    %2292 = vmatmul.mubr.f32.gmra.mxu0 %v1984
    %v2293 = vpop.f32.mrf.mxu0
    %v2294 = vadd.f32 0.0, %v2293
    %v2295 = vpop.f32.mrf.mxu0
    %2296 = vdwg.mxu0
    %v2297 = vadd.f32 %v2153, %v2223
    %v2298 = vadd.f32 %v2154, %v2225
    %v2299 = vxor.u32 %v2297, 2147483648
    %v2300 = vxor.u32 %v2298, 2147483648
    %v2301 = vmul.f32 %v2299, 1.442695
    %v2302 = vpow.pop %v2301
    %v2303 = vmul.f32 %v2300, 1.442695
    %v2304 = vpow.pop %v2303
    %v2305 = vadd.f32 %v2302, 1.0
    %v2306 = vadd.f32 %v2304, 1.0
    %v2307 = vrcp.pop %v2305
    %v2308 = vmul.f32 1.0, %v2307
    %v2309 = vrcp.pop %v2306
    %v2310 = vmul.f32 1.0, %v2309
    %v2311 = vadd.f32 %v2294, %v599
    %v2312 = vmul.f32 %v2308, %v2311
    %v2313 = vadd.f32 %v2155, %v2312
    %v2314 = vtanh.pop %v2313
    %v2315 = vsub.f32 1.0, %v2310
    %v2316 = vmul.f32 %v2315, %v2314
    %v2317 = vmul.f32 %v2310, %v1984
    %v2318 = vadd.f32 %v2316, %v2317
    %v2319 = vld [vmem:[#allocation4] sm:$0xff]
    %v2320 = vadd.f32 %v2319, %v2151
    %v2321 = vadd.f32 %v2320, %v2318
    %2322 = vst [vmem:[#allocation4] sm:$0xff] %v2321
    %2323 = vst [vmem:[#allocation2] sm:$0xff] %v2151
    %2324 = vst [vmem:[#allocation3] sm:$0xff] %v2318
    %v2325 = vld [vmem:[#allocation2] sm:$0xff]
    %v2326 = vld [vmem:[#allocation3] sm:$0xff]
    %s2327 = scalar_lea.vmem [#allocation5], 144
    %v2328 = vld [vmem:[%s2327] sm:$0xff]
    %v2329 = vld [vmem:[%s2327 + $0x8] sm:$0xff]
    %v2330 = vld [vmem:[%s2327 + $0x10] sm:$0xff]
    %2331 = vmatprep.subr.mxu0 %v208
    %2332 = vmatpush1.msra.mxu0 %v207
    %2333 = vmatprep.subr.mxu0 %v205
    %2334 = vmatpush1.msra.mxu0 %v204
    %2335 = vmatprep.subr.mxu0 %v202
    %2336 = vmatpush1.msra.mxu0 %v201
    %2337 = vmatprep.subr.mxu0 %v199
    %2338 = vmatpush1.msra.mxu0 %v198
    %2339 = vmatprep.subr.mxu0 %v196
    %2340 = vmatpush1.msra.mxu0 %v195
    %2341 = vmatprep.subr.mxu0 %v193
    %2342 = vmatpush1.msra.mxu0 %v192
    %2343 = vmatprep.subr.mxu0 %v190
    %2344 = vmatpush1.msra.mxu0 %v189
    %2345 = vmatprep.subr.mxu0 %v187
    %2346 = vmatpush1.msra.mxu0 %v186
    %2347 = vmatprep.subr.mxu0 %v184
    %2348 = vmatpush1.msra.mxu0 %v183
    %2349 = vmatprep.subr.mxu0 %v181
    %2350 = vmatpush1.msra.mxu0 %v180
    %2351 = vmatprep.subr.mxu0 %v178
    %2352 = vmatpush1.msra.mxu0 %v177
    %2353 = vmatprep.subr.mxu0 %v175
    %2354 = vmatpush1.msra.mxu0 %v174
    %2355 = vmatprep.subr.mxu0 %v172
    %2356 = vmatpush1.msra.mxu0 %v171
    %2357 = vmatprep.subr.mxu0 %v169
    %2358 = vmatpush1.msra.mxu0 %v168
    %2359 = vmatprep.subr.mxu0 %v166
    %2360 = vmatpush1.msra.mxu0 %v165
    %2361 = vmatprep.subr.mxu0 %v163
    %2362 = vmatpush1.msra.mxu0 %v162
    %2363 = vmatprep.subr.mxu0 0.0
    %2364 = vmatpush2.msra.mxu0 0.0
    %2365 = vmatprep.subr.mxu0 0.0
    %2366 = vmatpush2.msra.mxu0 0.0
    %2367 = vmatprep.subr.mxu0 0.0
    %2368 = vmatpush2.msra.mxu0 0.0
    %2369 = vmatprep.subr.mxu0 0.0
    %2370 = vmatpush2.msra.mxu0 0.0
    %2371 = vmatprep.subr.mxu0 0.0
    %2372 = vmatpush2.msra.mxu0 0.0
    %2373 = vmatprep.subr.mxu0 0.0
    %2374 = vmatpush2.msra.mxu0 0.0
    %2375 = vmatprep.subr.mxu0 0.0
    %2376 = vmatpush2.msra.mxu0 0.0
    %2377 = vmatprep.subr.mxu0 0.0
    %2378 = vmatpush2.msra.mxu0 0.0
    %2379 = vmatprep.subr.mxu0 0.0
    %2380 = vmatpush2.msra.mxu0 0.0
    %2381 = vmatprep.subr.mxu0 0.0
    %2382 = vmatpush2.msra.mxu0 0.0
    %2383 = vmatprep.subr.mxu0 0.0
    %2384 = vmatpush2.msra.mxu0 0.0
    %2385 = vmatprep.subr.mxu0 0.0
    %2386 = vmatpush2.msra.mxu0 0.0
    %2387 = vmatprep.subr.mxu0 0.0
    %2388 = vmatpush2.msra.mxu0 0.0
    %2389 = vmatprep.subr.mxu0 0.0
    %2390 = vmatpush2.msra.mxu0 0.0
    %2391 = vmatprep.subr.mxu0 0.0
    %2392 = vmatpush2.msra.mxu0 0.0
    %2393 = vmatprep.subr.mxu0 0.0
    %2394 = vmatpush2.msra.mxu0 0.0
    %2395 = vmatprep.mubr.f32.mxu0 0.0
    %2396 = vmatmul.mubr.f32.gmra.mxu0 %v2325
    %v2397 = vpop.f32.mrf.mxu0
    %v2398 = vadd.f32 0.0, %v2397
    %v2399 = vpop.f32.mrf.mxu0
    %v2400 = vadd.f32 0.0, %v2399
    %2401 = vdwg.mxu0
    %2402 = vmatprep.subr.mxu0 0.0
    %2403 = vmatpush1.msra.mxu0 %v209
    %2404 = vmatprep.subr.mxu0 0.0
    %2405 = vmatpush1.msra.mxu0 %v206
    %2406 = vmatprep.subr.mxu0 0.0
    %2407 = vmatpush1.msra.mxu0 %v203
    %2408 = vmatprep.subr.mxu0 0.0
    %2409 = vmatpush1.msra.mxu0 %v200
    %2410 = vmatprep.subr.mxu0 0.0
    %2411 = vmatpush1.msra.mxu0 %v197
    %2412 = vmatprep.subr.mxu0 0.0
    %2413 = vmatpush1.msra.mxu0 %v194
    %2414 = vmatprep.subr.mxu0 0.0
    %2415 = vmatpush1.msra.mxu0 %v191
    %2416 = vmatprep.subr.mxu0 0.0
    %2417 = vmatpush1.msra.mxu0 %v188
    %2418 = vmatprep.subr.mxu0 0.0
    %2419 = vmatpush1.msra.mxu0 %v185
    %2420 = vmatprep.subr.mxu0 0.0
    %2421 = vmatpush1.msra.mxu0 %v182
    %2422 = vmatprep.subr.mxu0 0.0
    %2423 = vmatpush1.msra.mxu0 %v179
    %2424 = vmatprep.subr.mxu0 0.0
    %2425 = vmatpush1.msra.mxu0 %v176
    %2426 = vmatprep.subr.mxu0 0.0
    %2427 = vmatpush1.msra.mxu0 %v173
    %2428 = vmatprep.subr.mxu0 0.0
    %2429 = vmatpush1.msra.mxu0 %v170
    %2430 = vmatprep.subr.mxu0 0.0
    %2431 = vmatpush1.msra.mxu0 %v167
    %2432 = vmatprep.subr.mxu0 0.0
    %2433 = vmatpush1.msra.mxu0 %v164
    %2434 = vmatprep.subr.mxu0 0.0
    %2435 = vmatpush2.msra.mxu0 0.0
    %2436 = vmatprep.subr.mxu0 0.0
    %2437 = vmatpush2.msra.mxu0 0.0
    %2438 = vmatprep.subr.mxu0 0.0
    %2439 = vmatpush2.msra.mxu0 0.0
    %2440 = vmatprep.subr.mxu0 0.0
    %2441 = vmatpush2.msra.mxu0 0.0
    %2442 = vmatprep.subr.mxu0 0.0
    %2443 = vmatpush2.msra.mxu0 0.0
    %2444 = vmatprep.subr.mxu0 0.0
    %2445 = vmatpush2.msra.mxu0 0.0
    %2446 = vmatprep.subr.mxu0 0.0
    %2447 = vmatpush2.msra.mxu0 0.0
    %2448 = vmatprep.subr.mxu0 0.0
    %2449 = vmatpush2.msra.mxu0 0.0
    %2450 = vmatprep.subr.mxu0 0.0
    %2451 = vmatpush2.msra.mxu0 0.0
    %2452 = vmatprep.subr.mxu0 0.0
    %2453 = vmatpush2.msra.mxu0 0.0
    %2454 = vmatprep.subr.mxu0 0.0
    %2455 = vmatpush2.msra.mxu0 0.0
    %2456 = vmatprep.subr.mxu0 0.0
    %2457 = vmatpush2.msra.mxu0 0.0
    %2458 = vmatprep.subr.mxu0 0.0
    %2459 = vmatpush2.msra.mxu0 0.0
    %2460 = vmatprep.subr.mxu0 0.0
    %2461 = vmatpush2.msra.mxu0 0.0
    %2462 = vmatprep.subr.mxu0 0.0
    %2463 = vmatpush2.msra.mxu0 0.0
    %2464 = vmatprep.subr.mxu0 0.0
    %2465 = vmatpush2.msra.mxu0 0.0
    %2466 = vmatprep.mubr.f32.mxu0 0.0
    %2467 = vmatmul.mubr.f32.gmra.mxu0 %v2325
    %v2468 = vpop.f32.mrf.mxu0
    %v2469 = vadd.f32 0.0, %v2468
    %v2470 = vpop.f32.mrf.mxu0
    %2471 = vdwg.mxu0
    %v2472 = vadd.f32 %v2328, %v2398
    %v2473 = vadd.f32 %v2329, %v2400
    %v2474 = vxor.u32 %v2472, 2147483648
    %v2475 = vxor.u32 %v2473, 2147483648
    %v2476 = vmul.f32 %v2474, 1.442695
    %v2477 = vpow.pop %v2476
    %v2478 = vmul.f32 %v2475, 1.442695
    %v2479 = vpow.pop %v2478
    %v2480 = vadd.f32 %v2477, 1.0
    %v2481 = vadd.f32 %v2479, 1.0
    %v2482 = vrcp.pop %v2480
    %v2483 = vmul.f32 1.0, %v2482
    %v2484 = vrcp.pop %v2481
    %v2485 = vmul.f32 1.0, %v2484
    %v2486 = vadd.f32 %v2469, %v426
    %v2487 = vmul.f32 %v2483, %v2486
    %v2488 = vadd.f32 %v2330, %v2487
    %v2489 = vtanh.pop %v2488
    %v2490 = vsub.f32 1.0, %v2485
    %v2491 = vmul.f32 %v2490, %v2489
    %v2492 = vmul.f32 %v2485, %v2325
    %v2493 = vadd.f32 %v2491, %v2492
    %s2494 = scalar_lea.vmem [#allocation6], 24
    %v2495 = vld [vmem:[%s2494] sm:$0xff]
    %v2496 = vld [vmem:[%s2494 + $0x8] sm:$0xff]
    %v2497 = vld [vmem:[%s2494 + $0x10] sm:$0xff]
    %2498 = vmatprep.subr.mxu0 %v257
    %2499 = vmatpush1.msra.mxu0 %v256
    %2500 = vmatprep.subr.mxu0 %v254
    %2501 = vmatpush1.msra.mxu0 %v253
    %2502 = vmatprep.subr.mxu0 %v251
    %2503 = vmatpush1.msra.mxu0 %v250
    %2504 = vmatprep.subr.mxu0 %v248
    %2505 = vmatpush1.msra.mxu0 %v247
    %2506 = vmatprep.subr.mxu0 %v245
    %2507 = vmatpush1.msra.mxu0 %v244
    %2508 = vmatprep.subr.mxu0 %v242
    %2509 = vmatpush1.msra.mxu0 %v241
    %2510 = vmatprep.subr.mxu0 %v239
    %2511 = vmatpush1.msra.mxu0 %v238
    %2512 = vmatprep.subr.mxu0 %v236
    %2513 = vmatpush1.msra.mxu0 %v235
    %2514 = vmatprep.subr.mxu0 %v233
    %2515 = vmatpush1.msra.mxu0 %v232
    %2516 = vmatprep.subr.mxu0 %v230
    %2517 = vmatpush1.msra.mxu0 %v229
    %2518 = vmatprep.subr.mxu0 %v227
    %2519 = vmatpush1.msra.mxu0 %v226
    %2520 = vmatprep.subr.mxu0 %v224
    %2521 = vmatpush1.msra.mxu0 %v223
    %2522 = vmatprep.subr.mxu0 %v221
    %2523 = vmatpush1.msra.mxu0 %v220
    %2524 = vmatprep.subr.mxu0 %v218
    %2525 = vmatpush1.msra.mxu0 %v217
    %2526 = vmatprep.subr.mxu0 %v215
    %2527 = vmatpush1.msra.mxu0 %v214
    %2528 = vmatprep.subr.mxu0 %v212
    %2529 = vmatpush1.msra.mxu0 %v211
    %2530 = vmatprep.subr.mxu0 0.0
    %2531 = vmatpush2.msra.mxu0 0.0
    %2532 = vmatprep.subr.mxu0 0.0
    %2533 = vmatpush2.msra.mxu0 0.0
    %2534 = vmatprep.subr.mxu0 0.0
    %2535 = vmatpush2.msra.mxu0 0.0
    %2536 = vmatprep.subr.mxu0 0.0
    %2537 = vmatpush2.msra.mxu0 0.0
    %2538 = vmatprep.subr.mxu0 0.0
    %2539 = vmatpush2.msra.mxu0 0.0
    %2540 = vmatprep.subr.mxu0 0.0
    %2541 = vmatpush2.msra.mxu0 0.0
    %2542 = vmatprep.subr.mxu0 0.0
    %2543 = vmatpush2.msra.mxu0 0.0
    %2544 = vmatprep.subr.mxu0 0.0
    %2545 = vmatpush2.msra.mxu0 0.0
    %2546 = vmatprep.subr.mxu0 0.0
    %2547 = vmatpush2.msra.mxu0 0.0
    %2548 = vmatprep.subr.mxu0 0.0
    %2549 = vmatpush2.msra.mxu0 0.0
    %2550 = vmatprep.subr.mxu0 0.0
    %2551 = vmatpush2.msra.mxu0 0.0
    %2552 = vmatprep.subr.mxu0 0.0
    %2553 = vmatpush2.msra.mxu0 0.0
    %2554 = vmatprep.subr.mxu0 0.0
    %2555 = vmatpush2.msra.mxu0 0.0
    %2556 = vmatprep.subr.mxu0 0.0
    %2557 = vmatpush2.msra.mxu0 0.0
    %2558 = vmatprep.subr.mxu0 0.0
    %2559 = vmatpush2.msra.mxu0 0.0
    %2560 = vmatprep.subr.mxu0 0.0
    %2561 = vmatpush2.msra.mxu0 0.0
    %2562 = vmatprep.mubr.f32.mxu0 0.0
    %2563 = vmatmul.mubr.f32.gmra.mxu0 %v2326
    %v2564 = vpop.f32.mrf.mxu0
    %v2565 = vadd.f32 0.0, %v2564
    %v2566 = vpop.f32.mrf.mxu0
    %v2567 = vadd.f32 0.0, %v2566
    %2568 = vdwg.mxu0
    %2569 = vmatprep.subr.mxu0 0.0
    %2570 = vmatpush1.msra.mxu0 %v258
    %2571 = vmatprep.subr.mxu0 0.0
    %2572 = vmatpush1.msra.mxu0 %v255
    %2573 = vmatprep.subr.mxu0 0.0
    %2574 = vmatpush1.msra.mxu0 %v252
    %2575 = vmatprep.subr.mxu0 0.0
    %2576 = vmatpush1.msra.mxu0 %v249
    %2577 = vmatprep.subr.mxu0 0.0
    %2578 = vmatpush1.msra.mxu0 %v246
    %2579 = vmatprep.subr.mxu0 0.0
    %2580 = vmatpush1.msra.mxu0 %v243
    %2581 = vmatprep.subr.mxu0 0.0
    %2582 = vmatpush1.msra.mxu0 %v240
    %2583 = vmatprep.subr.mxu0 0.0
    %2584 = vmatpush1.msra.mxu0 %v237
    %2585 = vmatprep.subr.mxu0 0.0
    %2586 = vmatpush1.msra.mxu0 %v234
    %2587 = vmatprep.subr.mxu0 0.0
    %2588 = vmatpush1.msra.mxu0 %v231
    %2589 = vmatprep.subr.mxu0 0.0
    %2590 = vmatpush1.msra.mxu0 %v228
    %2591 = vmatprep.subr.mxu0 0.0
    %2592 = vmatpush1.msra.mxu0 %v225
    %2593 = vmatprep.subr.mxu0 0.0
    %2594 = vmatpush1.msra.mxu0 %v222
    %2595 = vmatprep.subr.mxu0 0.0
    %2596 = vmatpush1.msra.mxu0 %v219
    %2597 = vmatprep.subr.mxu0 0.0
    %2598 = vmatpush1.msra.mxu0 %v216
    %2599 = vmatprep.subr.mxu0 0.0
    %2600 = vmatpush1.msra.mxu0 %v213
    %2601 = vmatprep.subr.mxu0 0.0
    %2602 = vmatpush2.msra.mxu0 0.0
    %2603 = vmatprep.subr.mxu0 0.0
    %2604 = vmatpush2.msra.mxu0 0.0
    %2605 = vmatprep.subr.mxu0 0.0
    %2606 = vmatpush2.msra.mxu0 0.0
    %2607 = vmatprep.subr.mxu0 0.0
    %2608 = vmatpush2.msra.mxu0 0.0
    %2609 = vmatprep.subr.mxu0 0.0
    %2610 = vmatpush2.msra.mxu0 0.0
    %2611 = vmatprep.subr.mxu0 0.0
    %2612 = vmatpush2.msra.mxu0 0.0
    %2613 = vmatprep.subr.mxu0 0.0
    %2614 = vmatpush2.msra.mxu0 0.0
    %2615 = vmatprep.subr.mxu0 0.0
    %2616 = vmatpush2.msra.mxu0 0.0
    %2617 = vmatprep.subr.mxu0 0.0
    %2618 = vmatpush2.msra.mxu0 0.0
    %2619 = vmatprep.subr.mxu0 0.0
    %2620 = vmatpush2.msra.mxu0 0.0
    %2621 = vmatprep.subr.mxu0 0.0
    %2622 = vmatpush2.msra.mxu0 0.0
    %2623 = vmatprep.subr.mxu0 0.0
    %2624 = vmatpush2.msra.mxu0 0.0
    %2625 = vmatprep.subr.mxu0 0.0
    %2626 = vmatpush2.msra.mxu0 0.0
    %2627 = vmatprep.subr.mxu0 0.0
    %2628 = vmatpush2.msra.mxu0 0.0
    %2629 = vmatprep.subr.mxu0 0.0
    %2630 = vmatpush2.msra.mxu0 0.0
    %2631 = vmatprep.subr.mxu0 0.0
    %2632 = vmatpush2.msra.mxu0 0.0
    %2633 = vmatprep.mubr.f32.mxu0 0.0
    %2634 = vmatmul.mubr.f32.gmra.mxu0 %v2326
    %v2635 = vpop.f32.mrf.mxu0
    %v2636 = vadd.f32 0.0, %v2635
    %v2637 = vpop.f32.mrf.mxu0
    %2638 = vdwg.mxu0
    %v2639 = vadd.f32 %v2495, %v2565
    %v2640 = vadd.f32 %v2496, %v2567
    %v2641 = vxor.u32 %v2639, 2147483648
    %v2642 = vxor.u32 %v2640, 2147483648
    %v2643 = vmul.f32 %v2641, 1.442695
    %v2644 = vpow.pop %v2643
    %v2645 = vmul.f32 %v2642, 1.442695
    %v2646 = vpow.pop %v2645
    %v2647 = vadd.f32 %v2644, 1.0
    %v2648 = vadd.f32 %v2646, 1.0
    %v2649 = vrcp.pop %v2647
    %v2650 = vmul.f32 1.0, %v2649
    %v2651 = vrcp.pop %v2648
    %v2652 = vmul.f32 1.0, %v2651
    %v2653 = vadd.f32 %v2636, %v599
    %v2654 = vmul.f32 %v2650, %v2653
    %v2655 = vadd.f32 %v2497, %v2654
    %v2656 = vtanh.pop %v2655
    %v2657 = vsub.f32 1.0, %v2652
    %v2658 = vmul.f32 %v2657, %v2656
    %v2659 = vmul.f32 %v2652, %v2326
    %v2660 = vadd.f32 %v2658, %v2659
    %v2661 = vld [vmem:[#allocation4] sm:$0xff]
    %v2662 = vadd.f32 %v2661, %v2493
    %v2663 = vadd.f32 %v2662, %v2660
    %2664 = vst [vmem:[#allocation4] sm:$0xff] %v2663
    %2665 = vst [vmem:[#allocation2] sm:$0xff] %v2493
    %2666 = vst [vmem:[#allocation3] sm:$0xff] %v2660
    %v2667 = vld [vmem:[#allocation2] sm:$0xff]
    %v2668 = vld [vmem:[#allocation3] sm:$0xff]
    %s2669 = scalar_lea.vmem [#allocation5], 168
    %v2670 = vld [vmem:[%s2669] sm:$0xff]
    %v2671 = vld [vmem:[%s2669 + $0x8] sm:$0xff]
    %v2672 = vld [vmem:[%s2669 + $0x10] sm:$0xff]
    %2673 = vmatprep.subr.mxu0 %v208
    %2674 = vmatpush1.msra.mxu0 %v207
    %2675 = vmatprep.subr.mxu0 %v205
    %2676 = vmatpush1.msra.mxu0 %v204
    %2677 = vmatprep.subr.mxu0 %v202
    %2678 = vmatpush1.msra.mxu0 %v201
    %2679 = vmatprep.subr.mxu0 %v199
    %2680 = vmatpush1.msra.mxu0 %v198
    %2681 = vmatprep.subr.mxu0 %v196
    %2682 = vmatpush1.msra.mxu0 %v195
    %2683 = vmatprep.subr.mxu0 %v193
    %2684 = vmatpush1.msra.mxu0 %v192
    %2685 = vmatprep.subr.mxu0 %v190
    %2686 = vmatpush1.msra.mxu0 %v189
    %2687 = vmatprep.subr.mxu0 %v187
    %2688 = vmatpush1.msra.mxu0 %v186
    %2689 = vmatprep.subr.mxu0 %v184
    %2690 = vmatpush1.msra.mxu0 %v183
    %2691 = vmatprep.subr.mxu0 %v181
    %2692 = vmatpush1.msra.mxu0 %v180
    %2693 = vmatprep.subr.mxu0 %v178
    %2694 = vmatpush1.msra.mxu0 %v177
    %2695 = vmatprep.subr.mxu0 %v175
    %2696 = vmatpush1.msra.mxu0 %v174
    %2697 = vmatprep.subr.mxu0 %v172
    %2698 = vmatpush1.msra.mxu0 %v171
    %2699 = vmatprep.subr.mxu0 %v169
    %2700 = vmatpush1.msra.mxu0 %v168
    %2701 = vmatprep.subr.mxu0 %v166
    %2702 = vmatpush1.msra.mxu0 %v165
    %2703 = vmatprep.subr.mxu0 %v163
    %2704 = vmatpush1.msra.mxu0 %v162
    %2705 = vmatprep.subr.mxu0 0.0
    %2706 = vmatpush2.msra.mxu0 0.0
    %2707 = vmatprep.subr.mxu0 0.0
    %2708 = vmatpush2.msra.mxu0 0.0
    %2709 = vmatprep.subr.mxu0 0.0
    %2710 = vmatpush2.msra.mxu0 0.0
    %2711 = vmatprep.subr.mxu0 0.0
    %2712 = vmatpush2.msra.mxu0 0.0
    %2713 = vmatprep.subr.mxu0 0.0
    %2714 = vmatpush2.msra.mxu0 0.0
    %2715 = vmatprep.subr.mxu0 0.0
    %2716 = vmatpush2.msra.mxu0 0.0
    %2717 = vmatprep.subr.mxu0 0.0
    %2718 = vmatpush2.msra.mxu0 0.0
    %2719 = vmatprep.subr.mxu0 0.0
    %2720 = vmatpush2.msra.mxu0 0.0
    %2721 = vmatprep.subr.mxu0 0.0
    %2722 = vmatpush2.msra.mxu0 0.0
    %2723 = vmatprep.subr.mxu0 0.0
    %2724 = vmatpush2.msra.mxu0 0.0
    %2725 = vmatprep.subr.mxu0 0.0
    %2726 = vmatpush2.msra.mxu0 0.0
    %2727 = vmatprep.subr.mxu0 0.0
    %2728 = vmatpush2.msra.mxu0 0.0
    %2729 = vmatprep.subr.mxu0 0.0
    %2730 = vmatpush2.msra.mxu0 0.0
    %2731 = vmatprep.subr.mxu0 0.0
    %2732 = vmatpush2.msra.mxu0 0.0
    %2733 = vmatprep.subr.mxu0 0.0
    %2734 = vmatpush2.msra.mxu0 0.0
    %2735 = vmatprep.subr.mxu0 0.0
    %2736 = vmatpush2.msra.mxu0 0.0
    %2737 = vmatprep.mubr.f32.mxu0 0.0
    %2738 = vmatmul.mubr.f32.gmra.mxu0 %v2667
    %v2739 = vpop.f32.mrf.mxu0
    %v2740 = vadd.f32 0.0, %v2739
    %v2741 = vpop.f32.mrf.mxu0
    %v2742 = vadd.f32 0.0, %v2741
    %2743 = vdwg.mxu0
    %2744 = vmatprep.subr.mxu0 0.0
    %2745 = vmatpush1.msra.mxu0 %v209
    %2746 = vmatprep.subr.mxu0 0.0
    %2747 = vmatpush1.msra.mxu0 %v206
    %2748 = vmatprep.subr.mxu0 0.0
    %2749 = vmatpush1.msra.mxu0 %v203
    %2750 = vmatprep.subr.mxu0 0.0
    %2751 = vmatpush1.msra.mxu0 %v200
    %2752 = vmatprep.subr.mxu0 0.0
    %2753 = vmatpush1.msra.mxu0 %v197
    %2754 = vmatprep.subr.mxu0 0.0
    %2755 = vmatpush1.msra.mxu0 %v194
    %2756 = vmatprep.subr.mxu0 0.0
    %2757 = vmatpush1.msra.mxu0 %v191
    %2758 = vmatprep.subr.mxu0 0.0
    %2759 = vmatpush1.msra.mxu0 %v188
    %2760 = vmatprep.subr.mxu0 0.0
    %2761 = vmatpush1.msra.mxu0 %v185
    %2762 = vmatprep.subr.mxu0 0.0
    %2763 = vmatpush1.msra.mxu0 %v182
    %2764 = vmatprep.subr.mxu0 0.0
    %2765 = vmatpush1.msra.mxu0 %v179
    %2766 = vmatprep.subr.mxu0 0.0
    %2767 = vmatpush1.msra.mxu0 %v176
    %2768 = vmatprep.subr.mxu0 0.0
    %2769 = vmatpush1.msra.mxu0 %v173
    %2770 = vmatprep.subr.mxu0 0.0
    %2771 = vmatpush1.msra.mxu0 %v170
    %2772 = vmatprep.subr.mxu0 0.0
    %2773 = vmatpush1.msra.mxu0 %v167
    %2774 = vmatprep.subr.mxu0 0.0
    %2775 = vmatpush1.msra.mxu0 %v164
    %2776 = vmatprep.subr.mxu0 0.0
    %2777 = vmatpush2.msra.mxu0 0.0
    %2778 = vmatprep.subr.mxu0 0.0
    %2779 = vmatpush2.msra.mxu0 0.0
    %2780 = vmatprep.subr.mxu0 0.0
    %2781 = vmatpush2.msra.mxu0 0.0
    %2782 = vmatprep.subr.mxu0 0.0
    %2783 = vmatpush2.msra.mxu0 0.0
    %2784 = vmatprep.subr.mxu0 0.0
    %2785 = vmatpush2.msra.mxu0 0.0
    %2786 = vmatprep.subr.mxu0 0.0
    %2787 = vmatpush2.msra.mxu0 0.0
    %2788 = vmatprep.subr.mxu0 0.0
    %2789 = vmatpush2.msra.mxu0 0.0
    %2790 = vmatprep.subr.mxu0 0.0
    %2791 = vmatpush2.msra.mxu0 0.0
    %2792 = vmatprep.subr.mxu0 0.0
    %2793 = vmatpush2.msra.mxu0 0.0
    %2794 = vmatprep.subr.mxu0 0.0
    %2795 = vmatpush2.msra.mxu0 0.0
    %2796 = vmatprep.subr.mxu0 0.0
    %2797 = vmatpush2.msra.mxu0 0.0
    %2798 = vmatprep.subr.mxu0 0.0
    %2799 = vmatpush2.msra.mxu0 0.0
    %2800 = vmatprep.subr.mxu0 0.0
    %2801 = vmatpush2.msra.mxu0 0.0
    %2802 = vmatprep.subr.mxu0 0.0
    %2803 = vmatpush2.msra.mxu0 0.0
    %2804 = vmatprep.subr.mxu0 0.0
    %2805 = vmatpush2.msra.mxu0 0.0
    %2806 = vmatprep.subr.mxu0 0.0
    %2807 = vmatpush2.msra.mxu0 0.0
    %2808 = vmatprep.mubr.f32.mxu0 0.0
    %2809 = vmatmul.mubr.f32.gmra.mxu0 %v2667
    %v2810 = vpop.f32.mrf.mxu0
    %v2811 = vadd.f32 0.0, %v2810
    %v2812 = vpop.f32.mrf.mxu0
    %2813 = vdwg.mxu0
    %v2814 = vadd.f32 %v2670, %v2740
    %v2815 = vadd.f32 %v2671, %v2742
    %v2816 = vxor.u32 %v2814, 2147483648
    %v2817 = vxor.u32 %v2815, 2147483648
    %v2818 = vmul.f32 %v2816, 1.442695
    %v2819 = vpow.pop %v2818
    %v2820 = vmul.f32 %v2817, 1.442695
    %v2821 = vpow.pop %v2820
    %v2822 = vadd.f32 %v2819, 1.0
    %v2823 = vadd.f32 %v2821, 1.0
    %v2824 = vrcp.pop %v2822
    %v2825 = vmul.f32 1.0, %v2824
    %v2826 = vrcp.pop %v2823
    %v2827 = vmul.f32 1.0, %v2826
    %v2828 = vadd.f32 %v2811, %v426
    %v2829 = vmul.f32 %v2825, %v2828
    %v2830 = vadd.f32 %v2672, %v2829
    %v2831 = vtanh.pop %v2830
    %v2832 = vsub.f32 1.0, %v2827
    %v2833 = vmul.f32 %v2832, %v2831
    %v2834 = vmul.f32 %v2827, %v2667
    %v2835 = vadd.f32 %v2833, %v2834
    %v2836 = vld [vmem:[#allocation6] sm:$0xff]
    %v2837 = vld [vmem:[#allocation6 + $0x8] sm:$0xff]
    %v2838 = vld [vmem:[#allocation6 + $0x10] sm:$0xff]
    %2839 = vmatprep.subr.mxu0 %v257
    %2840 = vmatpush1.msra.mxu0 %v256
    %2841 = vmatprep.subr.mxu0 %v254
    %2842 = vmatpush1.msra.mxu0 %v253
    %2843 = vmatprep.subr.mxu0 %v251
    %2844 = vmatpush1.msra.mxu0 %v250
    %2845 = vmatprep.subr.mxu0 %v248
    %2846 = vmatpush1.msra.mxu0 %v247
    %2847 = vmatprep.subr.mxu0 %v245
    %2848 = vmatpush1.msra.mxu0 %v244
    %2849 = vmatprep.subr.mxu0 %v242
    %2850 = vmatpush1.msra.mxu0 %v241
    %2851 = vmatprep.subr.mxu0 %v239
    %2852 = vmatpush1.msra.mxu0 %v238
    %2853 = vmatprep.subr.mxu0 %v236
    %2854 = vmatpush1.msra.mxu0 %v235
    %2855 = vmatprep.subr.mxu0 %v233
    %2856 = vmatpush1.msra.mxu0 %v232
    %2857 = vmatprep.subr.mxu0 %v230
    %2858 = vmatpush1.msra.mxu0 %v229
    %2859 = vmatprep.subr.mxu0 %v227
    %2860 = vmatpush1.msra.mxu0 %v226
    %2861 = vmatprep.subr.mxu0 %v224
    %2862 = vmatpush1.msra.mxu0 %v223
    %2863 = vmatprep.subr.mxu0 %v221
    %2864 = vmatpush1.msra.mxu0 %v220
    %2865 = vmatprep.subr.mxu0 %v218
    %2866 = vmatpush1.msra.mxu0 %v217
    %2867 = vmatprep.subr.mxu0 %v215
    %2868 = vmatpush1.msra.mxu0 %v214
    %2869 = vmatprep.subr.mxu0 %v212
    %2870 = vmatpush1.msra.mxu0 %v211
    %2871 = vmatprep.subr.mxu0 0.0
    %2872 = vmatpush2.msra.mxu0 0.0
    %2873 = vmatprep.subr.mxu0 0.0
    %2874 = vmatpush2.msra.mxu0 0.0
    %2875 = vmatprep.subr.mxu0 0.0
    %2876 = vmatpush2.msra.mxu0 0.0
    %2877 = vmatprep.subr.mxu0 0.0
    %2878 = vmatpush2.msra.mxu0 0.0
    %2879 = vmatprep.subr.mxu0 0.0
    %2880 = vmatpush2.msra.mxu0 0.0
    %2881 = vmatprep.subr.mxu0 0.0
    %2882 = vmatpush2.msra.mxu0 0.0
    %2883 = vmatprep.subr.mxu0 0.0
    %2884 = vmatpush2.msra.mxu0 0.0
    %2885 = vmatprep.subr.mxu0 0.0
    %2886 = vmatpush2.msra.mxu0 0.0
    %2887 = vmatprep.subr.mxu0 0.0
    %2888 = vmatpush2.msra.mxu0 0.0
    %2889 = vmatprep.subr.mxu0 0.0
    %2890 = vmatpush2.msra.mxu0 0.0
    %2891 = vmatprep.subr.mxu0 0.0
    %2892 = vmatpush2.msra.mxu0 0.0
    %2893 = vmatprep.subr.mxu0 0.0
    %2894 = vmatpush2.msra.mxu0 0.0
    %2895 = vmatprep.subr.mxu0 0.0
    %2896 = vmatpush2.msra.mxu0 0.0
    %2897 = vmatprep.subr.mxu0 0.0
    %2898 = vmatpush2.msra.mxu0 0.0
    %2899 = vmatprep.subr.mxu0 0.0
    %2900 = vmatpush2.msra.mxu0 0.0
    %2901 = vmatprep.subr.mxu0 0.0
    %2902 = vmatpush2.msra.mxu0 0.0
    %2903 = vmatprep.mubr.f32.mxu0 0.0
    %2904 = vmatmul.mubr.f32.gmra.mxu0 %v2668
    %v2905 = vpop.f32.mrf.mxu0
    %v2906 = vadd.f32 0.0, %v2905
    %v2907 = vpop.f32.mrf.mxu0
    %v2908 = vadd.f32 0.0, %v2907
    %2909 = vdwg.mxu0
    %2910 = vmatprep.subr.mxu0 0.0
    %2911 = vmatpush1.msra.mxu0 %v258
    %2912 = vmatprep.subr.mxu0 0.0
    %2913 = vmatpush1.msra.mxu0 %v255
    %2914 = vmatprep.subr.mxu0 0.0
    %2915 = vmatpush1.msra.mxu0 %v252
    %2916 = vmatprep.subr.mxu0 0.0
    %2917 = vmatpush1.msra.mxu0 %v249
    %2918 = vmatprep.subr.mxu0 0.0
    %2919 = vmatpush1.msra.mxu0 %v246
    %2920 = vmatprep.subr.mxu0 0.0
    %2921 = vmatpush1.msra.mxu0 %v243
    %2922 = vmatprep.subr.mxu0 0.0
    %2923 = vmatpush1.msra.mxu0 %v240
    %2924 = vmatprep.subr.mxu0 0.0
    %2925 = vmatpush1.msra.mxu0 %v237
    %2926 = vmatprep.subr.mxu0 0.0
    %2927 = vmatpush1.msra.mxu0 %v234
    %2928 = vmatprep.subr.mxu0 0.0
    %2929 = vmatpush1.msra.mxu0 %v231
    %2930 = vmatprep.subr.mxu0 0.0
    %2931 = vmatpush1.msra.mxu0 %v228
    %2932 = vmatprep.subr.mxu0 0.0
    %2933 = vmatpush1.msra.mxu0 %v225
    %2934 = vmatprep.subr.mxu0 0.0
    %2935 = vmatpush1.msra.mxu0 %v222
    %2936 = vmatprep.subr.mxu0 0.0
    %2937 = vmatpush1.msra.mxu0 %v219
    %2938 = vmatprep.subr.mxu0 0.0
    %2939 = vmatpush1.msra.mxu0 %v216
    %2940 = vmatprep.subr.mxu0 0.0
    %2941 = vmatpush1.msra.mxu0 %v213
    %2942 = vmatprep.subr.mxu0 0.0
    %2943 = vmatpush2.msra.mxu0 0.0
    %2944 = vmatprep.subr.mxu0 0.0
    %2945 = vmatpush2.msra.mxu0 0.0
    %2946 = vmatprep.subr.mxu0 0.0
    %2947 = vmatpush2.msra.mxu0 0.0
    %2948 = vmatprep.subr.mxu0 0.0
    %2949 = vmatpush2.msra.mxu0 0.0
    %2950 = vmatprep.subr.mxu0 0.0
    %2951 = vmatpush2.msra.mxu0 0.0
    %2952 = vmatprep.subr.mxu0 0.0
    %2953 = vmatpush2.msra.mxu0 0.0
    %2954 = vmatprep.subr.mxu0 0.0
    %2955 = vmatpush2.msra.mxu0 0.0
    %2956 = vmatprep.subr.mxu0 0.0
    %2957 = vmatpush2.msra.mxu0 0.0
    %2958 = vmatprep.subr.mxu0 0.0
    %2959 = vmatpush2.msra.mxu0 0.0
    %2960 = vmatprep.subr.mxu0 0.0
    %2961 = vmatpush2.msra.mxu0 0.0
    %2962 = vmatprep.subr.mxu0 0.0
    %2963 = vmatpush2.msra.mxu0 0.0
    %2964 = vmatprep.subr.mxu0 0.0
    %2965 = vmatpush2.msra.mxu0 0.0
    %2966 = vmatprep.subr.mxu0 0.0
    %2967 = vmatpush2.msra.mxu0 0.0
    %2968 = vmatprep.subr.mxu0 0.0
    %2969 = vmatpush2.msra.mxu0 0.0
    %2970 = vmatprep.subr.mxu0 0.0
    %2971 = vmatpush2.msra.mxu0 0.0
    %2972 = vmatprep.subr.mxu0 0.0
    %2973 = vmatpush2.msra.mxu0 0.0
    %2974 = vmatprep.mubr.f32.mxu0 0.0
    %2975 = vmatmul.mubr.f32.gmra.mxu0 %v2668
    %v2976 = vpop.f32.mrf.mxu0
    %v2977 = vadd.f32 0.0, %v2976
    %v2978 = vpop.f32.mrf.mxu0
    %2979 = vdwg.mxu0
    %v2980 = vadd.f32 %v2836, %v2906
    %v2981 = vadd.f32 %v2837, %v2908
    %v2982 = vxor.u32 %v2980, 2147483648
    %v2983 = vxor.u32 %v2981, 2147483648
    %v2984 = vmul.f32 %v2982, 1.442695
    %v2985 = vpow.pop %v2984
    %v2986 = vmul.f32 %v2983, 1.442695
    %v2987 = vpow.pop %v2986
    %v2988 = vadd.f32 %v2985, 1.0
    %v2989 = vadd.f32 %v2987, 1.0
    %v2990 = vrcp.pop %v2988
    %v2991 = vmul.f32 1.0, %v2990
    %v2992 = vrcp.pop %v2989
    %v2993 = vmul.f32 1.0, %v2992
    %v2994 = vadd.f32 %v2977, %v599
    %v2995 = vmul.f32 %v2991, %v2994
    %v2996 = vadd.f32 %v2838, %v2995
    %v2997 = vtanh.pop %v2996
    %v2998 = vsub.f32 1.0, %v2993
    %v2999 = vmul.f32 %v2998, %v2997
    %v3000 = vmul.f32 %v2993, %v2668
    %v3001 = vadd.f32 %v2999, %v3000
    %v3002 = vld [vmem:[#allocation4] sm:$0xff]
    %v3003 = vadd.f32 %v3002, %v2835
    %v3004 = vadd.f32 %v3003, %v3001
    %3005 = vst [vmem:[#allocation4] sm:$0xff] %v3004
    %3006 = vst [vmem:[#allocation2] sm:$0xff] %v2835
    %3007 = vst [vmem:[#allocation3] sm:$0xff] %v3001
    // Predicated region
    $region68: #{encoder_forward.3} parent=1 // pred_check
      %p3008 = pneg %p155
    $region69: #{encoder_forward.3} parent=1 // pred_check_branch
      %3010 = sbr.rel (%p3008) target = $region71
    $region70: #{encoder_forward.3} parent=1 // pred_region
      %v3011 = vld [vmem:[#allocation4] sm:$0xff]
      %v3012 = vmul.f32 %v3011, 0.0625
      %3013 = vst [vmem:[%s4] sm:$0xff] %v3012
    $region71: #{encoder_forward.3} parent=1 // pred_fallthru
      _
    // Predicated region
    $region72: #{encoder_forward.3} parent=1 // pred_check
      _
    $region73: #{encoder_forward.3} parent=1 // pred_check_branch
      %3015 = sbr.rel (0) target = $region75
    $region74: #{encoder_forward.3} parent=1 // pred_region
      _
    $region75: #{encoder_forward.3} parent=1 // pred_fallthru
      _
    // Predicated region
    $region76: #{encoder_forward.3} parent=1 // pred_check
      _
    $region77: #{encoder_forward.3} parent=1 // pred_check_branch
      %3017 = sbr.rel (0) target = $region79
    $region78: #{encoder_forward.3} parent=1 // pred_region
      _
    $region79: #{encoder_forward.3} parent=1 // pred_fallthru
      _

</llo_original>
